<compile_context>
chip_gen: v5e
topology: v5e:2x2
jax: 0.10.0
libtpu: 0.0.40
codegen_flags: <defaults>
</compile_context>

<pallas_src>
import functools

import jax
import jax.numpy as jnp
from jax import lax
from jax.experimental import pallas as pl
from jax.experimental.pallas import tpu as pltpu


# ----------------------------- BlockSpec helpers -----------------------------

def _shared_spec(shape):
    n = len(shape)
    return pl.BlockSpec(tuple(shape), lambda b, _n=n: (0,) * _n)


def _batched_spec(shape):
    n = len(shape)
    return pl.BlockSpec((None,) + tuple(shape), lambda b, _n=n: (b,) + (0,) * _n)


_PARALLEL_B = pltpu.CompilerParams(dimension_semantics=("parallel",))


# --------------------------------- Kernels -----------------------------------

def _featurenet_kernel(x_ref, w1_ref, w2_ref, w3_ref, out_ref, *, k, n):
    """FeatureNet: 3x (1x1 conv + ReLU) on all k*N grouped coords with ONE tall matmul
    per weight, then max over the k neighbors via sublane-aligned slices.

    x_ref: (k*N, 3) relative grouped coords (neighbor-major);  out_ref: (N, D)."""
    h = x_ref[...]                                                        # (k*N, 3)
    h = jnp.maximum(jnp.dot(h, w1_ref[...], preferred_element_type=jnp.float32), 0.0)
    h = jnp.maximum(jnp.dot(h, w2_ref[...], preferred_element_type=jnp.float32), 0.0)
    h = jnp.maximum(jnp.dot(h, w3_ref[...], preferred_element_type=jnp.float32), 0.0)
    acc = h[0:n]
    for j in range(1, k):                                                 # static unroll
        acc = jnp.maximum(acc, h[j * n:(j + 1) * n])
    out_ref[...] = acc


def _res_stage_kernel(pts_ref, adj_ref, wc_ref, wn_ref, wuc_ref, wun_ref,
                      pts_out_ref, new6_ref, *, alpha, num_blocks):
    """Fused ResGraphConvUnpool stage (4 res blocks + unpool head) for one batch element.

    pts_ref: (N, C) f32; adj_ref: (N, N) bf16 binary adjacency with self loops set.
    DenseGCNConv normalization D^-1/2 (A+I) D^-1/2 is folded in as dinv scaling, so
    adj stays binary/bf16 and is DMA'd exactly once per stage."""
    adj = adj_ref[...]                                                     # (N, N) bf16
    deg = jnp.sum(adj.astype(jnp.float32), axis=-1, keepdims=True)         # (N, 1)
    dinv = lax.rsqrt(jnp.maximum(deg, 1.0))                                # (N, 1) f32

    def gcn_agg(h):
        # adj_norm @ h  ==  dinv * (adj @ (dinv * h)),  bf16 MXU with f32 accumulation.
        hs = (dinv * h).astype(jnp.bfloat16)
        return dinv * jnp.dot(adj, hs, preferred_element_type=jnp.float32)

    s = pts_ref[...]                                                       # (N, C) shortcut
    for i in range(num_blocks):                                            # static unroll
        p = jnp.maximum(s, 0.0)                                            # ReLU(points)
        center = jnp.dot(p, wc_ref[i], preferred_element_type=jnp.float32)  # Linear
        h = jnp.dot(s, wn_ref[i], preferred_element_type=jnp.float32)       # GCN: X @ W
        gcn = gcn_agg(h)
        s = (1.0 - alpha) * gcn + alpha * center + s
    pts_out_ref[...] = s

    # Unpool head: alpha * (P @ Wuc) + (1-alpha) * adj_norm @ (P @ Wun)   -> (N, 6)
    px = jnp.dot(s, wuc_ref[...], preferred_element_type=jnp.float32)
    gx = gcn_agg(jnp.dot(s, wun_ref[...], preferred_element_type=jnp.float32))
    new6_ref[...] = alpha * px + (1.0 - alpha) * gx


def _neg_dist_kernel(q_ref, r_ref, rr_ref, out_ref):
    """knn score: 2 q.r - ||r||^2 (the per-row-constant ||q||^2 is dropped; it cannot
    change the per-row top-k ordering).  Larger score == nearer."""
    q = q_ref[...]                                                         # (Nq, 3)
    r = r_ref[...]                                                         # (Nr, 3)
    rr = rr_ref[...]                                                       # (1, Nr)
    qr = lax.dot_general(q, r, (((1,), (1,)), ((), ())),
                         preferred_element_type=jnp.float32)               # (Nq, Nr)
    out_ref[...] = 2.0 * qr - rr


# ------------------------------ Pallas wrappers -------------------------------

def _featurenet_conv_max(grouped_flat, w1, w2, w3, k, n):
    B = grouped_flat.shape[0]
    D = w3.shape[1]
    kern = functools.partial(_featurenet_kernel, k=k, n=n)
    return pl.pallas_call(
        kern,
        out_shape=jax.ShapeDtypeStruct((B, n, D), jnp.float32),
        grid=(B,),
        in_specs=[_batched_spec((k * n, 3)), _shared_spec(w1.shape),
                  _shared_spec(w2.shape), _shared_spec(w3.shape)],
        out_specs=_batched_spec((n, D)),
        compiler_params=_PARALLEL_B,
    )(grouped_flat, w1, w2, w3)


def _res_stage(points, adj_bf16, wc, wn, wuc, wun, alpha):
    B, N, C = points.shape
    L = wc.shape[0]
    kern = functools.partial(_res_stage_kernel, alpha=alpha, num_blocks=L)
    return pl.pallas_call(
        kern,
        out_shape=(jax.ShapeDtypeStruct((B, N, C), jnp.float32),
                   jax.ShapeDtypeStruct((B, N, 6), jnp.float32)),
        grid=(B,),
        in_specs=[_batched_spec((N, C)), _batched_spec((N, N)),
                  _shared_spec(wc.shape), _shared_spec(wn.shape),
                  _shared_spec(wuc.shape), _shared_spec(wun.shape)],
        out_specs=(_batched_spec((N, C)), _batched_spec((N, 6))),
        compiler_params=pltpu.CompilerParams(
            dimension_semantics=("parallel",),
            vmem_limit_bytes=48 * 1024 * 1024),  # headroom, fits v7x's 64 MiB VMEM
    )(points, adj_bf16, wc, wn, wuc, wun)


def _knn_scores(q, r):
    B, Nq, _ = q.shape
    Nr = r.shape[1]
    rr = jnp.sum(r * r, axis=-1)[:, None, :]                              # (B, 1, Nr)
    return pl.pallas_call(
        _neg_dist_kernel,
        out_shape=jax.ShapeDtypeStruct((B, Nq, Nr), jnp.float32),
        grid=(B,),
        in_specs=[_batched_spec((Nq, 3)), _batched_spec((Nr, 3)),
                  _batched_spec((1, Nr))],
        out_specs=_batched_spec((Nq, Nr)),
        compiler_params=_PARALLEL_B,
    )(q, r, rr)


# --------------------------------- Glue (JAX) ---------------------------------

def _knn_indices(query_cl, ref_cl, k):
    """knn_point(k, query, reference): (B, Nq, k) indices into reference, nearest first."""
    scores = _knn_scores(query_cl, ref_cl)          # Pallas kernel (higher = nearer)
    _, idx = lax.top_k(scores, k)                   # selection kept in plain JAX
    return idx


def featurenet_forward(xyz_cl, p, k):
    # gutil.group(xyz, None, k): relative coordinates of the k nearest neighbors.
    B, N, _ = xyz_cl.shape
    idx = _knn_indices(xyz_cl, xyz_cl, k)                              # (B, N, k)
    gathered = jax.vmap(lambda pts, ii: pts[ii])(xyz_cl, idx)          # (B, N, k, 3)
    rel = gathered - xyz_cl[:, :, None, :]
    grouped = jnp.transpose(rel, (0, 2, 1, 3)).reshape(B, k * N, 3)    # neighbor-major
    return _featurenet_conv_max(grouped, p["w1"], p["w2"], p["w3"], k, N)  # (B, N, D)


def res_graph_conv_unpool(xyz_cl, points, p, k):
    B, N, C = points.shape
    assert p["wc"].shape[1] == p["wc"].shape[2] == C, "residual requires in_dim == dim"
    alpha = k / (k + 1)

    idx = _knn_indices(xyz_cl, xyz_cl, k)                              # col 0 == self
    neigh = idx[:, :, 1:]                                              # drop self (indices[:, 1:])
    adj = jnp.sum(jax.nn.one_hot(neigh, N, dtype=jnp.float32), axis=2) > 0
    adj = jnp.logical_or(adj, jnp.eye(N, dtype=bool)[None])            # DenseGCNConv add_loop
    adj = adj.astype(jnp.bfloat16)                                     # exact for {0,1}

    points_out, new6 = _res_stage(points, adj, p["wc"], p["wn"],
                                  p["wuc"], p["wun"], alpha)           # fused Pallas stage

    # (B, 6, N) -> (B, 3, 2, N) -> +xyz -> (B, 3, 2N), done channels-last here.
    new6 = new6.reshape(B, N, 3, 2) + xyz_cl[:, :, :, None]            # (B, N, 3, 2)
    new_xyz_cl = jnp.transpose(new6, (0, 3, 1, 2)).reshape(B, 2 * N, 3)
    return new_xyz_cl, points_out


def generator_forward(xyz, params, k):
    # xyz: (B, 3, N) as in the PyTorch module
    xyz_cl = jnp.transpose(xyz, (0, 2, 1))                             # (B, N, 3)
    points = featurenet_forward(xyz_cl, params["featurenet"], k)       # (B, N, feat_dim)

    new_xyz_cl, points = res_graph_conv_unpool(xyz_cl, points, params["res1"], k)

    # group_point(points, knn(new_xyz, xyz)) + mean over k  ==  gather + mean (no NxN operand)
    idx = _knn_indices(new_xyz_cl, xyz_cl, k)                          # (B, 2N, k) into [0, N)
    gathered = jax.vmap(lambda pts, ii: pts[ii])(points, idx)          # (B, 2N, k, C)
    points = jnp.mean(gathered, axis=2)                                # (B, 2N, C)

    new_xyz_cl, _ = res_graph_conv_unpool(new_xyz_cl, points, params["res2"], k)
    return jnp.transpose(new_xyz_cl, (0, 2, 1))                        # (B, 3, 4N)


# ------------------------------- Parameter init --------------------------------

def _xavier_uniform(key, shape):
    fan_in, fan_out = shape[-2], shape[-1]
    limit = (6.0 / (fan_in + fan_out)) ** 0.5
    return jax.random.uniform(key, shape, jnp.float32, -limit, limit)


def _init_res_params(key, in_dim, dim):
    assert in_dim == dim, "ResGraphConvUnpool residual requires in_dim == dim"
    k1, k2, k3, k4 = jax.random.split(key, 4)
    return {
        "wc": _xavier_uniform(k1, (4, in_dim, dim)),   # stacked center-conv weights
        "wn": _xavier_uniform(k2, (4, in_dim, dim)),   # stacked GCN weights
        "wuc": _xavier_uniform(k3, (dim, 6)),
        "wun": _xavier_uniform(k4, (dim, 6)),
    }


def init_params(key, cfg):
    feat_dim = cfg["feat_dim"]
    res_dim = cfg["res_conv_dim"]
    k1, k2, k3, k4, k5 = jax.random.split(key, 5)
    return {
        "featurenet": {
            "w1": _xavier_uniform(k1, (3, feat_dim)),
            "w2": _xavier_uniform(k2, (feat_dim, feat_dim)),
            "w3": _xavier_uniform(k3, (feat_dim, feat_dim)),
        },
        "res1": _init_res_params(k4, feat_dim, res_dim),
        "res2": _init_res_params(k5, res_dim, res_dim),
    }


# ------------------------------------ Main --------------------------------------

if __name__ == "__main__":
    B, N, K = 2, 16, 4
    cfg = {"k": K, "feat_dim": 32, "res_conv_dim": 32}

    key = jax.random.PRNGKey(0)
    kx, kp = jax.random.split(key)
    xyz = jax.random.normal(kx, (B, 3, N), jnp.float32)
    params = init_params(kp, cfg)

    fwd = jax.jit(lambda x, p: generator_forward(x, p, K))
    new_xyz = jax.block_until_ready(fwd(xyz, params))

    assert new_xyz.shape == (B, 3, 4 * N), new_xyz.shape
    assert bool(jnp.all(jnp.isfinite(new_xyz)))
    print("KERNEL_OK")
</pallas_src>

<mosaic_0001>
module attributes {stable_mosaic.version = 11 : i64} {
  func.func @_neg_dist_kernel(%arg0: i32, %arg1: memref<1x16x3xf32, #tpu.memory_space<vmem>>, %arg2: memref<1x16x3xf32, #tpu.memory_space<vmem>>, %arg3: memref<1x1x16xf32, #tpu.memory_space<vmem>>, %arg4: memref<1x16x16xf32, #tpu.memory_space<vmem>>) attributes {dimension_semantics = [#tpu.dimension_semantics<parallel>], iteration_bounds = array<i64: 2>, scalar_prefetch = 0 : i64, scratch_operands = 0 : i64, tpu.core_type = #tpu.core_type<tc>, window_params = [{transform_indices = @transform_0, window_bounds = array<i64: 1, 16, 3>}, {transform_indices = @transform_1, window_bounds = array<i64: 1, 16, 3>}, {transform_indices = @transform_2, window_bounds = array<i64: 1, 1, 16>}, {transform_indices = @transform_3, window_bounds = array<i64: 1, 16, 16>}]} {
    %c0 = arith.constant 0 : index
    %c0_0 = arith.constant 0 : index
    %c0_1 = arith.constant 0 : index
    %0 = vector.load %arg1[%c0, %c0_0, %c0_1] : memref<1x16x3xf32, #tpu.memory_space<vmem>>, vector<1x16x3xf32>
    %1 = vector.shape_cast %0 : vector<1x16x3xf32> to vector<16x3xf32>
    %c0_2 = arith.constant 0 : index
    %c0_3 = arith.constant 0 : index
    %c0_4 = arith.constant 0 : index
    %2 = vector.load %arg2[%c0_2, %c0_3, %c0_4] : memref<1x16x3xf32, #tpu.memory_space<vmem>>, vector<1x16x3xf32>
    %3 = vector.shape_cast %2 : vector<1x16x3xf32> to vector<16x3xf32>
    %c0_5 = arith.constant 0 : index
    %c0_6 = arith.constant 0 : index
    %c0_7 = arith.constant 0 : index
    %4 = vector.load %arg3[%c0_5, %c0_6, %c0_7] : memref<1x1x16xf32, #tpu.memory_space<vmem>>, vector<1x1x16xf32>
    %5 = vector.shape_cast %4 : vector<1x1x16xf32> to vector<1x16xf32>
    %cst = arith.constant dense<0.000000e+00> : vector<16x16xf32>
    %6 = tpu.matmul %1, %3, %cst {dimension_numbers = #tpu.dot_dimension_numbers<[1], [1], [0], [0], [0, 0, 1, 0], [], []>} : vector<16x3xf32>, vector<16x3xf32>, vector<16x16xf32> -> vector<16x16xf32>
    %cst_8 = arith.constant 2.000000e+00 : f32
    %7 = vector.broadcast %cst_8 : f32 to vector<16x16xf32>
    %8 = arith.mulf %7, %6 : vector<16x16xf32>
    %9 = vector.broadcast %5 : vector<1x16xf32> to vector<16x16xf32>
    %10 = arith.subf %8, %9 : vector<16x16xf32>
    %c0_9 = arith.constant 0 : index
    %c0_10 = arith.constant 0 : index
    %c0_11 = arith.constant 0 : index
    %11 = vector.load %arg4[%c0_9, %c0_10, %c0_11] : memref<1x16x16xf32, #tpu.memory_space<vmem>>, vector<1x16x16xf32>
    %12 = vector.shape_cast %11 : vector<1x16x16xf32> to vector<16x16xf32>
    %13 = vector.shape_cast %10 : vector<16x16xf32> to vector<1x16x16xf32>
    tpu.vector_store %arg4[%c0_9, %c0_10, %c0_11], %13 {strides = array<i32>} : memref<1x16x16xf32, #tpu.memory_space<vmem>>, vector<1x16x16xf32>,
    return
  }
  func.func @transform_0(%arg0: i32) -> (i32, i32, i32) {
    %c0_i32 = arith.constant 0 : i32
    %c0_i32_0 = arith.constant 0 : i32
    %c0_i32_1 = arith.constant 0 : i32
    return %arg0, %c0_i32, %c0_i32_0 : i32, i32, i32
  }
  func.func @transform_1(%arg0: i32) -> (i32, i32, i32) {
    %c0_i32 = arith.constant 0 : i32
    %c0_i32_0 = arith.constant 0 : i32
    %c0_i32_1 = arith.constant 0 : i32
    return %arg0, %c0_i32, %c0_i32_0 : i32, i32, i32
  }
  func.func @transform_2(%arg0: i32) -> (i32, i32, i32) {
    %c0_i32 = arith.constant 0 : i32
    %c0_i32_0 = arith.constant 0 : i32
    %c0_i32_1 = arith.constant 0 : i32
    return %arg0, %c0_i32, %c0_i32_0 : i32, i32, i32
  }
  func.func @transform_3(%arg0: i32) -> (i32, i32, i32) {
    %c0_i32 = arith.constant 0 : i32
    %c0_i32_0 = arith.constant 0 : i32
    %c0_i32_1 = arith.constant 0 : i32
    return %arg0, %c0_i32, %c0_i32_0 : i32, i32, i32
  }
}

module attributes {stable_mosaic.version = 11 : i64} {
  func.func @_featurenet_kernel(%arg0: i32, %arg1: memref<1x64x3xf32, #tpu.memory_space<vmem>>, %arg2: memref<3x32xf32, #tpu.memory_space<vmem>>, %arg3: memref<32x32xf32, #tpu.memory_space<vmem>>, %arg4: memref<32x32xf32, #tpu.memory_space<vmem>>, %arg5: memref<1x16x32xf32, #tpu.memory_space<vmem>>) attributes {dimension_semantics = [#tpu.dimension_semantics<parallel>], iteration_bounds = array<i64: 2>, scalar_prefetch = 0 : i64, scratch_operands = 0 : i64, tpu.core_type = #tpu.core_type<tc>, window_params = [{transform_indices = @transform_0, window_bounds = array<i64: 1, 64, 3>}, {pipeline_mode = #tpu.pipeline_mode<synchronous>, transform_indices = @transform_1, window_bounds = array<i64: 3, 32>}, {pipeline_mode = #tpu.pipeline_mode<synchronous>, transform_indices = @transform_2, window_bounds = array<i64: 32, 32>}, {pipeline_mode = #tpu.pipeline_mode<synchronous>, transform_indices = @transform_3, window_bounds = array<i64: 32, 32>}, {transform_indices = @transform_4, window_bounds = array<i64: 1, 16, 32>}]} {
    %c0 = arith.constant 0 : index
    %c0_0 = arith.constant 0 : index
    %c0_1 = arith.constant 0 : index
    %0 = vector.load %arg1[%c0, %c0_0, %c0_1] : memref<1x64x3xf32, #tpu.memory_space<vmem>>, vector<1x64x3xf32>
    %1 = vector.shape_cast %0 : vector<1x64x3xf32> to vector<64x3xf32>
    %c0_2 = arith.constant 0 : index
    %c0_3 = arith.constant 0 : index
    %2 = vector.load %arg2[%c0_2, %c0_3] : memref<3x32xf32, #tpu.memory_space<vmem>>, vector<3x32xf32>
    %cst = arith.constant dense<0.000000e+00> : vector<64x32xf32>
    %3 = tpu.matmul %1, %2, %cst {dimension_numbers = #tpu.dot_dimension_numbers<[1], [0], [0], [1], [0, 0, 1, 1], [], []>} : vector<64x3xf32>, vector<3x32xf32>, vector<64x32xf32> -> vector<64x32xf32>
    %cst_4 = arith.constant 0.000000e+00 : f32
    %4 = vector.broadcast %cst_4 : f32 to vector<64x32xf32>
    %5 = arith.maximumf %3, %4 : vector<64x32xf32>
    %c0_5 = arith.constant 0 : index
    %c0_6 = arith.constant 0 : index
    %6 = vector.load %arg3[%c0_5, %c0_6] : memref<32x32xf32, #tpu.memory_space<vmem>>, vector<32x32xf32>
    %cst_7 = arith.constant dense<0.000000e+00> : vector<64x32xf32>
    %7 = tpu.matmul %5, %6, %cst_7 {dimension_numbers = #tpu.dot_dimension_numbers<[1], [0], [0], [1], [0, 0, 1, 1], [], []>} : vector<64x32xf32>, vector<32x32xf32>, vector<64x32xf32> -> vector<64x32xf32>
    %cst_8 = arith.constant 0.000000e+00 : f32
    %8 = vector.broadcast %cst_8 : f32 to vector<64x32xf32>
    %9 = arith.maximumf %7, %8 : vector<64x32xf32>
    %c0_9 = arith.constant 0 : index
    %c0_10 = arith.constant 0 : index
    %10 = vector.load %arg4[%c0_9, %c0_10] : memref<32x32xf32, #tpu.memory_space<vmem>>, vector<32x32xf32>
    %cst_11 = arith.constant dense<0.000000e+00> : vector<64x32xf32>
    %11 = tpu.matmul %9, %10, %cst_11 {dimension_numbers = #tpu.dot_dimension_numbers<[1], [0], [0], [1], [0, 0, 1, 1], [], []>} : vector<64x32xf32>, vector<32x32xf32>, vector<64x32xf32> -> vector<64x32xf32>
    %cst_12 = arith.constant 0.000000e+00 : f32
    %12 = vector.broadcast %cst_12 : f32 to vector<64x32xf32>
    %13 = arith.maximumf %11, %12 : vector<64x32xf32>
    %14 = vector.extract_strided_slice %13 {offsets = [0, 0], sizes = [16, 32], strides = [1, 1]} : vector<64x32xf32> to vector<16x32xf32>
    %15 = vector.extract_strided_slice %13 {offsets = [16, 0], sizes = [16, 32], strides = [1, 1]} : vector<64x32xf32> to vector<16x32xf32>
    %16 = arith.maximumf %14, %15 : vector<16x32xf32>
    %17 = vector.extract_strided_slice %13 {offsets = [32, 0], sizes = [16, 32], strides = [1, 1]} : vector<64x32xf32> to vector<16x32xf32>
    %18 = arith.maximumf %16, %17 : vector<16x32xf32>
    %19 = vector.extract_strided_slice %13 {offsets = [48, 0], sizes = [16, 32], strides = [1, 1]} : vector<64x32xf32> to vector<16x32xf32>
    %20 = arith.maximumf %18, %19 : vector<16x32xf32>
    %c0_13 = arith.constant 0 : index
    %c0_14 = arith.constant 0 : index
    %c0_15 = arith.constant 0 : index
    %21 = vector.load %arg5[%c0_13, %c0_14, %c0_15] : memref<1x16x32xf32, #tpu.memory_space<vmem>>, vector<1x16x32xf32>
    %22 = vector.shape_cast %21 : vector<1x16x32xf32> to vector<16x32xf32>
    %23 = vector.shape_cast %20 : vector<16x32xf32> to vector<1x16x32xf32>
    tpu.vector_store %arg5[%c0_13, %c0_14, %c0_15], %23 {strides = array<i32>} : memref<1x16x32xf32, #tpu.memory_space<vmem>>, vector<1x16x32xf32>,
    return
  }
  func.func @transform_0(%arg0: i32) -> (i32, i32, i32) {
    %c0_i32 = arith.constant 0 : i32
    %c0_i32_0 = arith.constant 0 : i32
    %c0_i32_1 = arith.constant 0 : i32
    return %arg0, %c0_i32, %c0_i32_0 : i32, i32, i32
  }
  func.func @transform_1(%arg0: i32) -> (i32, i32) {
    %c0_i32 = arith.constant 0 : i32
    %c0_i32_0 = arith.constant 0 : i32
    %c0_i32_1 = arith.constant 0 : i32
    return %c0_i32, %c0_i32_0 : i32, i32
  }
  func.func @transform_2(%arg0: i32) -> (i32, i32) {
    %c0_i32 = arith.constant 0 : i32
    %c0_i32_0 = arith.constant 0 : i32
    %c0_i32_1 = arith.constant 0 : i32
    return %c0_i32, %c0_i32_0 : i32, i32
  }
  func.func @transform_3(%arg0: i32) -> (i32, i32) {
    %c0_i32 = arith.constant 0 : i32
    %c0_i32_0 = arith.constant 0 : i32
    %c0_i32_1 = arith.constant 0 : i32
    return %c0_i32, %c0_i32_0 : i32, i32
  }
  func.func @transform_4(%arg0: i32) -> (i32, i32, i32) {
    %c0_i32 = arith.constant 0 : i32
    %c0_i32_0 = arith.constant 0 : i32
    %c0_i32_1 = arith.constant 0 : i32
    return %arg0, %c0_i32, %c0_i32_0 : i32, i32, i32
  }
}

module attributes {stable_mosaic.version = 11 : i64} {
  func.func @_res_stage_kernel(%arg0: i32, %arg1: memref<1x16x32xf32, #tpu.memory_space<vmem>>, %arg2: memref<1x16x16xbf16, #tpu.memory_space<vmem>>, %arg3: memref<4x32x32xf32, #tpu.memory_space<vmem>>, %arg4: memref<4x32x32xf32, #tpu.memory_space<vmem>>, %arg5: memref<32x6xf32, #tpu.memory_space<vmem>>, %arg6: memref<32x6xf32, #tpu.memory_space<vmem>>, %arg7: memref<1x16x32xf32, #tpu.memory_space<vmem>>, %arg8: memref<1x16x6xf32, #tpu.memory_space<vmem>>) attributes {dimension_semantics = [#tpu.dimension_semantics<parallel>], iteration_bounds = array<i64: 2>, scalar_prefetch = 0 : i64, scratch_operands = 0 : i64, tpu.core_type = #tpu.core_type<tc>, window_params = [{transform_indices = @transform_0, window_bounds = array<i64: 1, 16, 32>}, {transform_indices = @transform_1, window_bounds = array<i64: 1, 16, 16>}, {pipeline_mode = #tpu.pipeline_mode<synchronous>, transform_indices = @transform_2, window_bounds = array<i64: 4, 32, 32>}, {pipeline_mode = #tpu.pipeline_mode<synchronous>, transform_indices = @transform_3, window_bounds = array<i64: 4, 32, 32>}, {pipeline_mode = #tpu.pipeline_mode<synchronous>, transform_indices = @transform_4, window_bounds = array<i64: 32, 6>}, {pipeline_mode = #tpu.pipeline_mode<synchronous>, transform_indices = @transform_5, window_bounds = array<i64: 32, 6>}, {transform_indices = @transform_6, window_bounds = array<i64: 1, 16, 32>}, {transform_indices = @transform_7, window_bounds = array<i64: 1, 16, 6>}]} {
    %c0 = arith.constant 0 : index
    %c0_0 = arith.constant 0 : index
    %c0_1 = arith.constant 0 : index
    %0 = vector.load %arg2[%c0, %c0_0, %c0_1] : memref<1x16x16xbf16, #tpu.memory_space<vmem>>, vector<1x16x16xbf16>
    %1 = vector.shape_cast %0 : vector<1x16x16xbf16> to vector<16x16xbf16>
    %2 = arith.extf %1 : vector<16x16xbf16> to vector<16x16xf32>
    %cst = arith.constant dense<0.000000e+00> : vector<16xf32>
    %3 = vector.multi_reduction <add>, %2, %cst [1] : vector<16x16xf32> to vector<16xf32>
    %4 = vector.shape_cast %3 : vector<16xf32> to vector<16x1xf32>
    %cst_2 = arith.constant 1.000000e+00 : f32
    %5 = vector.broadcast %cst_2 : f32 to vector<16x1xf32>
    %6 = arith.maximumf %4, %5 : vector<16x1xf32>
    %7 = math.rsqrt %6 : vector<16x1xf32>
    %c0_3 = arith.constant 0 : index
    %c0_4 = arith.constant 0 : index
    %c0_5 = arith.constant 0 : index
    %8 = vector.load %arg1[%c0_3, %c0_4, %c0_5] : memref<1x16x32xf32, #tpu.memory_space<vmem>>, vector<1x16x32xf32>
    %9 = vector.shape_cast %8 : vector<1x16x32xf32> to vector<16x32xf32>
    %cst_6 = arith.constant 0.000000e+00 : f32
    %10 = vector.broadcast %cst_6 : f32 to vector<16x32xf32>
    %11 = arith.maximumf %9, %10 : vector<16x32xf32>
    %c0_7 = arith.constant 0 : index
    %c0_8 = arith.constant 0 : index
    %c0_9 = arith.constant 0 : index
    %12 = vector.load %arg3[%c0_7, %c0_8, %c0_9] : memref<4x32x32xf32, #tpu.memory_space<vmem>>, vector<1x32x32xf32>
    %13 = vector.shape_cast %12 : vector<1x32x32xf32> to vector<32x32xf32>
    %cst_10 = arith.constant dense<0.000000e+00> : vector<16x32xf32>
    %14 = tpu.matmul %11, %13, %cst_10 {dimension_numbers = #tpu.dot_dimension_numbers<[1], [0], [0], [1], [0, 0, 1, 1], [], []>} : vector<16x32xf32>, vector<32x32xf32>, vector<16x32xf32> -> vector<16x32xf32>
    %c0_11 = arith.constant 0 : index
    %c0_12 = arith.constant 0 : index
    %c0_13 = arith.constant 0 : index
    %15 = vector.load %arg4[%c0_11, %c0_12, %c0_13] : memref<4x32x32xf32, #tpu.memory_space<vmem>>, vector<1x32x32xf32>
    %16 = vector.shape_cast %15 : vector<1x32x32xf32> to vector<32x32xf32>
    %cst_14 = arith.constant dense<0.000000e+00> : vector<16x32xf32>
    %17 = tpu.matmul %9, %16, %cst_14 {dimension_numbers = #tpu.dot_dimension_numbers<[1], [0], [0], [1], [0, 0, 1, 1], [], []>} : vector<16x32xf32>, vector<32x32xf32>, vector<16x32xf32> -> vector<16x32xf32>
    %18 = vector.broadcast %7 : vector<16x1xf32> to vector<16x32xf32>
    %19 = arith.mulf %18, %17 : vector<16x32xf32>
    %20 = arith.truncf %19 : vector<16x32xf32> to vector<16x32xbf16>
    %cst_15 = arith.constant dense<0.000000e+00> : vector<16x32xf32>
    %21 = tpu.matmul %1, %20, %cst_15 {dimension_numbers = #tpu.dot_dimension_numbers<[1], [0], [0], [1], [0, 0, 1, 1], [], []>} : vector<16x16xbf16>, vector<16x32xbf16>, vector<16x32xf32> -> vector<16x32xf32>
    %22 = vector.broadcast %7 : vector<16x1xf32> to vector<16x32xf32>
    %23 = arith.mulf %22, %21 : vector<16x32xf32>
    %cst_16 = arith.constant 2.000000e-01 : f32
    %24 = vector.broadcast %cst_16 : f32 to vector<16x32xf32>
    %25 = arith.mulf %24, %23 : vector<16x32xf32>
    %cst_17 = arith.constant 8.000000e-01 : f32
    %26 = vector.broadcast %cst_17 : f32 to vector<16x32xf32>
    %27 = arith.mulf %26, %14 : vector<16x32xf32>
    %28 = arith.addf %25, %27 : vector<16x32xf32>
    %29 = arith.addf %28, %9 : vector<16x32xf32>
    %cst_18 = arith.constant 0.000000e+00 : f32
    %30 = vector.broadcast %cst_18 : f32 to vector<16x32xf32>
    %31 = arith.maximumf %29, %30 : vector<16x32xf32>
    %c1 = arith.constant 1 : index
    %c0_19 = arith.constant 0 : index
    %c0_20 = arith.constant 0 : index
    %32 = vector.load %arg3[%c1, %c0_19, %c0_20] : memref<4x32x32xf32, #tpu.memory_space<vmem>>, vector<1x32x32xf32>
    %33 = vector.shape_cast %32 : vector<1x32x32xf32> to vector<32x32xf32>
    %cst_21 = arith.constant dense<0.000000e+00> : vector<16x32xf32>
    %34 = tpu.matmul %31, %33, %cst_21 {dimension_numbers = #tpu.dot_dimension_numbers<[1], [0], [0], [1], [0, 0, 1, 1], [], []>} : vector<16x32xf32>, vector<32x32xf32>, vector<16x32xf32> -> vector<16x32xf32>
    %c1_22 = arith.constant 1 : index
    %c0_23 = arith.constant 0 : index
    %c0_24 = arith.constant 0 : index
    %35 = vector.load %arg4[%c1_22, %c0_23, %c0_24] : memref<4x32x32xf32, #tpu.memory_space<vmem>>, vector<1x32x32xf32>
    %36 = vector.shape_cast %35 : vector<1x32x32xf32> to vector<32x32xf32>
    %cst_25 = arith.constant dense<0.000000e+00> : vector<16x32xf32>
    %37 = tpu.matmul %29, %36, %cst_25 {dimension_numbers = #tpu.dot_dimension_numbers<[1], [0], [0], [1], [0, 0, 1, 1], [], []>} : vector<16x32xf32>, vector<32x32xf32>, vector<16x32xf32> -> vector<16x32xf32>
    %38 = vector.broadcast %7 : vector<16x1xf32> to vector<16x32xf32>
    %39 = arith.mulf %38, %37 : vector<16x32xf32>
    %40 = arith.truncf %39 : vector<16x32xf32> to vector<16x32xbf16>
    %cst_26 = arith.constant dense<0.000000e+00> : vector<16x32xf32>
    %41 = tpu.matmul %1, %40, %cst_26 {dimension_numbers = #tpu.dot_dimension_numbers<[1], [0], [0], [1], [0, 0, 1, 1], [], []>} : vector<16x16xbf16>, vector<16x32xbf16>, vector<16x32xf32> -> vector<16x32xf32>
    %42 = vector.broadcast %7 : vector<16x1xf32> to vector<16x32xf32>
    %43 = arith.mulf %42, %41 : vector<16x32xf32>
    %cst_27 = arith.constant 2.000000e-01 : f32
    %44 = vector.broadcast %cst_27 : f32 to vector<16x32xf32>
    %45 = arith.mulf %44, %43 : vector<16x32xf32>
    %cst_28 = arith.constant 8.000000e-01 : f32
    %46 = vector.broadcast %cst_28 : f32 to vector<16x32xf32>
    %47 = arith.mulf %46, %34 : vector<16x32xf32>
    %48 = arith.addf %45, %47 : vector<16x32xf32>
    %49 = arith.addf %48, %29 : vector<16x32xf32>
    %cst_29 = arith.constant 0.000000e+00 : f32
    %50 = vector.broadcast %cst_29 : f32 to vector<16x32xf32>
    %51 = arith.maximumf %49, %50 : vector<16x32xf32>
    %c2 = arith.constant 2 : index
    %c0_30 = arith.constant 0 : index
    %c0_31 = arith.constant 0 : index
    %52 = vector.load %arg3[%c2, %c0_30, %c0_31] : memref<4x32x32xf32, #tpu.memory_space<vmem>>, vector<1x32x32xf32>
    %53 = vector.shape_cast %52 : vector<1x32x32xf32> to vector<32x32xf32>
    %cst_32 = arith.constant dense<0.000000e+00> : vector<16x32xf32>
    %54 = tpu.matmul %51, %53, %cst_32 {dimension_numbers = #tpu.dot_dimension_numbers<[1], [0], [0], [1], [0, 0, 1, 1], [], []>} : vector<16x32xf32>, vector<32x32xf32>, vector<16x32xf32> -> vector<16x32xf32>
    %c2_33 = arith.constant 2 : index
    %c0_34 = arith.constant 0 : index
    %c0_35 = arith.constant 0 : index
    %55 = vector.load %arg4[%c2_33, %c0_34, %c0_35] : memref<4x32x32xf32, #tpu.memory_space<vmem>>, vector<1x32x32xf32>
    %56 = vector.shape_cast %55 : vector<1x32x32xf32> to vector<32x32xf32>
    %cst_36 = arith.constant dense<0.000000e+00> : vector<16x32xf32>
    %57 = tpu.matmul %49, %56, %cst_36 {dimension_numbers = #tpu.dot_dimension_numbers<[1], [0], [0], [1], [0, 0, 1, 1], [], []>} : vector<16x32xf32>, vector<32x32xf32>, vector<16x32xf32> -> vector<16x32xf32>
    %58 = vector.broadcast %7 : vector<16x1xf32> to vector<16x32xf32>
    %59 = arith.mulf %58, %57 : vector<16x32xf32>
    %60 = arith.truncf %59 : vector<16x32xf32> to vector<16x32xbf16>
    %cst_37 = arith.constant dense<0.000000e+00> : vector<16x32xf32>
    %61 = tpu.matmul %1, %60, %cst_37 {dimension_numbers = #tpu.dot_dimension_numbers<[1], [0], [0], [1], [0, 0, 1, 1], [], []>} : vector<16x16xbf16>, vector<16x32xbf16>, vector<16x32xf32> -> vector<16x32xf32>
    %62 = vector.broadcast %7 : vector<16x1xf32> to vector<16x32xf32>
    %63 = arith.mulf %62, %61 : vector<16x32xf32>
    %cst_38 = arith.constant 2.000000e-01 : f32
    %64 = vector.broadcast %cst_38 : f32 to vector<16x32xf32>
    %65 = arith.mulf %64, %63 : vector<16x32xf32>
    %cst_39 = arith.constant 8.000000e-01 : f32
    %66 = vector.broadcast %cst_39 : f32 to vector<16x32xf32>
    %67 = arith.mulf %66, %54 : vector<16x32xf32>
    %68 = arith.addf %65, %67 : vector<16x32xf32>
    %69 = arith.addf %68, %49 : vector<16x32xf32>
    %cst_40 = arith.constant 0.000000e+00 : f32
    %70 = vector.broadcast %cst_40 : f32 to vector<16x32xf32>
    %71 = arith.maximumf %69, %70 : vector<16x32xf32>
    %c3 = arith.constant 3 : index
    %c0_41 = arith.constant 0 : index
    %c0_42 = arith.constant 0 : index
    %72 = vector.load %arg3[%c3, %c0_41, %c0_42] : memref<4x32x32xf32, #tpu.memory_space<vmem>>, vector<1x32x32xf32>
    %73 = vector.shape_cast %72 : vector<1x32x32xf32> to vector<32x32xf32>
    %cst_43 = arith.constant dense<0.000000e+00> : vector<16x32xf32>
    %74 = tpu.matmul %71, %73, %cst_43 {dimension_numbers = #tpu.dot_dimension_numbers<[1], [0], [0], [1], [0, 0, 1, 1], [], []>} : vector<16x32xf32>, vector<32x32xf32>, vector<16x32xf32> -> vector<16x32xf32>
    %c3_44 = arith.constant 3 : index
    %c0_45 = arith.constant 0 : index
    %c0_46 = arith.constant 0 : index
    %75 = vector.load %arg4[%c3_44, %c0_45, %c0_46] : memref<4x32x32xf32, #tpu.memory_space<vmem>>, vector<1x32x32xf32>
    %76 = vector.shape_cast %75 : vector<1x32x32xf32> to vector<32x32xf32>
    %cst_47 = arith.constant dense<0.000000e+00> : vector<16x32xf32>
    %77 = tpu.matmul %69, %76, %cst_47 {dimension_numbers = #tpu.dot_dimension_numbers<[1], [0], [0], [1], [0, 0, 1, 1], [], []>} : vector<16x32xf32>, vector<32x32xf32>, vector<16x32xf32> -> vector<16x32xf32>
    %78 = vector.broadcast %7 : vector<16x1xf32> to vector<16x32xf32>
    %79 = arith.mulf %78, %77 : vector<16x32xf32>
    %80 = arith.truncf %79 : vector<16x32xf32> to vector<16x32xbf16>
    %cst_48 = arith.constant dense<0.000000e+00> : vector<16x32xf32>
    %81 = tpu.matmul %1, %80, %cst_48 {dimension_numbers = #tpu.dot_dimension_numbers<[1], [0], [0], [1], [0, 0, 1, 1], [], []>} : vector<16x16xbf16>, vector<16x32xbf16>, vector<16x32xf32> -> vector<16x32xf32>
    %82 = vector.broadcast %7 : vector<16x1xf32> to vector<16x32xf32>
    %83 = arith.mulf %82, %81 : vector<16x32xf32>
    %cst_49 = arith.constant 2.000000e-01 : f32
    %84 = vector.broadcast %cst_49 : f32 to vector<16x32xf32>
    %85 = arith.mulf %84, %83 : vector<16x32xf32>
    %cst_50 = arith.constant 8.000000e-01 : f32
    %86 = vector.broadcast %cst_50 : f32 to vector<16x32xf32>
    %87 = arith.mulf %86, %74 : vector<16x32xf32>
    %88 = arith.addf %85, %87 : vector<16x32xf32>
    %89 = arith.addf %88, %69 : vector<16x32xf32>
    %c0_51 = arith.constant 0 : index
    %c0_52 = arith.constant 0 : index
    %c0_53 = arith.constant 0 : index
    %90 = vector.load %arg7[%c0_51, %c0_52, %c0_53] : memref<1x16x32xf32, #tpu.memory_space<vmem>>, vector<1x16x32xf32>
    %91 = vector.shape_cast %90 : vector<1x16x32xf32> to vector<16x32xf32>
    %92 = vector.shape_cast %89 : vector<16x32xf32> to vector<1x16x32xf32>
    tpu.vector_store %arg7[%c0_51, %c0_52, %c0_53], %92 {strides = array<i32>} : memref<1x16x32xf32, #tpu.memory_space<vmem>>, vector<1x16x32xf32>,
    %c0_54 = arith.constant 0 : index
    %c0_55 = arith.constant 0 : index
    %93 = vector.load %arg5[%c0_54, %c0_55] : memref<32x6xf32, #tpu.memory_space<vmem>>, vector<32x6xf32>
    %cst_56 = arith.constant dense<0.000000e+00> : vector<16x6xf32>
    %94 = tpu.matmul %89, %93, %cst_56 {dimension_numbers = #tpu.dot_dimension_numbers<[1], [0], [0], [1], [0, 0, 1, 1], [], []>} : vector<16x32xf32>, vector<32x6xf32>, vector<16x6xf32> -> vector<16x6xf32>
    %c0_57 = arith.constant 0 : index
    %c0_58 = arith.constant 0 : index
    %95 = vector.load %arg6[%c0_57, %c0_58] : memref<32x6xf32, #tpu.memory_space<vmem>>, vector<32x6xf32>
    %cst_59 = arith.constant dense<0.000000e+00> : vector<16x6xf32>
    %96 = tpu.matmul %89, %95, %cst_59 {dimension_numbers = #tpu.dot_dimension_numbers<[1], [0], [0], [1], [0, 0, 1, 1], [], []>} : vector<16x32xf32>, vector<32x6xf32>, vector<16x6xf32> -> vector<16x6xf32>
    %97 = vector.broadcast %7 : vector<16x1xf32> to vector<16x6xf32>
    %98 = arith.mulf %97, %96 : vector<16x6xf32>
    %99 = arith.truncf %98 : vector<16x6xf32> to vector<16x6xbf16>
    %cst_60 = arith.constant dense<0.000000e+00> : vector<16x6xf32>
    %100 = tpu.matmul %1, %99, %cst_60 {dimension_numbers = #tpu.dot_dimension_numbers<[1], [0], [0], [1], [0, 0, 1, 1], [], []>} : vector<16x16xbf16>, vector<16x6xbf16>, vector<16x6xf32> -> vector<16x6xf32>
    %101 = vector.broadcast %7 : vector<16x1xf32> to vector<16x6xf32>
    %102 = arith.mulf %101, %100 : vector<16x6xf32>
    %cst_61 = arith.constant 8.000000e-01 : f32
    %103 = vector.broadcast %cst_61 : f32 to vector<16x6xf32>
    %104 = arith.mulf %103, %94 : vector<16x6xf32>
    %cst_62 = arith.constant 2.000000e-01 : f32
    %105 = vector.broadcast %cst_62 : f32 to vector<16x6xf32>
    %106 = arith.mulf %105, %102 : vector<16x6xf32>
    %107 = arith.addf %104, %106 : vector<16x6xf32>
    %c0_63 = arith.constant 0 : index
    %c0_64 = arith.constant 0 : index
    %c0_65 = arith.constant 0 : index
    %108 = vector.load %arg8[%c0_63, %c0_64, %c0_65] : memref<1x16x6xf32, #tpu.memory_space<vmem>>, vector<1x16x6xf32>
    %109 = vector.shape_cast %108 : vector<1x16x6xf32> to vector<16x6xf32>
    %110 = vector.shape_cast %107 : vector<16x6xf32> to vector<1x16x6xf32>
    tpu.vector_store %arg8[%c0_63, %c0_64, %c0_65], %110 {strides = array<i32>} : memref<1x16x6xf32, #tpu.memory_space<vmem>>, vector<1x16x6xf32>,
    return
  }
  func.func @transform_0(%arg0: i32) -> (i32, i32, i32) {
    %c0_i32 = arith.constant 0 : i32
    %c0_i32_0 = arith.constant 0 : i32
    %c0_i32_1 = arith.constant 0 : i32
    return %arg0, %c0_i32, %c0_i32_0 : i32, i32, i32
  }
  func.func @transform_1(%arg0: i32) -> (i32, i32, i32) {
    %c0_i32 = arith.constant 0 : i32
    %c0_i32_0 = arith.constant 0 : i32
    %c0_i32_1 = arith.constant 0 : i32
    return %arg0, %c0_i32, %c0_i32_0 : i32, i32, i32
  }
  func.func @transform_2(%arg0: i32) -> (i32, i32, i32) {
    %c0_i32 = arith.constant 0 : i32
    %c0_i32_0 = arith.constant 0 : i32
    %c0_i32_1 = arith.constant 0 : i32
    %c0_i32_2 = arith.constant 0 : i32
    return %c0_i32, %c0_i32_0, %c0_i32_1 : i32, i32, i32
  }
  func.func @transform_3(%arg0: i32) -> (i32, i32, i32) {
    %c0_i32 = arith.constant 0 : i32
    %c0_i32_0 = arith.constant 0 : i32
    %c0_i32_1 = arith.constant 0 : i32
    %c0_i32_2 = arith.constant 0 : i32
    return %c0_i32, %c0_i32_0, %c0_i32_1 : i32, i32, i32
  }
  func.func @transform_4(%arg0: i32) -> (i32, i32) {
    %c0_i32 = arith.constant 0 : i32
    %c0_i32_0 = arith.constant 0 : i32
    %c0_i32_1 = arith.constant 0 : i32
    return %c0_i32, %c0_i32_0 : i32, i32
  }
  func.func @transform_5(%arg0: i32) -> (i32, i32) {
    %c0_i32 = arith.constant 0 : i32
    %c0_i32_0 = arith.constant 0 : i32
    %c0_i32_1 = arith.constant 0 : i32
    return %c0_i32, %c0_i32_0 : i32, i32
  }
  func.func @transform_6(%arg0: i32) -> (i32, i32, i32) {
    %c0_i32 = arith.constant 0 : i32
    %c0_i32_0 = arith.constant 0 : i32
    %c0_i32_1 = arith.constant 0 : i32
    return %arg0, %c0_i32, %c0_i32_0 : i32, i32, i32
  }
  func.func @transform_7(%arg0: i32) -> (i32, i32, i32) {
    %c0_i32 = arith.constant 0 : i32
    %c0_i32_0 = arith.constant 0 : i32
    %c0_i32_1 = arith.constant 0 : i32
    return %arg0, %c0_i32, %c0_i32_0 : i32, i32, i32
  }
}

module attributes {stable_mosaic.version = 11 : i64} {
  func.func @_neg_dist_kernel(%arg0: i32, %arg1: memref<1x32x3xf32, #tpu.memory_space<vmem>>, %arg2: memref<1x16x3xf32, #tpu.memory_space<vmem>>, %arg3: memref<1x1x16xf32, #tpu.memory_space<vmem>>, %arg4: memref<1x32x16xf32, #tpu.memory_space<vmem>>) attributes {dimension_semantics = [#tpu.dimension_semantics<parallel>], iteration_bounds = array<i64: 2>, scalar_prefetch = 0 : i64, scratch_operands = 0 : i64, tpu.core_type = #tpu.core_type<tc>, window_params = [{transform_indices = @transform_0, window_bounds = array<i64: 1, 32, 3>}, {transform_indices = @transform_1, window_bounds = array<i64: 1, 16, 3>}, {transform_indices = @transform_2, window_bounds = array<i64: 1, 1, 16>}, {transform_indices = @transform_3, window_bounds = array<i64: 1, 32, 16>}]} {
    %c0 = arith.constant 0 : index
    %c0_0 = arith.constant 0 : index
    %c0_1 = arith.constant 0 : index
    %0 = vector.load %arg1[%c0, %c0_0, %c0_1] : memref<1x32x3xf32, #tpu.memory_space<vmem>>, vector<1x32x3xf32>
    %1 = vector.shape_cast %0 : vector<1x32x3xf32> to vector<32x3xf32>
    %c0_2 = arith.constant 0 : index
    %c0_3 = arith.constant 0 : index
    %c0_4 = arith.constant 0 : index
    %2 = vector.load %arg2[%c0_2, %c0_3, %c0_4] : memref<1x16x3xf32, #tpu.memory_space<vmem>>, vector<1x16x3xf32>
    %3 = vector.shape_cast %2 : vector<1x16x3xf32> to vector<16x3xf32>
    %c0_5 = arith.constant 0 : index
    %c0_6 = arith.constant 0 : index
    %c0_7 = arith.constant 0 : index
    %4 = vector.load %arg3[%c0_5, %c0_6, %c0_7] : memref<1x1x16xf32, #tpu.memory_space<vmem>>, vector<1x1x16xf32>
    %5 = vector.shape_cast %4 : vector<1x1x16xf32> to vector<1x16xf32>
    %cst = arith.constant dense<0.000000e+00> : vector<32x16xf32>
    %6 = tpu.matmul %1, %3, %cst {dimension_numbers = #tpu.dot_dimension_numbers<[1], [1], [0], [0], [0, 0, 1, 0], [], []>} : vector<32x3xf32>, vector<16x3xf32>, vector<32x16xf32> -> vector<32x16xf32>
    %cst_8 = arith.constant 2.000000e+00 : f32
    %7 = vector.broadcast %cst_8 : f32 to vector<32x16xf32>
    %8 = arith.mulf %7, %6 : vector<32x16xf32>
    %9 = vector.broadcast %5 : vector<1x16xf32> to vector<32x16xf32>
    %10 = arith.subf %8, %9 : vector<32x16xf32>
    %c0_9 = arith.constant 0 : index
    %c0_10 = arith.constant 0 : index
    %c0_11 = arith.constant 0 : index
    %11 = vector.load %arg4[%c0_9, %c0_10, %c0_11] : memref<1x32x16xf32, #tpu.memory_space<vmem>>, vector<1x32x16xf32>
    %12 = vector.shape_cast %11 : vector<1x32x16xf32> to vector<32x16xf32>
    %13 = vector.shape_cast %10 : vector<32x16xf32> to vector<1x32x16xf32>
    tpu.vector_store %arg4[%c0_9, %c0_10, %c0_11], %13 {strides = array<i32>} : memref<1x32x16xf32, #tpu.memory_space<vmem>>, vector<1x32x16xf32>,
    return
  }
  func.func @transform_0(%arg0: i32) -> (i32, i32, i32) {
    %c0_i32 = arith.constant 0 : i32
    %c0_i32_0 = arith.constant 0 : i32
    %c0_i32_1 = arith.constant 0 : i32
    return %arg0, %c0_i32, %c0_i32_0 : i32, i32, i32
  }
  func.func @transform_1(%arg0: i32) -> (i32, i32, i32) {
    %c0_i32 = arith.constant 0 : i32
    %c0_i32_0 = arith.constant 0 : i32
    %c0_i32_1 = arith.constant 0 : i32
    return %arg0, %c0_i32, %c0_i32_0 : i32, i32, i32
  }
  func.func @transform_2(%arg0: i32) -> (i32, i32, i32) {
    %c0_i32 = arith.constant 0 : i32
    %c0_i32_0 = arith.constant 0 : i32
    %c0_i32_1 = arith.constant 0 : i32
    return %arg0, %c0_i32, %c0_i32_0 : i32, i32, i32
  }
  func.func @transform_3(%arg0: i32) -> (i32, i32, i32) {
    %c0_i32 = arith.constant 0 : i32
    %c0_i32_0 = arith.constant 0 : i32
    %c0_i32_1 = arith.constant 0 : i32
    return %arg0, %c0_i32, %c0_i32_0 : i32, i32, i32
  }
}

module attributes {stable_mosaic.version = 11 : i64} {
  func.func @_neg_dist_kernel(%arg0: i32, %arg1: memref<1x32x3xf32, #tpu.memory_space<vmem>>, %arg2: memref<1x32x3xf32, #tpu.memory_space<vmem>>, %arg3: memref<1x1x32xf32, #tpu.memory_space<vmem>>, %arg4: memref<1x32x32xf32, #tpu.memory_space<vmem>>) attributes {dimension_semantics = [#tpu.dimension_semantics<parallel>], iteration_bounds = array<i64: 2>, scalar_prefetch = 0 : i64, scratch_operands = 0 : i64, tpu.core_type = #tpu.core_type<tc>, window_params = [{transform_indices = @transform_0, window_bounds = array<i64: 1, 32, 3>}, {transform_indices = @transform_1, window_bounds = array<i64: 1, 32, 3>}, {transform_indices = @transform_2, window_bounds = array<i64: 1, 1, 32>}, {transform_indices = @transform_3, window_bounds = array<i64: 1, 32, 32>}]} {
    %c0 = arith.constant 0 : index
    %c0_0 = arith.constant 0 : index
    %c0_1 = arith.constant 0 : index
    %0 = vector.load %arg1[%c0, %c0_0, %c0_1] : memref<1x32x3xf32, #tpu.memory_space<vmem>>, vector<1x32x3xf32>
    %1 = vector.shape_cast %0 : vector<1x32x3xf32> to vector<32x3xf32>
    %c0_2 = arith.constant 0 : index
    %c0_3 = arith.constant 0 : index
    %c0_4 = arith.constant 0 : index
    %2 = vector.load %arg2[%c0_2, %c0_3, %c0_4] : memref<1x32x3xf32, #tpu.memory_space<vmem>>, vector<1x32x3xf32>
    %3 = vector.shape_cast %2 : vector<1x32x3xf32> to vector<32x3xf32>
    %c0_5 = arith.constant 0 : index
    %c0_6 = arith.constant 0 : index
    %c0_7 = arith.constant 0 : index
    %4 = vector.load %arg3[%c0_5, %c0_6, %c0_7] : memref<1x1x32xf32, #tpu.memory_space<vmem>>, vector<1x1x32xf32>
    %5 = vector.shape_cast %4 : vector<1x1x32xf32> to vector<1x32xf32>
    %cst = arith.constant dense<0.000000e+00> : vector<32x32xf32>
    %6 = tpu.matmul %1, %3, %cst {dimension_numbers = #tpu.dot_dimension_numbers<[1], [1], [0], [0], [0, 0, 1, 0], [], []>} : vector<32x3xf32>, vector<32x3xf32>, vector<32x32xf32> -> vector<32x32xf32>
    %cst_8 = arith.constant 2.000000e+00 : f32
    %7 = vector.broadcast %cst_8 : f32 to vector<32x32xf32>
    %8 = arith.mulf %7, %6 : vector<32x32xf32>
    %9 = vector.broadcast %5 : vector<1x32xf32> to vector<32x32xf32>
    %10 = arith.subf %8, %9 : vector<32x32xf32>
    %c0_9 = arith.constant 0 : index
    %c0_10 = arith.constant 0 : index
    %c0_11 = arith.constant 0 : index
    %11 = vector.load %arg4[%c0_9, %c0_10, %c0_11] : memref<1x32x32xf32, #tpu.memory_space<vmem>>, vector<1x32x32xf32>
    %12 = vector.shape_cast %11 : vector<1x32x32xf32> to vector<32x32xf32>
    %13 = vector.shape_cast %10 : vector<32x32xf32> to vector<1x32x32xf32>
    tpu.vector_store %arg4[%c0_9, %c0_10, %c0_11], %13 {strides = array<i32>} : memref<1x32x32xf32, #tpu.memory_space<vmem>>, vector<1x32x32xf32>,
    return
  }
  func.func @transform_0(%arg0: i32) -> (i32, i32, i32) {
    %c0_i32 = arith.constant 0 : i32
    %c0_i32_0 = arith.constant 0 : i32
    %c0_i32_1 = arith.constant 0 : i32
    return %arg0, %c0_i32, %c0_i32_0 : i32, i32, i32
  }
  func.func @transform_1(%arg0: i32) -> (i32, i32, i32) {
    %c0_i32 = arith.constant 0 : i32
    %c0_i32_0 = arith.constant 0 : i32
    %c0_i32_1 = arith.constant 0 : i32
    return %arg0, %c0_i32, %c0_i32_0 : i32, i32, i32
  }
  func.func @transform_2(%arg0: i32) -> (i32, i32, i32) {
    %c0_i32 = arith.constant 0 : i32
    %c0_i32_0 = arith.constant 0 : i32
    %c0_i32_1 = arith.constant 0 : i32
    return %arg0, %c0_i32, %c0_i32_0 : i32, i32, i32
  }
  func.func @transform_3(%arg0: i32) -> (i32, i32, i32) {
    %c0_i32 = arith.constant 0 : i32
    %c0_i32_0 = arith.constant 0 : i32
    %c0_i32_1 = arith.constant 0 : i32
    return %arg0, %c0_i32, %c0_i32_0 : i32, i32, i32
  }
}

module attributes {stable_mosaic.version = 11 : i64} {
  func.func @_res_stage_kernel(%arg0: i32, %arg1: memref<1x32x32xf32, #tpu.memory_space<vmem>>, %arg2: memref<1x32x32xbf16, #tpu.memory_space<vmem>>, %arg3: memref<4x32x32xf32, #tpu.memory_space<vmem>>, %arg4: memref<4x32x32xf32, #tpu.memory_space<vmem>>, %arg5: memref<32x6xf32, #tpu.memory_space<vmem>>, %arg6: memref<32x6xf32, #tpu.memory_space<vmem>>, %arg7: memref<1x32x32xf32, #tpu.memory_space<vmem>>, %arg8: memref<1x32x6xf32, #tpu.memory_space<vmem>>) attributes {dimension_semantics = [#tpu.dimension_semantics<parallel>], iteration_bounds = array<i64: 2>, scalar_prefetch = 0 : i64, scratch_operands = 0 : i64, tpu.core_type = #tpu.core_type<tc>, window_params = [{transform_indices = @transform_0, window_bounds = array<i64: 1, 32, 32>}, {transform_indices = @transform_1, window_bounds = array<i64: 1, 32, 32>}, {pipeline_mode = #tpu.pipeline_mode<synchronous>, transform_indices = @transform_2, window_bounds = array<i64: 4, 32, 32>}, {pipeline_mode = #tpu.pipeline_mode<synchronous>, transform_indices = @transform_3, window_bounds = array<i64: 4, 32, 32>}, {pipeline_mode = #tpu.pipeline_mode<synchronous>, transform_indices = @transform_4, window_bounds = array<i64: 32, 6>}, {pipeline_mode = #tpu.pipeline_mode<synchronous>, transform_indices = @transform_5, window_bounds = array<i64: 32, 6>}, {transform_indices = @transform_6, window_bounds = array<i64: 1, 32, 32>}, {transform_indices = @transform_7, window_bounds = array<i64: 1, 32, 6>}]} {
    %c0 = arith.constant 0 : index
    %c0_0 = arith.constant 0 : index
    %c0_1 = arith.constant 0 : index
    %0 = vector.load %arg2[%c0, %c0_0, %c0_1] : memref<1x32x32xbf16, #tpu.memory_space<vmem>>, vector<1x32x32xbf16>
    %1 = vector.shape_cast %0 : vector<1x32x32xbf16> to vector<32x32xbf16>
    %2 = arith.extf %1 : vector<32x32xbf16> to vector<32x32xf32>
    %cst = arith.constant dense<0.000000e+00> : vector<32xf32>
    %3 = vector.multi_reduction <add>, %2, %cst [1] : vector<32x32xf32> to vector<32xf32>
    %4 = vector.shape_cast %3 : vector<32xf32> to vector<32x1xf32>
    %cst_2 = arith.constant 1.000000e+00 : f32
    %5 = vector.broadcast %cst_2 : f32 to vector<32x1xf32>
    %6 = arith.maximumf %4, %5 : vector<32x1xf32>
    %7 = math.rsqrt %6 : vector<32x1xf32>
    %c0_3 = arith.constant 0 : index
    %c0_4 = arith.constant 0 : index
    %c0_5 = arith.constant 0 : index
    %8 = vector.load %arg1[%c0_3, %c0_4, %c0_5] : memref<1x32x32xf32, #tpu.memory_space<vmem>>, vector<1x32x32xf32>
    %9 = vector.shape_cast %8 : vector<1x32x32xf32> to vector<32x32xf32>
    %cst_6 = arith.constant 0.000000e+00 : f32
    %10 = vector.broadcast %cst_6 : f32 to vector<32x32xf32>
    %11 = arith.maximumf %9, %10 : vector<32x32xf32>
    %c0_7 = arith.constant 0 : index
    %c0_8 = arith.constant 0 : index
    %c0_9 = arith.constant 0 : index
    %12 = vector.load %arg3[%c0_7, %c0_8, %c0_9] : memref<4x32x32xf32, #tpu.memory_space<vmem>>, vector<1x32x32xf32>
    %13 = vector.shape_cast %12 : vector<1x32x32xf32> to vector<32x32xf32>
    %cst_10 = arith.constant dense<0.000000e+00> : vector<32x32xf32>
    %14 = tpu.matmul %11, %13, %cst_10 {dimension_numbers = #tpu.dot_dimension_numbers<[1], [0], [0], [1], [0, 0, 1, 1], [], []>} : vector<32x32xf32>, vector<32x32xf32>, vector<32x32xf32> -> vector<32x32xf32>
    %c0_11 = arith.constant 0 : index
    %c0_12 = arith.constant 0 : index
    %c0_13 = arith.constant 0 : index
    %15 = vector.load %arg4[%c0_11, %c0_12, %c0_13] : memref<4x32x32xf32, #tpu.memory_space<vmem>>, vector<1x32x32xf32>
    %16 = vector.shape_cast %15 : vector<1x32x32xf32> to vector<32x32xf32>
    %cst_14 = arith.constant dense<0.000000e+00> : vector<32x32xf32>
    %17 = tpu.matmul %9, %16, %cst_14 {dimension_numbers = #tpu.dot_dimension_numbers<[1], [0], [0], [1], [0, 0, 1, 1], [], []>} : vector<32x32xf32>, vector<32x32xf32>, vector<32x32xf32> -> vector<32x32xf32>
    %18 = vector.broadcast %7 : vector<32x1xf32> to vector<32x32xf32>
    %19 = arith.mulf %18, %17 : vector<32x32xf32>
    %20 = arith.truncf %19 : vector<32x32xf32> to vector<32x32xbf16>
    %cst_15 = arith.constant dense<0.000000e+00> : vector<32x32xf32>
    %21 = tpu.matmul %1, %20, %cst_15 {dimension_numbers = #tpu.dot_dimension_numbers<[1], [0], [0], [1], [0, 0, 1, 1], [], []>} : vector<32x32xbf16>, vector<32x32xbf16>, vector<32x32xf32> -> vector<32x32xf32>
    %22 = vector.broadcast %7 : vector<32x1xf32> to vector<32x32xf32>
    %23 = arith.mulf %22, %21 : vector<32x32xf32>
    %cst_16 = arith.constant 2.000000e-01 : f32
    %24 = vector.broadcast %cst_16 : f32 to vector<32x32xf32>
    %25 = arith.mulf %24, %23 : vector<32x32xf32>
    %cst_17 = arith.constant 8.000000e-01 : f32
    %26 = vector.broadcast %cst_17 : f32 to vector<32x32xf32>
    %27 = arith.mulf %26, %14 : vector<32x32xf32>
    %28 = arith.addf %25, %27 : vector<32x32xf32>
    %29 = arith.addf %28, %9 : vector<32x32xf32>
    %cst_18 = arith.constant 0.000000e+00 : f32
    %30 = vector.broadcast %cst_18 : f32 to vector<32x32xf32>
    %31 = arith.maximumf %29, %30 : vector<32x32xf32>
    %c1 = arith.constant 1 : index
    %c0_19 = arith.constant 0 : index
    %c0_20 = arith.constant 0 : index
    %32 = vector.load %arg3[%c1, %c0_19, %c0_20] : memref<4x32x32xf32, #tpu.memory_space<vmem>>, vector<1x32x32xf32>
    %33 = vector.shape_cast %32 : vector<1x32x32xf32> to vector<32x32xf32>
    %cst_21 = arith.constant dense<0.000000e+00> : vector<32x32xf32>
    %34 = tpu.matmul %31, %33, %cst_21 {dimension_numbers = #tpu.dot_dimension_numbers<[1], [0], [0], [1], [0, 0, 1, 1], [], []>} : vector<32x32xf32>, vector<32x32xf32>, vector<32x32xf32> -> vector<32x32xf32>
    %c1_22 = arith.constant 1 : index
    %c0_23 = arith.constant 0 : index
    %c0_24 = arith.constant 0 : index
    %35 = vector.load %arg4[%c1_22, %c0_23, %c0_24] : memref<4x32x32xf32, #tpu.memory_space<vmem>>, vector<1x32x32xf32>
    %36 = vector.shape_cast %35 : vector<1x32x32xf32> to vector<32x32xf32>
    %cst_25 = arith.constant dense<0.000000e+00> : vector<32x32xf32>
    %37 = tpu.matmul %29, %36, %cst_25 {dimension_numbers = #tpu.dot_dimension_numbers<[1], [0], [0], [1], [0, 0, 1, 1], [], []>} : vector<32x32xf32>, vector<32x32xf32>, vector<32x32xf32> -> vector<32x32xf32>
    %38 = vector.broadcast %7 : vector<32x1xf32> to vector<32x32xf32>
    %39 = arith.mulf %38, %37 : vector<32x32xf32>
    %40 = arith.truncf %39 : vector<32x32xf32> to vector<32x32xbf16>
    %cst_26 = arith.constant dense<0.000000e+00> : vector<32x32xf32>
    %41 = tpu.matmul %1, %40, %cst_26 {dimension_numbers = #tpu.dot_dimension_numbers<[1], [0], [0], [1], [0, 0, 1, 1], [], []>} : vector<32x32xbf16>, vector<32x32xbf16>, vector<32x32xf32> -> vector<32x32xf32>
    %42 = vector.broadcast %7 : vector<32x1xf32> to vector<32x32xf32>
    %43 = arith.mulf %42, %41 : vector<32x32xf32>
    %cst_27 = arith.constant 2.000000e-01 : f32
    %44 = vector.broadcast %cst_27 : f32 to vector<32x32xf32>
    %45 = arith.mulf %44, %43 : vector<32x32xf32>
    %cst_28 = arith.constant 8.000000e-01 : f32
    %46 = vector.broadcast %cst_28 : f32 to vector<32x32xf32>
    %47 = arith.mulf %46, %34 : vector<32x32xf32>
    %48 = arith.addf %45, %47 : vector<32x32xf32>
    %49 = arith.addf %48, %29 : vector<32x32xf32>
    %cst_29 = arith.constant 0.000000e+00 : f32
    %50 = vector.broadcast %cst_29 : f32 to vector<32x32xf32>
    %51 = arith.maximumf %49, %50 : vector<32x32xf32>
    %c2 = arith.constant 2 : index
    %c0_30 = arith.constant 0 : index
    %c0_31 = arith.constant 0 : index
    %52 = vector.load %arg3[%c2, %c0_30, %c0_31] : memref<4x32x32xf32, #tpu.memory_space<vmem>>, vector<1x32x32xf32>
    %53 = vector.shape_cast %52 : vector<1x32x32xf32> to vector<32x32xf32>
    %cst_32 = arith.constant dense<0.000000e+00> : vector<32x32xf32>
    %54 = tpu.matmul %51, %53, %cst_32 {dimension_numbers = #tpu.dot_dimension_numbers<[1], [0], [0], [1], [0, 0, 1, 1], [], []>} : vector<32x32xf32>, vector<32x32xf32>, vector<32x32xf32> -> vector<32x32xf32>
    %c2_33 = arith.constant 2 : index
    %c0_34 = arith.constant 0 : index
    %c0_35 = arith.constant 0 : index
    %55 = vector.load %arg4[%c2_33, %c0_34, %c0_35] : memref<4x32x32xf32, #tpu.memory_space<vmem>>, vector<1x32x32xf32>
    %56 = vector.shape_cast %55 : vector<1x32x32xf32> to vector<32x32xf32>
    %cst_36 = arith.constant dense<0.000000e+00> : vector<32x32xf32>
    %57 = tpu.matmul %49, %56, %cst_36 {dimension_numbers = #tpu.dot_dimension_numbers<[1], [0], [0], [1], [0, 0, 1, 1], [], []>} : vector<32x32xf32>, vector<32x32xf32>, vector<32x32xf32> -> vector<32x32xf32>
    %58 = vector.broadcast %7 : vector<32x1xf32> to vector<32x32xf32>
    %59 = arith.mulf %58, %57 : vector<32x32xf32>
    %60 = arith.truncf %59 : vector<32x32xf32> to vector<32x32xbf16>
    %cst_37 = arith.constant dense<0.000000e+00> : vector<32x32xf32>
    %61 = tpu.matmul %1, %60, %cst_37 {dimension_numbers = #tpu.dot_dimension_numbers<[1], [0], [0], [1], [0, 0, 1, 1], [], []>} : vector<32x32xbf16>, vector<32x32xbf16>, vector<32x32xf32> -> vector<32x32xf32>
    %62 = vector.broadcast %7 : vector<32x1xf32> to vector<32x32xf32>
    %63 = arith.mulf %62, %61 : vector<32x32xf32>
    %cst_38 = arith.constant 2.000000e-01 : f32
    %64 = vector.broadcast %cst_38 : f32 to vector<32x32xf32>
    %65 = arith.mulf %64, %63 : vector<32x32xf32>
    %cst_39 = arith.constant 8.000000e-01 : f32
    %66 = vector.broadcast %cst_39 : f32 to vector<32x32xf32>
    %67 = arith.mulf %66, %54 : vector<32x32xf32>
    %68 = arith.addf %65, %67 : vector<32x32xf32>
    %69 = arith.addf %68, %49 : vector<32x32xf32>
    %cst_40 = arith.constant 0.000000e+00 : f32
    %70 = vector.broadcast %cst_40 : f32 to vector<32x32xf32>
    %71 = arith.maximumf %69, %70 : vector<32x32xf32>
    %c3 = arith.constant 3 : index
    %c0_41 = arith.constant 0 : index
    %c0_42 = arith.constant 0 : index
    %72 = vector.load %arg3[%c3, %c0_41, %c0_42] : memref<4x32x32xf32, #tpu.memory_space<vmem>>, vector<1x32x32xf32>
    %73 = vector.shape_cast %72 : vector<1x32x32xf32> to vector<32x32xf32>
    %cst_43 = arith.constant dense<0.000000e+00> : vector<32x32xf32>
    %74 = tpu.matmul %71, %73, %cst_43 {dimension_numbers = #tpu.dot_dimension_numbers<[1], [0], [0], [1], [0, 0, 1, 1], [], []>} : vector<32x32xf32>, vector<32x32xf32>, vector<32x32xf32> -> vector<32x32xf32>
    %c3_44 = arith.constant 3 : index
    %c0_45 = arith.constant 0 : index
    %c0_46 = arith.constant 0 : index
    %75 = vector.load %arg4[%c3_44, %c0_45, %c0_46] : memref<4x32x32xf32, #tpu.memory_space<vmem>>, vector<1x32x32xf32>
    %76 = vector.shape_cast %75 : vector<1x32x32xf32> to vector<32x32xf32>
    %cst_47 = arith.constant dense<0.000000e+00> : vector<32x32xf32>
    %77 = tpu.matmul %69, %76, %cst_47 {dimension_numbers = #tpu.dot_dimension_numbers<[1], [0], [0], [1], [0, 0, 1, 1], [], []>} : vector<32x32xf32>, vector<32x32xf32>, vector<32x32xf32> -> vector<32x32xf32>
    %78 = vector.broadcast %7 : vector<32x1xf32> to vector<32x32xf32>
    %79 = arith.mulf %78, %77 : vector<32x32xf32>
    %80 = arith.truncf %79 : vector<32x32xf32> to vector<32x32xbf16>
    %cst_48 = arith.constant dense<0.000000e+00> : vector<32x32xf32>
    %81 = tpu.matmul %1, %80, %cst_48 {dimension_numbers = #tpu.dot_dimension_numbers<[1], [0], [0], [1], [0, 0, 1, 1], [], []>} : vector<32x32xbf16>, vector<32x32xbf16>, vector<32x32xf32> -> vector<32x32xf32>
    %82 = vector.broadcast %7 : vector<32x1xf32> to vector<32x32xf32>
    %83 = arith.mulf %82, %81 : vector<32x32xf32>
    %cst_49 = arith.constant 2.000000e-01 : f32
    %84 = vector.broadcast %cst_49 : f32 to vector<32x32xf32>
    %85 = arith.mulf %84, %83 : vector<32x32xf32>
    %cst_50 = arith.constant 8.000000e-01 : f32
    %86 = vector.broadcast %cst_50 : f32 to vector<32x32xf32>
    %87 = arith.mulf %86, %74 : vector<32x32xf32>
    %88 = arith.addf %85, %87 : vector<32x32xf32>
    %89 = arith.addf %88, %69 : vector<32x32xf32>
    %c0_51 = arith.constant 0 : index
    %c0_52 = arith.constant 0 : index
    %c0_53 = arith.constant 0 : index
    %90 = vector.load %arg7[%c0_51, %c0_52, %c0_53] : memref<1x32x32xf32, #tpu.memory_space<vmem>>, vector<1x32x32xf32>
    %91 = vector.shape_cast %90 : vector<1x32x32xf32> to vector<32x32xf32>
    %92 = vector.shape_cast %89 : vector<32x32xf32> to vector<1x32x32xf32>
    tpu.vector_store %arg7[%c0_51, %c0_52, %c0_53], %92 {strides = array<i32>} : memref<1x32x32xf32, #tpu.memory_space<vmem>>, vector<1x32x32xf32>,
    %c0_54 = arith.constant 0 : index
    %c0_55 = arith.constant 0 : index
    %93 = vector.load %arg5[%c0_54, %c0_55] : memref<32x6xf32, #tpu.memory_space<vmem>>, vector<32x6xf32>
    %cst_56 = arith.constant dense<0.000000e+00> : vector<32x6xf32>
    %94 = tpu.matmul %89, %93, %cst_56 {dimension_numbers = #tpu.dot_dimension_numbers<[1], [0], [0], [1], [0, 0, 1, 1], [], []>} : vector<32x32xf32>, vector<32x6xf32>, vector<32x6xf32> -> vector<32x6xf32>
    %c0_57 = arith.constant 0 : index
    %c0_58 = arith.constant 0 : index
    %95 = vector.load %arg6[%c0_57, %c0_58] : memref<32x6xf32, #tpu.memory_space<vmem>>, vector<32x6xf32>
    %cst_59 = arith.constant dense<0.000000e+00> : vector<32x6xf32>
    %96 = tpu.matmul %89, %95, %cst_59 {dimension_numbers = #tpu.dot_dimension_numbers<[1], [0], [0], [1], [0, 0, 1, 1], [], []>} : vector<32x32xf32>, vector<32x6xf32>, vector<32x6xf32> -> vector<32x6xf32>
    %97 = vector.broadcast %7 : vector<32x1xf32> to vector<32x6xf32>
    %98 = arith.mulf %97, %96 : vector<32x6xf32>
    %99 = arith.truncf %98 : vector<32x6xf32> to vector<32x6xbf16>
    %cst_60 = arith.constant dense<0.000000e+00> : vector<32x6xf32>
    %100 = tpu.matmul %1, %99, %cst_60 {dimension_numbers = #tpu.dot_dimension_numbers<[1], [0], [0], [1], [0, 0, 1, 1], [], []>} : vector<32x32xbf16>, vector<32x6xbf16>, vector<32x6xf32> -> vector<32x6xf32>
    %101 = vector.broadcast %7 : vector<32x1xf32> to vector<32x6xf32>
    %102 = arith.mulf %101, %100 : vector<32x6xf32>
    %cst_61 = arith.constant 8.000000e-01 : f32
    %103 = vector.broadcast %cst_61 : f32 to vector<32x6xf32>
    %104 = arith.mulf %103, %94 : vector<32x6xf32>
    %cst_62 = arith.constant 2.000000e-01 : f32
    %105 = vector.broadcast %cst_62 : f32 to vector<32x6xf32>
    %106 = arith.mulf %105, %102 : vector<32x6xf32>
    %107 = arith.addf %104, %106 : vector<32x6xf32>
    %c0_63 = arith.constant 0 : index
    %c0_64 = arith.constant 0 : index
    %c0_65 = arith.constant 0 : index
    %108 = vector.load %arg8[%c0_63, %c0_64, %c0_65] : memref<1x32x6xf32, #tpu.memory_space<vmem>>, vector<1x32x6xf32>
    %109 = vector.shape_cast %108 : vector<1x32x6xf32> to vector<32x6xf32>
    %110 = vector.shape_cast %107 : vector<32x6xf32> to vector<1x32x6xf32>
    tpu.vector_store %arg8[%c0_63, %c0_64, %c0_65], %110 {strides = array<i32>} : memref<1x32x6xf32, #tpu.memory_space<vmem>>, vector<1x32x6xf32>,
    return
  }
  func.func @transform_0(%arg0: i32) -> (i32, i32, i32) {
    %c0_i32 = arith.constant 0 : i32
    %c0_i32_0 = arith.constant 0 : i32
    %c0_i32_1 = arith.constant 0 : i32
    return %arg0, %c0_i32, %c0_i32_0 : i32, i32, i32
  }
  func.func @transform_1(%arg0: i32) -> (i32, i32, i32) {
    %c0_i32 = arith.constant 0 : i32
    %c0_i32_0 = arith.constant 0 : i32
    %c0_i32_1 = arith.constant 0 : i32
    return %arg0, %c0_i32, %c0_i32_0 : i32, i32, i32
  }
  func.func @transform_2(%arg0: i32) -> (i32, i32, i32) {
    %c0_i32 = arith.constant 0 : i32
    %c0_i32_0 = arith.constant 0 : i32
    %c0_i32_1 = arith.constant 0 : i32
    %c0_i32_2 = arith.constant 0 : i32
    return %c0_i32, %c0_i32_0, %c0_i32_1 : i32, i32, i32
  }
  func.func @transform_3(%arg0: i32) -> (i32, i32, i32) {
    %c0_i32 = arith.constant 0 : i32
    %c0_i32_0 = arith.constant 0 : i32
    %c0_i32_1 = arith.constant 0 : i32
    %c0_i32_2 = arith.constant 0 : i32
    return %c0_i32, %c0_i32_0, %c0_i32_1 : i32, i32, i32
  }
  func.func @transform_4(%arg0: i32) -> (i32, i32) {
    %c0_i32 = arith.constant 0 : i32
    %c0_i32_0 = arith.constant 0 : i32
    %c0_i32_1 = arith.constant 0 : i32
    return %c0_i32, %c0_i32_0 : i32, i32
  }
  func.func @transform_5(%arg0: i32) -> (i32, i32) {
    %c0_i32 = arith.constant 0 : i32
    %c0_i32_0 = arith.constant 0 : i32
    %c0_i32_1 = arith.constant 0 : i32
    return %c0_i32, %c0_i32_0 : i32, i32
  }
  func.func @transform_6(%arg0: i32) -> (i32, i32, i32) {
    %c0_i32 = arith.constant 0 : i32
    %c0_i32_0 = arith.constant 0 : i32
    %c0_i32_1 = arith.constant 0 : i32
    return %arg0, %c0_i32, %c0_i32_0 : i32, i32, i32
  }
  func.func @transform_7(%arg0: i32) -> (i32, i32, i32) {
    %c0_i32 = arith.constant 0 : i32
    %c0_i32_0 = arith.constant 0 : i32
    %c0_i32_1 = arith.constant 0 : i32
    return %arg0, %c0_i32, %c0_i32_0 : i32, i32, i32
  }
}

</mosaic_0001>

<llo_original>
// kernel: _lambda_.7
$region0: #{_lambda_.7}
  #allocation0 [shape = 'u32[]', space=smem, size = 0x4, offset = 0x4, fixed_abs, tag = 'smem constant byte address 0x4 - core index']
  #allocation1 [shape = 'u32[72,128]{1,0:T(1,128)}', space=vmem, size = 0x9000, scoped, tag = 'internal scratch']
  %s0 = inlined_call_operand.vmem [shape: f32[2,16,3], index: 0, kind: input, shape index: {}, may-alias: {0,1}]
  %s1 = inlined_call_operand.vmem [shape: f32[2,16,3], index: 1, kind: input, shape index: {}, may-alias: {0,1}]
  %s2 = inlined_call_operand.vmem [shape: f32[2,1,16], index: 2, kind: input, shape index: {}]
  %s3 = inlined_call_operand.vmem [shape: f32[2,16,16], index: 3, kind: output, shape index: {}]
  %s4 = sld [smem:[#allocation0]]
  $region45: #{_lambda_.7} parent=0
    _
  %s6 = ssub.s32 1, %s4
  %s7 = scalar_select 0, %s6, %s4
  loop: start=0, step=1, limit=4
  $region2: #{_lambda_.7} parent=0 // loop_pre_header
    _
  $region3: #{_lambda_.7} parent=0 // loop_header
    %s9 = sphi 0, %s13
    %p10 = scmp.ge.s32.totalorder %s9, 4
    %s19 = sphi 0, %s21
    %s22 = sphi 0, %s19
    %s23 = sphi 0, %s22
    %s39 = sphi 0, %s23
    %s45 = sphi 0, %s47
    %s48 = sphi 0, %s45
    %s49 = sphi 0, %s48
    %s65 = sphi 0, %s49
    %s71 = sphi 0, %s73
    %s74 = sphi 0, %s71
    %s75 = sphi 0, %s74
    %s91 = sphi 0, %s75
    %s97 = sphi 0, %s99
    %s100 = sphi 0, %s97
    %s101 = sphi 0, %s100
    %s117 = sphi 0, %s101
  $region4: #{_lambda_.7} parent=0 // loop_header_branch
    %12 = sbr.rel (%p10) target = $region8
  $region5: #{_lambda_.7} parent=0 // loop_body
    %s14 = ssub.s32 %s9, 1
    %s15 = ssub.s32 %s9, 2
    %s16 = sadd.s32 %s9, 1
    %s17 = ssub.s32 %s9, %s16
    %p18 = scmp.eq.s32.totalorder %s17, 0
    %s20 = sadd.s32 %s19, 1
    %s21 = scalar_select %p18, %s19, %s20
    %p24 = pneg %p18
    %p25 = scmp.eq.s32.totalorder %s9, 1
    %p26 = por %p24, %p25
    %p27 = scmp.ne.s32.totalorder %s19, %s22
    %p28 = scmp.eq.s32.totalorder %s9, 0
    %p29 = por %p27, %p28
    %p30 = scmp.ne.s32.totalorder %s19, %s22
    %p31 = scmp.eq.s32.totalorder %s14, 1
    %p32 = por %p30, %p31
    %p33 = scmp.ne.s32.totalorder %s22, %s23
    %p34 = scmp.eq.s32.totalorder %s14, 0
    %p35 = por %p33, %p34
    %p36 = scmp.ne.s32.totalorder %s22, %s23
    %p37 = scmp.eq.s32.totalorder %s15, 1
    %p38 = por %p36, %p37
    %p40 = scmp.ne.s32.totalorder %s23, %s39
    %p41 = scmp.eq.s32.totalorder %s15, 0
    %p42 = por %p40, %p41
    %s43 = ssub.s32 %s9, %s16
    %p44 = scmp.eq.s32.totalorder %s43, 0
    %s46 = sadd.s32 %s45, 1
    %s47 = scalar_select %p44, %s45, %s46
    %p50 = pneg %p44
    %p51 = scmp.eq.s32.totalorder %s9, 1
    %p52 = por %p50, %p51
    %p53 = scmp.ne.s32.totalorder %s45, %s48
    %p54 = scmp.eq.s32.totalorder %s9, 0
    %p55 = por %p53, %p54
    %p56 = scmp.ne.s32.totalorder %s45, %s48
    %p57 = scmp.eq.s32.totalorder %s14, 1
    %p58 = por %p56, %p57
    %p59 = scmp.ne.s32.totalorder %s48, %s49
    %p60 = scmp.eq.s32.totalorder %s14, 0
    %p61 = por %p59, %p60
    %p62 = scmp.ne.s32.totalorder %s48, %s49
    %p63 = scmp.eq.s32.totalorder %s15, 1
    %p64 = por %p62, %p63
    %p66 = scmp.ne.s32.totalorder %s49, %s65
    %p67 = scmp.eq.s32.totalorder %s15, 0
    %p68 = por %p66, %p67
    %s69 = ssub.s32 %s9, %s16
    %p70 = scmp.eq.s32.totalorder %s69, 0
    %s72 = sadd.s32 %s71, 1
    %s73 = scalar_select %p70, %s71, %s72
    %p76 = pneg %p70
    %p77 = scmp.eq.s32.totalorder %s9, 1
    %p78 = por %p76, %p77
    %p79 = scmp.ne.s32.totalorder %s71, %s74
    %p80 = scmp.eq.s32.totalorder %s9, 0
    %p81 = por %p79, %p80
    %p82 = scmp.ne.s32.totalorder %s71, %s74
    %p83 = scmp.eq.s32.totalorder %s14, 1
    %p84 = por %p82, %p83
    %p85 = scmp.ne.s32.totalorder %s74, %s75
    %p86 = scmp.eq.s32.totalorder %s14, 0
    %p87 = por %p85, %p86
    %p88 = scmp.ne.s32.totalorder %s74, %s75
    %p89 = scmp.eq.s32.totalorder %s15, 1
    %p90 = por %p88, %p89
    %p92 = scmp.ne.s32.totalorder %s75, %s91
    %p93 = scmp.eq.s32.totalorder %s15, 0
    %p94 = por %p92, %p93
    %s95 = ssub.s32 %s9, %s16
    %p96 = scmp.eq.s32.totalorder %s95, 0
    %s98 = sadd.s32 %s97, 1
    %s99 = scalar_select %p96, %s97, %s98
    %p102 = pneg %p96
    %p103 = scmp.eq.s32.totalorder %s9, 1
    %p104 = por %p102, %p103
    %p105 = scmp.ne.s32.totalorder %s97, %s100
    %p106 = scmp.eq.s32.totalorder %s9, 0
    %p107 = por %p105, %p106
    %p108 = scmp.ne.s32.totalorder %s97, %s100
    %p109 = scmp.eq.s32.totalorder %s14, 1
    %p110 = por %p108, %p109
    %p111 = scmp.ne.s32.totalorder %s100, %s101
    %p112 = scmp.eq.s32.totalorder %s14, 0
    %p113 = por %p111, %p112
    %p114 = scmp.ne.s32.totalorder %s100, %s101
    %p115 = scmp.eq.s32.totalorder %s15, 1
    %p116 = por %p114, %p115
    %p118 = scmp.ne.s32.totalorder %s101, %s117
    %p119 = scmp.eq.s32.totalorder %s15, 0
    %p120 = por %p118, %p119
    %p121 = scmp.le.s32.totalorder 1, %s9
    %p122 = scmp.lt.s32.totalorder %s9, 3
    %p123 = pnand %p121, %p122
    %p124 = pneg %p123
    // Predicated region
    $region9: #{_lambda_.7} parent=5 // pred_check
      _
    $region10: #{_lambda_.7} parent=5 // pred_check_branch
      %126 = sbr.rel (%p123) target = $region12
    $region11: #{_lambda_.7} parent=5 // pred_region
      %s127 = ssub.s32 %s9, 1
    $region12: #{_lambda_.7} parent=5 // pred_fallthru
      _
    %p128 = scmp.lt.s32.totalorder %s9, 2
    // Predicated region
    $region13: #{_lambda_.7} parent=5 // pred_check
      %p129 = pneg %p128
    $region14: #{_lambda_.7} parent=5 // pred_check_branch
      %131 = sbr.rel (%p129) target = $region16
    $region15: #{_lambda_.7} parent=5 // pred_region
      // Predicated region
      $region17: #{_lambda_.7} parent=15 // pred_check
        %p132 = pneg %p29
      $region18: #{_lambda_.7} parent=15 // pred_check_branch
        %134 = sbr.rel (%p132) target = $region20
      $region19: #{_lambda_.7} parent=15 // pred_region
        %p135 = scmp.lt.s32.totalorder %s9, 1
        %s136 = scalar_select %p135, %s9, 1
        %s137 = smul.addr %s136, 2
        %s138 = smul.addr %s137, 8
        %s139 = scalar_lea.vmem %s0, %s138
      $region20: #{_lambda_.7} parent=15 // pred_fallthru
        _
      // Predicated region
      $region21: #{_lambda_.7} parent=15 // pred_check
        %p140 = pneg %p55
      $region22: #{_lambda_.7} parent=15 // pred_check_branch
        %142 = sbr.rel (%p140) target = $region24
      $region23: #{_lambda_.7} parent=15 // pred_region
        %p143 = scmp.lt.s32.totalorder %s9, 1
        %s144 = scalar_select %p143, %s9, 1
        %s145 = smul.addr %s144, 2
        %s146 = smul.addr %s145, 8
        %s147 = scalar_lea.vmem %s1, %s146
      $region24: #{_lambda_.7} parent=15 // pred_fallthru
        _
      // Predicated region
      $region25: #{_lambda_.7} parent=15 // pred_check
        %p148 = pneg %p81
      $region26: #{_lambda_.7} parent=15 // pred_check_branch
        %150 = sbr.rel (%p148) target = $region28
      $region27: #{_lambda_.7} parent=15 // pred_region
        %p151 = scmp.lt.s32.totalorder %s9, 1
        %s152 = scalar_select %p151, %s9, 1
        %s153 = scalar_lea.vmem %s2, %s152
      $region28: #{_lambda_.7} parent=15 // pred_fallthru
        _
    $region16: #{_lambda_.7} parent=5 // pred_fallthru
      _
    %p154 = scmp.le.s32.totalorder 1, %s9
    %p155 = scmp.lt.s32.totalorder %s9, 3
    %p156 = pnand %p154, %p155
    %p157 = pneg %p156
    // Predicated region
    $region29: #{_lambda_.7} parent=5 // pred_check
      _
    $region30: #{_lambda_.7} parent=5 // pred_check_branch
      %159 = sbr.rel (%p156) target = $region32
    $region31: #{_lambda_.7} parent=5 // pred_region
      %s160 = ssub.s32 %s9, 1
      %p161 = scmp.lt.s32.totalorder %s14, 1
      %s162 = scalar_select %p161, %s14, 1
      %s163 = smul.addr %s162, 2
      %s164 = smul.addr %s163, 8
      %s165 = scalar_lea.vmem %s0, %s164
      %p166 = pneg %p35
      %p167 = pneg %p32
      %p168 = scmp.lt.s32.totalorder %s14, 1
      %s169 = scalar_select %p168, %s14, 1
      %s170 = smul.addr %s169, 2
      %s171 = smul.addr %s170, 8
      %s172 = scalar_lea.vmem %s1, %s171
      %p173 = pneg %p61
      %p174 = pneg %p58
      %p175 = scmp.lt.s32.totalorder %s14, 1
      %s176 = scalar_select %p175, %s14, 1
      %s177 = scalar_lea.vmem %s2, %s176
      %p178 = pneg %p87
      %p179 = pneg %p84
      %p180 = pneg %p113
      %p181 = pneg %p110
      %p182 = scmp.lt.s32.totalorder %s14, 1
      %s183 = scalar_select %p182, %s14, 1
      %s184 = smul.addr %s183, 2
      %s185 = smul.addr %s184, 8
      %s186 = scalar_lea.vmem %s3, %s185
      %p187 = scmp.lt.s32.totalorder %s14, 1
      %s188 = scalar_select %p187, %s14, 1
      %s189 = smul.addr %s188, 2
      %s190 = smul.addr %s189, 8
      %s191 = scalar_lea.vmem %s0, %s190
      %p192 = scmp.lt.s32.totalorder %s14, 1
      %s193 = scalar_select %p192, %s14, 1
      %s194 = smul.addr %s193, 2
      %s195 = smul.addr %s194, 8
      %s196 = scalar_lea.vmem %s1, %s195
      %p197 = scmp.lt.s32.totalorder %s14, 1
      %s198 = scalar_select %p197, %s14, 1
      %s199 = scalar_lea.vmem %s2, %s198
      %p200 = scmp.lt.s32.totalorder %s14, 1
      %s201 = scalar_select %p200, %s14, 1
      %s202 = smul.addr %s201, 2
      %s203 = smul.addr %s202, 8
      %s204 = scalar_lea.vmem %s3, %s203
      %v205 = vld [vmem:[%s191] sm:$0xff]
      %v206 = vld [vmem:[%s191 + $0x8] sm:$0xff]
      %v207 = vld [vmem:[%s196] sm:$0xff]
      %v208 = vld [vmem:[%s196 + $0x8] sm:$0xff]
      %v209 = vld [vmem:[%s199] sm:$0x1]
      %vm210 = vcmask 23552
      %v212 = vsel %vm210, %v205, 0
      %v215 = vsel %vm210, %v206, 0
      %v218 = vsel %vm210, %v207, 0
      %v221 = vsel %vm210, %v208, 0
      %223 = vmatpush.xpose.msra.mxu0 0.0
      %224 = vmatpush.xpose.msra.mxu0 0.0
      %225 = vmatpush.xpose.msra.mxu0 0.0
      %226 = vmatpush.xpose.msra.mxu0 0.0
      %227 = vmatpush.xpose.msra.mxu0 0.0
      %228 = vmatpush.xpose.msra.mxu0 0.0
      %229 = vmatpush.xpose.msra.mxu0 0.0
      %230 = vmatpush.xpose.msra.mxu0 0.0
      %231 = vmatpush.xpose.msra.mxu0 0.0
      %232 = vmatpush.xpose.msra.mxu0 0.0
      %233 = vmatpush.xpose.msra.mxu0 0.0
      %234 = vmatpush.xpose.msra.mxu0 0.0
      %235 = vmatpush.xpose.msra.mxu0 0.0
      %236 = vmatpush.xpose.msra.mxu0 0.0
      %237 = vmatpush.xpose.msra.mxu0 %v221
      %238 = vmatpush.xpose.msra.mxu0 %v218
      %239 = vmatmul.f32.gmra.mxu0 %v212
      %v240 = vpop.f32.mrf.mxu0
      %v241 = vadd.f32 0.0, %v240
      %242 = vmatmul.f32.gmra.mxu0 %v215
      %v243 = vpop.f32.mrf.mxu0
      %v244 = vadd.f32 0.0, %v243
      %245 = vdwg.mxu0
      %v246 = vmul.f32 %v241, 2.0
      %v247 = vmul.f32 %v244, 2.0
      %v249 = vperm.slane %v209, 0
      %v251 = vsub.f32 %v246, %v249
      %v252 = vsub.f32 %v247, %v249
      %vm253 = vcmask 130048
      %254 = vst.msk [vmem:[%s204] sm:$0xff] %vm253, %v251
      %255 = vst.msk [vmem:[%s204 + $0x8] sm:$0xff] %vm253, %v252
      %p256 = scmp.lt.s32.totalorder %s14, 1
      %s257 = scalar_select %p256, %s14, 1
      %s258 = smul.addr %s257, 2
      %s259 = smul.addr %s258, 8
      %s260 = scalar_lea.vmem %s3, %s259
      // Predicated region
      $region33: #{_lambda_.7} parent=31 // pred_check
        %p261 = pneg %p110
      $region34: #{_lambda_.7} parent=31 // pred_check_branch
        %263 = sbr.rel (%p261) target = $region36
      $region35: #{_lambda_.7} parent=31 // pred_region
        _
      $region36: #{_lambda_.7} parent=31 // pred_fallthru
        _
    $region32: #{_lambda_.7} parent=5 // pred_fallthru
      _
    %p264 = scmp.le.s32.totalorder 2, %s9
    // Predicated region
    $region37: #{_lambda_.7} parent=5 // pred_check
      %p265 = pneg %p264
    $region38: #{_lambda_.7} parent=5 // pred_check_branch
      %267 = sbr.rel (%p265) target = $region40
    $region39: #{_lambda_.7} parent=5 // pred_region
      %s268 = ssub.s32 %s9, 2
      // Predicated region
      $region41: #{_lambda_.7} parent=39 // pred_check
        %p269 = pneg %p116
      $region42: #{_lambda_.7} parent=39 // pred_check_branch
        %271 = sbr.rel (%p269) target = $region44
      $region43: #{_lambda_.7} parent=39 // pred_region
        %p272 = scmp.lt.s32.totalorder %s15, 1
        %s273 = scalar_select %p272, %s15, 1
        %s274 = smul.addr %s273, 2
        %s275 = smul.addr %s274, 8
        %s276 = scalar_lea.vmem %s3, %s275
      $region44: #{_lambda_.7} parent=39 // pred_fallthru
        _
    $region40: #{_lambda_.7} parent=5 // pred_fallthru
      _
  $region6: #{_lambda_.7} parent=0 // loop_footer
    %s13 = sadd.s32 1, %s9
  $region7: #{_lambda_.7} parent=0 // loop_footer_branch
    %8 = sbr.rel target = $region3
  $region8: #{_lambda_.7} parent=0 // loop_exit
    _

// kernel: _lambda_.8
$region0: #{_lambda_.8}
  #allocation0 [shape = 'u32[]', space=smem, size = 0x4, offset = 0x4, fixed_abs, tag = 'smem constant byte address 0x4 - core index']
  #allocation1 [shape = 'u32[72,128]{1,0:T(1,128)}', space=vmem, size = 0x9000, scoped, tag = 'internal scratch']
  %s0 = inlined_call_operand.vmem [shape: f32[2,64,3], index: 0, kind: input, shape index: {}]
  %s1 = inlined_call_operand.vmem [shape: f32[3,32], index: 1, kind: input, shape index: {}]
  %s2 = inlined_call_operand.vmem [shape: f32[32,32], index: 2, kind: input, shape index: {}]
  %s3 = inlined_call_operand.vmem [shape: f32[32,32], index: 3, kind: input, shape index: {}]
  %s4 = inlined_call_operand.vmem [shape: f32[2,16,32], index: 4, kind: output, shape index: {}]
  %s5 = sld [smem:[#allocation0]]
  $region49: #{_lambda_.8} parent=0
    _
  %s7 = ssub.s32 1, %s5
  %s8 = scalar_select 0, %s7, %s5
  loop: start=0, step=1, limit=4
  $region2: #{_lambda_.8} parent=0 // loop_pre_header
    _
  $region3: #{_lambda_.8} parent=0 // loop_header
    %s10 = sphi 0, %s14
    %p11 = scmp.ge.s32.totalorder %s10, 4
    %s20 = sphi 0, %s22
    %s23 = sphi 0, %s20
    %s24 = sphi 0, %s23
    %s40 = sphi 0, %s24
    %s44 = sphi 0, %s44
    %s46 = sphi 0, %s44
    %s47 = sphi 0, %s46
    %s61 = sphi 0, %s47
    %s65 = sphi 0, %s65
    %s67 = sphi 0, %s65
    %s68 = sphi 0, %s67
    %s82 = sphi 0, %s68
    %s86 = sphi 0, %s86
    %s88 = sphi 0, %s86
    %s89 = sphi 0, %s88
    %s103 = sphi 0, %s89
    %s109 = sphi 0, %s111
    %s112 = sphi 0, %s109
    %s113 = sphi 0, %s112
    %s129 = sphi 0, %s113
  $region4: #{_lambda_.8} parent=0 // loop_header_branch
    %13 = sbr.rel (%p11) target = $region8
  $region5: #{_lambda_.8} parent=0 // loop_body
    %s15 = ssub.s32 %s10, 1
    %s16 = ssub.s32 %s10, 2
    %s17 = sadd.s32 %s10, 1
    %s18 = ssub.s32 %s10, %s17
    %p19 = scmp.eq.s32.totalorder %s18, 0
    %s21 = sadd.s32 %s20, 1
    %s22 = scalar_select %p19, %s20, %s21
    %p25 = pneg %p19
    %p26 = scmp.eq.s32.totalorder %s10, 1
    %p27 = por %p25, %p26
    %p28 = scmp.ne.s32.totalorder %s20, %s23
    %p29 = scmp.eq.s32.totalorder %s10, 0
    %p30 = por %p28, %p29
    %p31 = scmp.ne.s32.totalorder %s20, %s23
    %p32 = scmp.eq.s32.totalorder %s15, 1
    %p33 = por %p31, %p32
    %p34 = scmp.ne.s32.totalorder %s23, %s24
    %p35 = scmp.eq.s32.totalorder %s15, 0
    %p36 = por %p34, %p35
    %p37 = scmp.ne.s32.totalorder %s23, %s24
    %p38 = scmp.eq.s32.totalorder %s16, 1
    %p39 = por %p37, %p38
    %p41 = scmp.ne.s32.totalorder %s24, %s40
    %p42 = scmp.eq.s32.totalorder %s16, 0
    %p43 = por %p41, %p42
    %s45 = sadd.s32 %s44, 1
    %p48 = scmp.eq.s32.totalorder %s10, 1
    %p49 = scmp.ne.s32.totalorder %s44, %s46
    %p50 = scmp.eq.s32.totalorder %s10, 0
    %p51 = por %p49, %p50
    %p52 = scmp.ne.s32.totalorder %s44, %s46
    %p53 = scmp.eq.s32.totalorder %s15, 1
    %p54 = por %p52, %p53
    %p55 = scmp.ne.s32.totalorder %s46, %s47
    %p56 = scmp.eq.s32.totalorder %s15, 0
    %p57 = por %p55, %p56
    %p58 = scmp.ne.s32.totalorder %s46, %s47
    %p59 = scmp.eq.s32.totalorder %s16, 1
    %p60 = por %p58, %p59
    %p62 = scmp.ne.s32.totalorder %s47, %s61
    %p63 = scmp.eq.s32.totalorder %s16, 0
    %p64 = por %p62, %p63
    %s66 = sadd.s32 %s65, 1
    %p69 = scmp.eq.s32.totalorder %s10, 1
    %p70 = scmp.ne.s32.totalorder %s65, %s67
    %p71 = scmp.eq.s32.totalorder %s10, 0
    %p72 = por %p70, %p71
    %p73 = scmp.ne.s32.totalorder %s65, %s67
    %p74 = scmp.eq.s32.totalorder %s15, 1
    %p75 = por %p73, %p74
    %p76 = scmp.ne.s32.totalorder %s67, %s68
    %p77 = scmp.eq.s32.totalorder %s15, 0
    %p78 = por %p76, %p77
    %p79 = scmp.ne.s32.totalorder %s67, %s68
    %p80 = scmp.eq.s32.totalorder %s16, 1
    %p81 = por %p79, %p80
    %p83 = scmp.ne.s32.totalorder %s68, %s82
    %p84 = scmp.eq.s32.totalorder %s16, 0
    %p85 = por %p83, %p84
    %s87 = sadd.s32 %s86, 1
    %p90 = scmp.eq.s32.totalorder %s10, 1
    %p91 = scmp.ne.s32.totalorder %s86, %s88
    %p92 = scmp.eq.s32.totalorder %s10, 0
    %p93 = por %p91, %p92
    %p94 = scmp.ne.s32.totalorder %s86, %s88
    %p95 = scmp.eq.s32.totalorder %s15, 1
    %p96 = por %p94, %p95
    %p97 = scmp.ne.s32.totalorder %s88, %s89
    %p98 = scmp.eq.s32.totalorder %s15, 0
    %p99 = por %p97, %p98
    %p100 = scmp.ne.s32.totalorder %s88, %s89
    %p101 = scmp.eq.s32.totalorder %s16, 1
    %p102 = por %p100, %p101
    %p104 = scmp.ne.s32.totalorder %s89, %s103
    %p105 = scmp.eq.s32.totalorder %s16, 0
    %p106 = por %p104, %p105
    %s107 = ssub.s32 %s10, %s17
    %p108 = scmp.eq.s32.totalorder %s107, 0
    %s110 = sadd.s32 %s109, 1
    %s111 = scalar_select %p108, %s109, %s110
    %p114 = pneg %p108
    %p115 = scmp.eq.s32.totalorder %s10, 1
    %p116 = por %p114, %p115
    %p117 = scmp.ne.s32.totalorder %s109, %s112
    %p118 = scmp.eq.s32.totalorder %s10, 0
    %p119 = por %p117, %p118
    %p120 = scmp.ne.s32.totalorder %s109, %s112
    %p121 = scmp.eq.s32.totalorder %s15, 1
    %p122 = por %p120, %p121
    %p123 = scmp.ne.s32.totalorder %s112, %s113
    %p124 = scmp.eq.s32.totalorder %s15, 0
    %p125 = por %p123, %p124
    %p126 = scmp.ne.s32.totalorder %s112, %s113
    %p127 = scmp.eq.s32.totalorder %s16, 1
    %p128 = por %p126, %p127
    %p130 = scmp.ne.s32.totalorder %s113, %s129
    %p131 = scmp.eq.s32.totalorder %s16, 0
    %p132 = por %p130, %p131
    %p133 = scmp.le.s32.totalorder 1, %s10
    %p134 = scmp.lt.s32.totalorder %s10, 3
    %p135 = pnand %p133, %p134
    %p136 = pneg %p135
    // Predicated region
    $region9: #{_lambda_.8} parent=5 // pred_check
      _
    $region10: #{_lambda_.8} parent=5 // pred_check_branch
      %138 = sbr.rel (%p135) target = $region12
    $region11: #{_lambda_.8} parent=5 // pred_region
      %s139 = ssub.s32 %s10, 1
      // Predicated region
      $region13: #{_lambda_.8} parent=11 // pred_check
        %p140 = pneg %p57
      $region14: #{_lambda_.8} parent=11 // pred_check_branch
        %142 = sbr.rel (%p140) target = $region16
      $region15: #{_lambda_.8} parent=11 // pred_region
        _
      $region16: #{_lambda_.8} parent=11 // pred_fallthru
        _
      // Predicated region
      $region17: #{_lambda_.8} parent=11 // pred_check
        %p143 = pneg %p78
      $region18: #{_lambda_.8} parent=11 // pred_check_branch
        %145 = sbr.rel (%p143) target = $region20
      $region19: #{_lambda_.8} parent=11 // pred_region
        _
      $region20: #{_lambda_.8} parent=11 // pred_fallthru
        _
      // Predicated region
      $region21: #{_lambda_.8} parent=11 // pred_check
        %p146 = pneg %p99
      $region22: #{_lambda_.8} parent=11 // pred_check_branch
        %148 = sbr.rel (%p146) target = $region24
      $region23: #{_lambda_.8} parent=11 // pred_region
        _
      $region24: #{_lambda_.8} parent=11 // pred_fallthru
        _
    $region12: #{_lambda_.8} parent=5 // pred_fallthru
      _
    %p149 = scmp.lt.s32.totalorder %s10, 2
    // Predicated region
    $region25: #{_lambda_.8} parent=5 // pred_check
      %p150 = pneg %p149
    $region26: #{_lambda_.8} parent=5 // pred_check_branch
      %152 = sbr.rel (%p150) target = $region28
    $region27: #{_lambda_.8} parent=5 // pred_region
      // Predicated region
      $region29: #{_lambda_.8} parent=27 // pred_check
        %p153 = pneg %p30
      $region30: #{_lambda_.8} parent=27 // pred_check_branch
        %155 = sbr.rel (%p153) target = $region32
      $region31: #{_lambda_.8} parent=27 // pred_region
        %p156 = scmp.lt.s32.totalorder %s10, 1
        %s157 = scalar_select %p156, %s10, 1
        %s158 = smul.addr %s157, 8
        %s159 = smul.addr %s158, 8
        %s160 = scalar_lea.vmem %s0, %s159
      $region32: #{_lambda_.8} parent=27 // pred_fallthru
        _
    $region28: #{_lambda_.8} parent=5 // pred_fallthru
      _
    %p161 = scmp.le.s32.totalorder 1, %s10
    %p162 = scmp.lt.s32.totalorder %s10, 3
    %p163 = pnand %p161, %p162
    %p164 = pneg %p163
    // Predicated region
    $region33: #{_lambda_.8} parent=5 // pred_check
      _
    $region34: #{_lambda_.8} parent=5 // pred_check_branch
      %166 = sbr.rel (%p163) target = $region36
    $region35: #{_lambda_.8} parent=5 // pred_region
      %s167 = ssub.s32 %s10, 1
      %p168 = scmp.lt.s32.totalorder %s15, 1
      %s169 = scalar_select %p168, %s15, 1
      %s170 = smul.addr %s169, 8
      %s171 = smul.addr %s170, 8
      %s172 = scalar_lea.vmem %s0, %s171
      %p173 = pneg %p36
      %p174 = pneg %p33
      %p175 = pneg %p57
      %p176 = pneg %p54
      %p177 = pneg %p78
      %p178 = pneg %p75
      %p179 = pneg %p99
      %p180 = pneg %p96
      %p181 = pneg %p125
      %p182 = pneg %p122
      %p183 = scmp.lt.s32.totalorder %s15, 1
      %s184 = scalar_select %p183, %s15, 1
      %s185 = smul.addr %s184, 2
      %s186 = smul.addr %s185, 8
      %s187 = scalar_lea.vmem %s4, %s186
      %p188 = scmp.lt.s32.totalorder %s15, 1
      %s189 = scalar_select %p188, %s15, 1
      %s190 = smul.addr %s189, 8
      %s191 = smul.addr %s190, 8
      %s192 = scalar_lea.vmem %s0, %s191
      %p193 = scmp.lt.s32.totalorder %s15, 1
      %s194 = scalar_select %p193, %s15, 1
      %s195 = smul.addr %s194, 2
      %s196 = smul.addr %s195, 8
      %s197 = scalar_lea.vmem %s4, %s196
      %v198 = vld [vmem:[%s192] sm:$0xff]
      %v199 = vld [vmem:[%s192 + $0x8] sm:$0xff]
      %v200 = vld [vmem:[%s192 + $0x10] sm:$0xff]
      %v201 = vld [vmem:[%s192 + $0x18] sm:$0xff]
      %v202 = vld [vmem:[%s192 + $0x20] sm:$0xff]
      %v203 = vld [vmem:[%s192 + $0x28] sm:$0xff]
      %v204 = vld [vmem:[%s192 + $0x30] sm:$0xff]
      %v205 = vld [vmem:[%s192 + $0x38] sm:$0xff]
      %v206 = vld [vmem:[%s1] sm:$0x7]
      %vm207 = vcmask 23552
      %v209 = vsel %vm207, %v198, 0
      %v212 = vsel %vm207, %v199, 0
      %v215 = vsel %vm207, %v200, 0
      %v218 = vsel %vm207, %v201, 0
      %v221 = vsel %vm207, %v202, 0
      %v224 = vsel %vm207, %v203, 0
      %v227 = vsel %vm207, %v204, 0
      %v230 = vsel %vm207, %v205, 0
      %vm232 = vcmask 1042432
      %v234 = vsel %vm232, %v206, 0
      %236 = vmatpush.msra.mxu0 0.0
      %237 = vmatpush.msra.mxu0 0.0
      %238 = vmatpush.msra.mxu0 0.0
      %239 = vmatpush.msra.mxu0 0.0
      %240 = vmatpush.msra.mxu0 0.0
      %241 = vmatpush.msra.mxu0 0.0
      %242 = vmatpush.msra.mxu0 0.0
      %243 = vmatpush.msra.mxu0 0.0
      %244 = vmatpush.msra.mxu0 0.0
      %245 = vmatpush.msra.mxu0 0.0
      %246 = vmatpush.msra.mxu0 0.0
      %247 = vmatpush.msra.mxu0 0.0
      %248 = vmatpush.msra.mxu0 0.0
      %249 = vmatpush.msra.mxu0 0.0
      %250 = vmatpush.msra.mxu0 0.0
      %251 = vmatpush.msra.mxu0 %v234
      %252 = vmatmul.f32.gmra.mxu0 %v209
      %v253 = vpop.f32.mrf.mxu0
      %v254 = vadd.f32 0.0, %v253
      %255 = vmatmul.f32.gmra.mxu0 %v212
      %v256 = vpop.f32.mrf.mxu0
      %v257 = vadd.f32 0.0, %v256
      %258 = vmatmul.f32.gmra.mxu0 %v215
      %v259 = vpop.f32.mrf.mxu0
      %v260 = vadd.f32 0.0, %v259
      %261 = vmatmul.f32.gmra.mxu0 %v218
      %v262 = vpop.f32.mrf.mxu0
      %v263 = vadd.f32 0.0, %v262
      %264 = vmatmul.f32.gmra.mxu0 %v221
      %v265 = vpop.f32.mrf.mxu0
      %v266 = vadd.f32 0.0, %v265
      %267 = vmatmul.f32.gmra.mxu0 %v224
      %v268 = vpop.f32.mrf.mxu0
      %v269 = vadd.f32 0.0, %v268
      %270 = vmatmul.f32.gmra.mxu0 %v227
      %v271 = vpop.f32.mrf.mxu0
      %v272 = vadd.f32 0.0, %v271
      %273 = vmatmul.f32.gmra.mxu0 %v230
      %v274 = vpop.f32.mrf.mxu0
      %v275 = vadd.f32 0.0, %v274
      %276 = vdwg.mxu0
      %v277 = vmax.f32 %v254, 0.0
      %v278 = vmax.f32 %v257, 0.0
      %v279 = vmax.f32 %v260, 0.0
      %v280 = vmax.f32 %v263, 0.0
      %v281 = vmax.f32 %v266, 0.0
      %v282 = vmax.f32 %v269, 0.0
      %v283 = vmax.f32 %v272, 0.0
      %v284 = vmax.f32 %v275, 0.0
      %v285 = vld [vmem:[%s2] sm:$0xff]
      %v286 = vld [vmem:[%s2 + $0x8] sm:$0xff]
      %v287 = vld [vmem:[%s2 + $0x10] sm:$0xff]
      %v288 = vld [vmem:[%s2 + $0x18] sm:$0xff]
      %vm289 = vcmask 261120
      %v291 = vsel %vm289, %v277, 0
      %v294 = vsel %vm289, %v278, 0
      %v297 = vsel %vm289, %v279, 0
      %v300 = vsel %vm289, %v280, 0
      %v303 = vsel %vm289, %v281, 0
      %v306 = vsel %vm289, %v282, 0
      %v309 = vsel %vm289, %v283, 0
      %v312 = vsel %vm289, %v284, 0
      %314 = vmatpush.msra.mxu0 0.0
      %315 = vmatpush.msra.mxu0 0.0
      %316 = vmatpush.msra.mxu0 0.0
      %317 = vmatpush.msra.mxu0 0.0
      %318 = vmatpush.msra.mxu0 0.0
      %319 = vmatpush.msra.mxu0 0.0
      %320 = vmatpush.msra.mxu0 0.0
      %321 = vmatpush.msra.mxu0 0.0
      %322 = vmatpush.msra.mxu0 0.0
      %323 = vmatpush.msra.mxu0 0.0
      %324 = vmatpush.msra.mxu0 0.0
      %325 = vmatpush.msra.mxu0 0.0
      %326 = vmatpush.msra.mxu0 %v288
      %327 = vmatpush.msra.mxu0 %v287
      %328 = vmatpush.msra.mxu0 %v286
      %329 = vmatpush.msra.mxu0 %v285
      %330 = vmatmul.f32.gmra.mxu0 %v291
      %v331 = vpop.f32.mrf.mxu0
      %v332 = vadd.f32 0.0, %v331
      %333 = vmatmul.f32.gmra.mxu0 %v294
      %v334 = vpop.f32.mrf.mxu0
      %v335 = vadd.f32 0.0, %v334
      %336 = vmatmul.f32.gmra.mxu0 %v297
      %v337 = vpop.f32.mrf.mxu0
      %v338 = vadd.f32 0.0, %v337
      %339 = vmatmul.f32.gmra.mxu0 %v300
      %v340 = vpop.f32.mrf.mxu0
      %v341 = vadd.f32 0.0, %v340
      %342 = vmatmul.f32.gmra.mxu0 %v303
      %v343 = vpop.f32.mrf.mxu0
      %v344 = vadd.f32 0.0, %v343
      %345 = vmatmul.f32.gmra.mxu0 %v306
      %v346 = vpop.f32.mrf.mxu0
      %v347 = vadd.f32 0.0, %v346
      %348 = vmatmul.f32.gmra.mxu0 %v309
      %v349 = vpop.f32.mrf.mxu0
      %v350 = vadd.f32 0.0, %v349
      %351 = vmatmul.f32.gmra.mxu0 %v312
      %v352 = vpop.f32.mrf.mxu0
      %v353 = vadd.f32 0.0, %v352
      %354 = vdwg.mxu0
      %v355 = vmax.f32 %v332, 0.0
      %v356 = vmax.f32 %v335, 0.0
      %v357 = vmax.f32 %v338, 0.0
      %v358 = vmax.f32 %v341, 0.0
      %v359 = vmax.f32 %v344, 0.0
      %v360 = vmax.f32 %v347, 0.0
      %v361 = vmax.f32 %v350, 0.0
      %v362 = vmax.f32 %v353, 0.0
      %v363 = vld [vmem:[%s3] sm:$0xff]
      %v364 = vld [vmem:[%s3 + $0x8] sm:$0xff]
      %v365 = vld [vmem:[%s3 + $0x10] sm:$0xff]
      %v366 = vld [vmem:[%s3 + $0x18] sm:$0xff]
      %v368 = vsel %vm289, %v355, 0
      %v371 = vsel %vm289, %v356, 0
      %v374 = vsel %vm289, %v357, 0
      %v377 = vsel %vm289, %v358, 0
      %v380 = vsel %vm289, %v359, 0
      %v383 = vsel %vm289, %v360, 0
      %v386 = vsel %vm289, %v361, 0
      %v389 = vsel %vm289, %v362, 0
      %391 = vmatpush.msra.mxu0 0.0
      %392 = vmatpush.msra.mxu0 0.0
      %393 = vmatpush.msra.mxu0 0.0
      %394 = vmatpush.msra.mxu0 0.0
      %395 = vmatpush.msra.mxu0 0.0
      %396 = vmatpush.msra.mxu0 0.0
      %397 = vmatpush.msra.mxu0 0.0
      %398 = vmatpush.msra.mxu0 0.0
      %399 = vmatpush.msra.mxu0 0.0
      %400 = vmatpush.msra.mxu0 0.0
      %401 = vmatpush.msra.mxu0 0.0
      %402 = vmatpush.msra.mxu0 0.0
      %403 = vmatpush.msra.mxu0 %v366
      %404 = vmatpush.msra.mxu0 %v365
      %405 = vmatpush.msra.mxu0 %v364
      %406 = vmatpush.msra.mxu0 %v363
      %407 = vmatmul.f32.gmra.mxu0 %v368
      %v408 = vpop.f32.mrf.mxu0
      %v409 = vadd.f32 0.0, %v408
      %410 = vmatmul.f32.gmra.mxu0 %v371
      %v411 = vpop.f32.mrf.mxu0
      %v412 = vadd.f32 0.0, %v411
      %413 = vmatmul.f32.gmra.mxu0 %v374
      %v414 = vpop.f32.mrf.mxu0
      %v415 = vadd.f32 0.0, %v414
      %416 = vmatmul.f32.gmra.mxu0 %v377
      %v417 = vpop.f32.mrf.mxu0
      %v418 = vadd.f32 0.0, %v417
      %419 = vmatmul.f32.gmra.mxu0 %v380
      %v420 = vpop.f32.mrf.mxu0
      %v421 = vadd.f32 0.0, %v420
      %422 = vmatmul.f32.gmra.mxu0 %v383
      %v423 = vpop.f32.mrf.mxu0
      %v424 = vadd.f32 0.0, %v423
      %425 = vmatmul.f32.gmra.mxu0 %v386
      %v426 = vpop.f32.mrf.mxu0
      %v427 = vadd.f32 0.0, %v426
      %428 = vmatmul.f32.gmra.mxu0 %v389
      %v429 = vpop.f32.mrf.mxu0
      %v430 = vadd.f32 0.0, %v429
      %431 = vdwg.mxu0
      %v432 = vmax.f32 %v409, 0.0
      %v433 = vmax.f32 %v412, 0.0
      %v434 = vmax.f32 %v415, 0.0
      %v435 = vmax.f32 %v418, 0.0
      %v436 = vmax.f32 %v421, 0.0
      %v437 = vmax.f32 %v424, 0.0
      %v438 = vmax.f32 %v427, 0.0
      %v439 = vmax.f32 %v430, 0.0
      %v440 = vmax.f32 %v432, %v434
      %v441 = vmax.f32 %v433, %v435
      %v442 = vmax.f32 %v440, %v436
      %v443 = vmax.f32 %v441, %v437
      %v444 = vmax.f32 %v442, %v438
      %v445 = vmax.f32 %v443, %v439
      %446 = vst.msk [vmem:[%s197] sm:$0xff] %vm289, %v444
      %447 = vst.msk [vmem:[%s197 + $0x8] sm:$0xff] %vm289, %v445
      %p448 = scmp.lt.s32.totalorder %s15, 1
      %s449 = scalar_select %p448, %s15, 1
      %s450 = smul.addr %s449, 2
      %s451 = smul.addr %s450, 8
      %s452 = scalar_lea.vmem %s4, %s451
      // Predicated region
      $region37: #{_lambda_.8} parent=35 // pred_check
        %p453 = pneg %p122
      $region38: #{_lambda_.8} parent=35 // pred_check_branch
        %455 = sbr.rel (%p453) target = $region40
      $region39: #{_lambda_.8} parent=35 // pred_region
        _
      $region40: #{_lambda_.8} parent=35 // pred_fallthru
        _
    $region36: #{_lambda_.8} parent=5 // pred_fallthru
      _
    %p456 = scmp.le.s32.totalorder 2, %s10
    // Predicated region
    $region41: #{_lambda_.8} parent=5 // pred_check
      %p457 = pneg %p456
    $region42: #{_lambda_.8} parent=5 // pred_check_branch
      %459 = sbr.rel (%p457) target = $region44
    $region43: #{_lambda_.8} parent=5 // pred_region
      %s460 = ssub.s32 %s10, 2
      // Predicated region
      $region45: #{_lambda_.8} parent=43 // pred_check
        %p461 = pneg %p128
      $region46: #{_lambda_.8} parent=43 // pred_check_branch
        %463 = sbr.rel (%p461) target = $region48
      $region47: #{_lambda_.8} parent=43 // pred_region
        %p464 = scmp.lt.s32.totalorder %s16, 1
        %s465 = scalar_select %p464, %s16, 1
        %s466 = smul.addr %s465, 2
        %s467 = smul.addr %s466, 8
        %s468 = scalar_lea.vmem %s4, %s467
      $region48: #{_lambda_.8} parent=43 // pred_fallthru
        _
    $region44: #{_lambda_.8} parent=5 // pred_fallthru
      _
  $region6: #{_lambda_.8} parent=0 // loop_footer
    %s14 = sadd.s32 1, %s10
  $region7: #{_lambda_.8} parent=0 // loop_footer_branch
    %9 = sbr.rel target = $region3
  $region8: #{_lambda_.8} parent=0 // loop_exit
    _

// kernel: _lambda_.9
$region0: #{_lambda_.9}
  #allocation0 [shape = 'u32[]', space=smem, size = 0x4, offset = 0x4, fixed_abs, tag = 'smem constant byte address 0x4 - core index']
  #allocation1 [shape = 'u32[72,128]{1,0:T(1,128)}', space=vmem, size = 0x9000, scoped, tag = 'internal scratch']
  %s0 = inlined_call_operand.vmem [shape: f32[2,16,32], index: 0, kind: input, shape index: {}]
  %s1 = inlined_call_operand.vmem [shape: bf16[2,16,16], index: 1, kind: input, shape index: {}]
  %s2 = inlined_call_operand.vmem [shape: f32[4,32,32], index: 2, kind: input, shape index: {}]
  %s3 = inlined_call_operand.vmem [shape: f32[4,32,32], index: 3, kind: input, shape index: {}]
  %s4 = inlined_call_operand.vmem [shape: f32[32,6], index: 4, kind: input, shape index: {}]
  %s5 = inlined_call_operand.vmem [shape: f32[32,6], index: 5, kind: input, shape index: {}]
  %s6 = inlined_call_operand.vmem [shape: f32[2,16,32], index: 6, kind: output, shape index: {0}]
  %s7 = inlined_call_operand.vmem [shape: f32[2,16,6], index: 7, kind: output, shape index: {1}]
  %8 = xla_tuple %s6, %s7
  %s9 = sld [smem:[#allocation0]]
  $region65: #{_lambda_.9} parent=0
    _
  %s11 = ssub.s32 1, %s9
  %s12 = scalar_select 0, %s11, %s9
  loop: start=0, step=1, limit=4
  $region2: #{_lambda_.9} parent=0 // loop_pre_header
    _
  $region3: #{_lambda_.9} parent=0 // loop_header
    %s14 = sphi 0, %s18
    %p15 = scmp.ge.s32.totalorder %s14, 4
    %s24 = sphi 0, %s26
    %s27 = sphi 0, %s24
    %s28 = sphi 0, %s27
    %s44 = sphi 0, %s28
    %s50 = sphi 0, %s52
    %s53 = sphi 0, %s50
    %s54 = sphi 0, %s53
    %s70 = sphi 0, %s54
    %s74 = sphi 0, %s74
    %s76 = sphi 0, %s74
    %s77 = sphi 0, %s76
    %s91 = sphi 0, %s77
    %s95 = sphi 0, %s95
    %s97 = sphi 0, %s95
    %s98 = sphi 0, %s97
    %s112 = sphi 0, %s98
    %s116 = sphi 0, %s116
    %s118 = sphi 0, %s116
    %s119 = sphi 0, %s118
    %s133 = sphi 0, %s119
    %s137 = sphi 0, %s137
    %s139 = sphi 0, %s137
    %s140 = sphi 0, %s139
    %s154 = sphi 0, %s140
    %s160 = sphi 0, %s162
    %s163 = sphi 0, %s160
    %s164 = sphi 0, %s163
    %s180 = sphi 0, %s164
    %s186 = sphi 0, %s188
    %s189 = sphi 0, %s186
    %s190 = sphi 0, %s189
    %s206 = sphi 0, %s190
  $region4: #{_lambda_.9} parent=0 // loop_header_branch
    %17 = sbr.rel (%p15) target = $region8
  $region5: #{_lambda_.9} parent=0 // loop_body
    %s19 = ssub.s32 %s14, 1
    %s20 = ssub.s32 %s14, 2
    %s21 = sadd.s32 %s14, 1
    %s22 = ssub.s32 %s14, %s21
    %p23 = scmp.eq.s32.totalorder %s22, 0
    %s25 = sadd.s32 %s24, 1
    %s26 = scalar_select %p23, %s24, %s25
    %p29 = pneg %p23
    %p30 = scmp.eq.s32.totalorder %s14, 1
    %p31 = por %p29, %p30
    %p32 = scmp.ne.s32.totalorder %s24, %s27
    %p33 = scmp.eq.s32.totalorder %s14, 0
    %p34 = por %p32, %p33
    %p35 = scmp.ne.s32.totalorder %s24, %s27
    %p36 = scmp.eq.s32.totalorder %s19, 1
    %p37 = por %p35, %p36
    %p38 = scmp.ne.s32.totalorder %s27, %s28
    %p39 = scmp.eq.s32.totalorder %s19, 0
    %p40 = por %p38, %p39
    %p41 = scmp.ne.s32.totalorder %s27, %s28
    %p42 = scmp.eq.s32.totalorder %s20, 1
    %p43 = por %p41, %p42
    %p45 = scmp.ne.s32.totalorder %s28, %s44
    %p46 = scmp.eq.s32.totalorder %s20, 0
    %p47 = por %p45, %p46
    %s48 = ssub.s32 %s14, %s21
    %p49 = scmp.eq.s32.totalorder %s48, 0
    %s51 = sadd.s32 %s50, 1
    %s52 = scalar_select %p49, %s50, %s51
    %p55 = pneg %p49
    %p56 = scmp.eq.s32.totalorder %s14, 1
    %p57 = por %p55, %p56
    %p58 = scmp.ne.s32.totalorder %s50, %s53
    %p59 = scmp.eq.s32.totalorder %s14, 0
    %p60 = por %p58, %p59
    %p61 = scmp.ne.s32.totalorder %s50, %s53
    %p62 = scmp.eq.s32.totalorder %s19, 1
    %p63 = por %p61, %p62
    %p64 = scmp.ne.s32.totalorder %s53, %s54
    %p65 = scmp.eq.s32.totalorder %s19, 0
    %p66 = por %p64, %p65
    %p67 = scmp.ne.s32.totalorder %s53, %s54
    %p68 = scmp.eq.s32.totalorder %s20, 1
    %p69 = por %p67, %p68
    %p71 = scmp.ne.s32.totalorder %s54, %s70
    %p72 = scmp.eq.s32.totalorder %s20, 0
    %p73 = por %p71, %p72
    %s75 = sadd.s32 %s74, 1
    %p78 = scmp.eq.s32.totalorder %s14, 1
    %p79 = scmp.ne.s32.totalorder %s74, %s76
    %p80 = scmp.eq.s32.totalorder %s14, 0
    %p81 = por %p79, %p80
    %p82 = scmp.ne.s32.totalorder %s74, %s76
    %p83 = scmp.eq.s32.totalorder %s19, 1
    %p84 = por %p82, %p83
    %p85 = scmp.ne.s32.totalorder %s76, %s77
    %p86 = scmp.eq.s32.totalorder %s19, 0
    %p87 = por %p85, %p86
    %p88 = scmp.ne.s32.totalorder %s76, %s77
    %p89 = scmp.eq.s32.totalorder %s20, 1
    %p90 = por %p88, %p89
    %p92 = scmp.ne.s32.totalorder %s77, %s91
    %p93 = scmp.eq.s32.totalorder %s20, 0
    %p94 = por %p92, %p93
    %s96 = sadd.s32 %s95, 1
    %p99 = scmp.eq.s32.totalorder %s14, 1
    %p100 = scmp.ne.s32.totalorder %s95, %s97
    %p101 = scmp.eq.s32.totalorder %s14, 0
    %p102 = por %p100, %p101
    %p103 = scmp.ne.s32.totalorder %s95, %s97
    %p104 = scmp.eq.s32.totalorder %s19, 1
    %p105 = por %p103, %p104
    %p106 = scmp.ne.s32.totalorder %s97, %s98
    %p107 = scmp.eq.s32.totalorder %s19, 0
    %p108 = por %p106, %p107
    %p109 = scmp.ne.s32.totalorder %s97, %s98
    %p110 = scmp.eq.s32.totalorder %s20, 1
    %p111 = por %p109, %p110
    %p113 = scmp.ne.s32.totalorder %s98, %s112
    %p114 = scmp.eq.s32.totalorder %s20, 0
    %p115 = por %p113, %p114
    %s117 = sadd.s32 %s116, 1
    %p120 = scmp.eq.s32.totalorder %s14, 1
    %p121 = scmp.ne.s32.totalorder %s116, %s118
    %p122 = scmp.eq.s32.totalorder %s14, 0
    %p123 = por %p121, %p122
    %p124 = scmp.ne.s32.totalorder %s116, %s118
    %p125 = scmp.eq.s32.totalorder %s19, 1
    %p126 = por %p124, %p125
    %p127 = scmp.ne.s32.totalorder %s118, %s119
    %p128 = scmp.eq.s32.totalorder %s19, 0
    %p129 = por %p127, %p128
    %p130 = scmp.ne.s32.totalorder %s118, %s119
    %p131 = scmp.eq.s32.totalorder %s20, 1
    %p132 = por %p130, %p131
    %p134 = scmp.ne.s32.totalorder %s119, %s133
    %p135 = scmp.eq.s32.totalorder %s20, 0
    %p136 = por %p134, %p135
    %s138 = sadd.s32 %s137, 1
    %p141 = scmp.eq.s32.totalorder %s14, 1
    %p142 = scmp.ne.s32.totalorder %s137, %s139
    %p143 = scmp.eq.s32.totalorder %s14, 0
    %p144 = por %p142, %p143
    %p145 = scmp.ne.s32.totalorder %s137, %s139
    %p146 = scmp.eq.s32.totalorder %s19, 1
    %p147 = por %p145, %p146
    %p148 = scmp.ne.s32.totalorder %s139, %s140
    %p149 = scmp.eq.s32.totalorder %s19, 0
    %p150 = por %p148, %p149
    %p151 = scmp.ne.s32.totalorder %s139, %s140
    %p152 = scmp.eq.s32.totalorder %s20, 1
    %p153 = por %p151, %p152
    %p155 = scmp.ne.s32.totalorder %s140, %s154
    %p156 = scmp.eq.s32.totalorder %s20, 0
    %p157 = por %p155, %p156
    %s158 = ssub.s32 %s14, %s21
    %p159 = scmp.eq.s32.totalorder %s158, 0
    %s161 = sadd.s32 %s160, 1
    %s162 = scalar_select %p159, %s160, %s161
    %p165 = pneg %p159
    %p166 = scmp.eq.s32.totalorder %s14, 1
    %p167 = por %p165, %p166
    %p168 = scmp.ne.s32.totalorder %s160, %s163
    %p169 = scmp.eq.s32.totalorder %s14, 0
    %p170 = por %p168, %p169
    %p171 = scmp.ne.s32.totalorder %s160, %s163
    %p172 = scmp.eq.s32.totalorder %s19, 1
    %p173 = por %p171, %p172
    %p174 = scmp.ne.s32.totalorder %s163, %s164
    %p175 = scmp.eq.s32.totalorder %s19, 0
    %p176 = por %p174, %p175
    %p177 = scmp.ne.s32.totalorder %s163, %s164
    %p178 = scmp.eq.s32.totalorder %s20, 1
    %p179 = por %p177, %p178
    %p181 = scmp.ne.s32.totalorder %s164, %s180
    %p182 = scmp.eq.s32.totalorder %s20, 0
    %p183 = por %p181, %p182
    %s184 = ssub.s32 %s14, %s21
    %p185 = scmp.eq.s32.totalorder %s184, 0
    %s187 = sadd.s32 %s186, 1
    %s188 = scalar_select %p185, %s186, %s187
    %p191 = pneg %p185
    %p192 = scmp.eq.s32.totalorder %s14, 1
    %p193 = por %p191, %p192
    %p194 = scmp.ne.s32.totalorder %s186, %s189
    %p195 = scmp.eq.s32.totalorder %s14, 0
    %p196 = por %p194, %p195
    %p197 = scmp.ne.s32.totalorder %s186, %s189
    %p198 = scmp.eq.s32.totalorder %s19, 1
    %p199 = por %p197, %p198
    %p200 = scmp.ne.s32.totalorder %s189, %s190
    %p201 = scmp.eq.s32.totalorder %s19, 0
    %p202 = por %p200, %p201
    %p203 = scmp.ne.s32.totalorder %s189, %s190
    %p204 = scmp.eq.s32.totalorder %s20, 1
    %p205 = por %p203, %p204
    %p207 = scmp.ne.s32.totalorder %s190, %s206
    %p208 = scmp.eq.s32.totalorder %s20, 0
    %p209 = por %p207, %p208
    %p210 = scmp.le.s32.totalorder 1, %s14
    %p211 = scmp.lt.s32.totalorder %s14, 3
    %p212 = pnand %p210, %p211
    %p213 = pneg %p212
    // Predicated region
    $region9: #{_lambda_.9} parent=5 // pred_check
      _
    $region10: #{_lambda_.9} parent=5 // pred_check_branch
      %215 = sbr.rel (%p212) target = $region12
    $region11: #{_lambda_.9} parent=5 // pred_region
      %s216 = ssub.s32 %s14, 1
      // Predicated region
      $region13: #{_lambda_.9} parent=11 // pred_check
        %p217 = pneg %p87
      $region14: #{_lambda_.9} parent=11 // pred_check_branch
        %219 = sbr.rel (%p217) target = $region16
      $region15: #{_lambda_.9} parent=11 // pred_region
        _
      $region16: #{_lambda_.9} parent=11 // pred_fallthru
        _
      // Predicated region
      $region17: #{_lambda_.9} parent=11 // pred_check
        %p220 = pneg %p108
      $region18: #{_lambda_.9} parent=11 // pred_check_branch
        %222 = sbr.rel (%p220) target = $region20
      $region19: #{_lambda_.9} parent=11 // pred_region
        _
      $region20: #{_lambda_.9} parent=11 // pred_fallthru
        _
      // Predicated region
      $region21: #{_lambda_.9} parent=11 // pred_check
        %p223 = pneg %p129
      $region22: #{_lambda_.9} parent=11 // pred_check_branch
        %225 = sbr.rel (%p223) target = $region24
      $region23: #{_lambda_.9} parent=11 // pred_region
        _
      $region24: #{_lambda_.9} parent=11 // pred_fallthru
        _
      // Predicated region
      $region25: #{_lambda_.9} parent=11 // pred_check
        %p226 = pneg %p150
      $region26: #{_lambda_.9} parent=11 // pred_check_branch
        %228 = sbr.rel (%p226) target = $region28
      $region27: #{_lambda_.9} parent=11 // pred_region
        _
      $region28: #{_lambda_.9} parent=11 // pred_fallthru
        _
    $region12: #{_lambda_.9} parent=5 // pred_fallthru
      _
    %p229 = scmp.lt.s32.totalorder %s14, 2
    // Predicated region
    $region29: #{_lambda_.9} parent=5 // pred_check
      %p230 = pneg %p229
    $region30: #{_lambda_.9} parent=5 // pred_check_branch
      %232 = sbr.rel (%p230) target = $region32
    $region31: #{_lambda_.9} parent=5 // pred_region
      // Predicated region
      $region33: #{_lambda_.9} parent=31 // pred_check
        %p233 = pneg %p34
      $region34: #{_lambda_.9} parent=31 // pred_check_branch
        %235 = sbr.rel (%p233) target = $region36
      $region35: #{_lambda_.9} parent=31 // pred_region
        %p236 = scmp.lt.s32.totalorder %s14, 1
        %s237 = scalar_select %p236, %s14, 1
        %s238 = smul.addr %s237, 2
        %s239 = smul.addr %s238, 8
        %s240 = scalar_lea.vmem %s0, %s239
      $region36: #{_lambda_.9} parent=31 // pred_fallthru
        _
      // Predicated region
      $region37: #{_lambda_.9} parent=31 // pred_check
        %p241 = pneg %p60
      $region38: #{_lambda_.9} parent=31 // pred_check_branch
        %243 = sbr.rel (%p241) target = $region40
      $region39: #{_lambda_.9} parent=31 // pred_region
        %p244 = scmp.lt.s32.totalorder %s14, 1
        %s245 = scalar_select %p244, %s14, 1
        %s246 = smul.addr %s245, 2
        %s247 = smul.addr %s246, 4
        %s248 = scalar_lea.vmem %s1, %s247
      $region40: #{_lambda_.9} parent=31 // pred_fallthru
        _
    $region32: #{_lambda_.9} parent=5 // pred_fallthru
      _
    %p249 = scmp.le.s32.totalorder 1, %s14
    %p250 = scmp.lt.s32.totalorder %s14, 3
    %p251 = pnand %p249, %p250
    %p252 = pneg %p251
    // Predicated region
    $region41: #{_lambda_.9} parent=5 // pred_check
      _
    $region42: #{_lambda_.9} parent=5 // pred_check_branch
      %254 = sbr.rel (%p251) target = $region44
    $region43: #{_lambda_.9} parent=5 // pred_region
      %s255 = ssub.s32 %s14, 1
      %p256 = scmp.lt.s32.totalorder %s19, 1
      %s257 = scalar_select %p256, %s19, 1
      %s258 = smul.addr %s257, 2
      %s259 = smul.addr %s258, 8
      %s260 = scalar_lea.vmem %s0, %s259
      %p261 = pneg %p40
      %p262 = pneg %p37
      %p263 = scmp.lt.s32.totalorder %s19, 1
      %s264 = scalar_select %p263, %s19, 1
      %s265 = smul.addr %s264, 2
      %s266 = smul.addr %s265, 4
      %s267 = scalar_lea.vmem %s1, %s266
      %p268 = pneg %p66
      %p269 = pneg %p63
      %p270 = pneg %p87
      %p271 = pneg %p84
      %p272 = pneg %p108
      %p273 = pneg %p105
      %p274 = pneg %p129
      %p275 = pneg %p126
      %p276 = pneg %p150
      %p277 = pneg %p147
      %p278 = pneg %p176
      %p279 = pneg %p173
      %p280 = scmp.lt.s32.totalorder %s19, 1
      %s281 = scalar_select %p280, %s19, 1
      %s282 = smul.addr %s281, 2
      %s283 = smul.addr %s282, 8
      %s284 = scalar_lea.vmem %s6, %s283
      %p285 = pneg %p202
      %p286 = pneg %p199
      %p287 = scmp.lt.s32.totalorder %s19, 1
      %s288 = scalar_select %p287, %s19, 1
      %s289 = smul.addr %s288, 2
      %s290 = smul.addr %s289, 8
      %s291 = scalar_lea.vmem %s7, %s290
      %p292 = scmp.lt.s32.totalorder %s19, 1
      %s293 = scalar_select %p292, %s19, 1
      %s294 = smul.addr %s293, 2
      %s295 = smul.addr %s294, 8
      %s296 = scalar_lea.vmem %s0, %s295
      %p297 = scmp.lt.s32.totalorder %s19, 1
      %s298 = scalar_select %p297, %s19, 1
      %s299 = smul.addr %s298, 2
      %s300 = smul.addr %s299, 4
      %s301 = scalar_lea.vmem %s1, %s300
      %p302 = scmp.lt.s32.totalorder %s19, 1
      %s303 = scalar_select %p302, %s19, 1
      %s304 = smul.addr %s303, 2
      %s305 = smul.addr %s304, 8
      %s306 = scalar_lea.vmem %s6, %s305
      %p307 = scmp.lt.s32.totalorder %s19, 1
      %s308 = scalar_select %p307, %s19, 1
      %s309 = smul.addr %s308, 2
      %s310 = smul.addr %s309, 8
      %s311 = scalar_lea.vmem %s7, %s310
      %v313 = vld [vmem:[%s301] sm:$0xf]
      %v314 = vld [vmem:[%s301 + $0x4] sm:$0xf]
      %v315 = vunpack.c.l.bf16 %v313
      %v316 = vunpack.c.l.bf16 %v314
      %vm317 = vcmask 130048
      %v318 = vsel %vm317, %v315, 0.0
      %319 = vadd.xlane.f32.xlu0 %v318
      %v320 = vpop.xlane.xlu0 %319
      %v321 = vsel %vm317, %v316, 0.0
      %322 = vadd.xlane.f32.xlu0 %v321
      %v323 = vpop.xlane.xlu0 %322
      %v324 = vmax.f32 %v320, 1.0
      %v325 = vmax.f32 %v323, 1.0
      %v326 = vrsqrt.pop %v324
      %v327 = vmul.f32 %v326, %v324
      %v328 = vmul.f32 %v327, %v326
      %v329 = vmul.f32 0.5, %v328
      %v330 = vsub.f32 1.5, %v329
      %v331 = vmul.f32 %v326, %v330
      %vm332 = vweird.f32 %v324
      %vm333 = vweird.f32 %v326
      %vm334 = vmor %vm332, %vm333
      %v335 = vsel %vm334, %v326, %v331
      %v336 = vrsqrt.pop %v325
      %v337 = vmul.f32 %v336, %v325
      %v338 = vmul.f32 %v337, %v336
      %v339 = vmul.f32 0.5, %v338
      %v340 = vsub.f32 1.5, %v339
      %v341 = vmul.f32 %v336, %v340
      %vm342 = vweird.f32 %v325
      %vm343 = vweird.f32 %v336
      %vm344 = vmor %vm342, %vm343
      %v345 = vsel %vm344, %v336, %v341
      %v346 = vld [vmem:[%s296] sm:$0xff]
      %v347 = vld [vmem:[%s296 + $0x8] sm:$0xff]
      %v348 = vmax.f32 %v346, 0.0
      %v349 = vmax.f32 %v347, 0.0
      %v350 = vld [vmem:[%s2] sm:$0xff]
      %v351 = vld [vmem:[%s2 + $0x8] sm:$0xff]
      %v352 = vld [vmem:[%s2 + $0x10] sm:$0xff]
      %v353 = vld [vmem:[%s2 + $0x18] sm:$0xff]
      %vm354 = vcmask 261120
      %v356 = vsel %vm354, %v348, 0
      %v359 = vsel %vm354, %v349, 0
      %361 = vmatpush.msra.mxu0 0.0
      %362 = vmatpush.msra.mxu0 0.0
      %363 = vmatpush.msra.mxu0 0.0
      %364 = vmatpush.msra.mxu0 0.0
      %365 = vmatpush.msra.mxu0 0.0
      %366 = vmatpush.msra.mxu0 0.0
      %367 = vmatpush.msra.mxu0 0.0
      %368 = vmatpush.msra.mxu0 0.0
      %369 = vmatpush.msra.mxu0 0.0
      %370 = vmatpush.msra.mxu0 0.0
      %371 = vmatpush.msra.mxu0 0.0
      %372 = vmatpush.msra.mxu0 0.0
      %373 = vmatpush.msra.mxu0 %v353
      %374 = vmatpush.msra.mxu0 %v352
      %375 = vmatpush.msra.mxu0 %v351
      %376 = vmatpush.msra.mxu0 %v350
      %377 = vmatmul.f32.gmra.mxu0 %v356
      %v378 = vpop.f32.mrf.mxu0
      %v379 = vadd.f32 0.0, %v378
      %380 = vmatmul.f32.gmra.mxu0 %v359
      %v381 = vpop.f32.mrf.mxu0
      %v382 = vadd.f32 0.0, %v381
      %383 = vdwg.mxu0
      %v384 = vld [vmem:[%s3] sm:$0xff]
      %v385 = vld [vmem:[%s3 + $0x8] sm:$0xff]
      %v386 = vld [vmem:[%s3 + $0x10] sm:$0xff]
      %v387 = vld [vmem:[%s3 + $0x18] sm:$0xff]
      %v389 = vsel %vm354, %v346, 0
      %v392 = vsel %vm354, %v347, 0
      %394 = vmatpush.msra.mxu0 0.0
      %395 = vmatpush.msra.mxu0 0.0
      %396 = vmatpush.msra.mxu0 0.0
      %397 = vmatpush.msra.mxu0 0.0
      %398 = vmatpush.msra.mxu0 0.0
      %399 = vmatpush.msra.mxu0 0.0
      %400 = vmatpush.msra.mxu0 0.0
      %401 = vmatpush.msra.mxu0 0.0
      %402 = vmatpush.msra.mxu0 0.0
      %403 = vmatpush.msra.mxu0 0.0
      %404 = vmatpush.msra.mxu0 0.0
      %405 = vmatpush.msra.mxu0 0.0
      %406 = vmatpush.msra.mxu0 %v387
      %407 = vmatpush.msra.mxu0 %v386
      %408 = vmatpush.msra.mxu0 %v385
      %409 = vmatpush.msra.mxu0 %v384
      %410 = vmatmul.f32.gmra.mxu0 %v389
      %v411 = vpop.f32.mrf.mxu0
      %v412 = vadd.f32 0.0, %v411
      %413 = vmatmul.f32.gmra.mxu0 %v392
      %v414 = vpop.f32.mrf.mxu0
      %v415 = vadd.f32 0.0, %v414
      %416 = vdwg.mxu0
      %v417 = vmul.f32 %v335, %v412
      %v418 = vmul.f32 %v345, %v415
      %v419 = vpack.c.bf16 %v418, %v417
      %v422 = vunpack.c.l.b16 %v313
      %v423 = vunpack.c.l.b16 %v314
      %v424 = vpack.c.b16 %v423, %v422
      %v426 = vsel %vm317, %v424, 0
      %428 = vmatpush.bf16.msra.mxu0 0
      %429 = vmatpush.bf16.msra.mxu0 0
      %430 = vmatpush.bf16.msra.mxu0 0
      %431 = vmatpush.bf16.msra.mxu0 0
      %432 = vmatpush.bf16.msra.mxu0 0
      %433 = vmatpush.bf16.msra.mxu0 0
      %434 = vmatpush.bf16.msra.mxu0 0
      %435 = vmatpush.bf16.msra.mxu0 %v419
      %436 = vmatmul.bf16.gmra.mxu0 %v426
      %v437 = vpop.f32.mrf.mxu0
      %v438 = vadd.f32 0.0, %v437
      %v439 = vpop.f32.mrf.mxu0
      %v440 = vadd.f32 0.0, %v439
      %441 = vdwg.mxu0
      %v442 = vmul.f32 %v335, %v438
      %v443 = vmul.f32 %v345, %v440
      %v444 = vmul.f32 %v442, 0.2
      %v445 = vmul.f32 %v443, 0.2
      %v446 = vmul.f32 %v379, 0.8
      %v447 = vmul.f32 %v382, 0.8
      %v448 = vadd.f32 %v444, %v446
      %v449 = vadd.f32 %v445, %v447
      %v450 = vadd.f32 %v448, %v346
      %v451 = vadd.f32 %v449, %v347
      %v452 = vmax.f32 %v450, 0.0
      %v453 = vmax.f32 %v451, 0.0
      %s454 = scalar_lea.vmem %s2, 32
      %v455 = vld [vmem:[%s454] sm:$0xff]
      %v456 = vld [vmem:[%s454 + $0x8] sm:$0xff]
      %v457 = vld [vmem:[%s454 + $0x10] sm:$0xff]
      %v458 = vld [vmem:[%s454 + $0x18] sm:$0xff]
      %v460 = vsel %vm354, %v452, 0
      %v463 = vsel %vm354, %v453, 0
      %465 = vmatpush.msra.mxu0 0.0
      %466 = vmatpush.msra.mxu0 0.0
      %467 = vmatpush.msra.mxu0 0.0
      %468 = vmatpush.msra.mxu0 0.0
      %469 = vmatpush.msra.mxu0 0.0
      %470 = vmatpush.msra.mxu0 0.0
      %471 = vmatpush.msra.mxu0 0.0
      %472 = vmatpush.msra.mxu0 0.0
      %473 = vmatpush.msra.mxu0 0.0
      %474 = vmatpush.msra.mxu0 0.0
      %475 = vmatpush.msra.mxu0 0.0
      %476 = vmatpush.msra.mxu0 0.0
      %477 = vmatpush.msra.mxu0 %v458
      %478 = vmatpush.msra.mxu0 %v457
      %479 = vmatpush.msra.mxu0 %v456
      %480 = vmatpush.msra.mxu0 %v455
      %481 = vmatmul.f32.gmra.mxu0 %v460
      %v482 = vpop.f32.mrf.mxu0
      %v483 = vadd.f32 0.0, %v482
      %484 = vmatmul.f32.gmra.mxu0 %v463
      %v485 = vpop.f32.mrf.mxu0
      %v486 = vadd.f32 0.0, %v485
      %487 = vdwg.mxu0
      %s488 = scalar_lea.vmem %s3, 32
      %v489 = vld [vmem:[%s488] sm:$0xff]
      %v490 = vld [vmem:[%s488 + $0x8] sm:$0xff]
      %v491 = vld [vmem:[%s488 + $0x10] sm:$0xff]
      %v492 = vld [vmem:[%s488 + $0x18] sm:$0xff]
      %v494 = vsel %vm354, %v450, 0
      %v497 = vsel %vm354, %v451, 0
      %499 = vmatpush.msra.mxu0 0.0
      %500 = vmatpush.msra.mxu0 0.0
      %501 = vmatpush.msra.mxu0 0.0
      %502 = vmatpush.msra.mxu0 0.0
      %503 = vmatpush.msra.mxu0 0.0
      %504 = vmatpush.msra.mxu0 0.0
      %505 = vmatpush.msra.mxu0 0.0
      %506 = vmatpush.msra.mxu0 0.0
      %507 = vmatpush.msra.mxu0 0.0
      %508 = vmatpush.msra.mxu0 0.0
      %509 = vmatpush.msra.mxu0 0.0
      %510 = vmatpush.msra.mxu0 0.0
      %511 = vmatpush.msra.mxu0 %v492
      %512 = vmatpush.msra.mxu0 %v491
      %513 = vmatpush.msra.mxu0 %v490
      %514 = vmatpush.msra.mxu0 %v489
      %515 = vmatmul.f32.gmra.mxu0 %v494
      %v516 = vpop.f32.mrf.mxu0
      %v517 = vadd.f32 0.0, %v516
      %518 = vmatmul.f32.gmra.mxu0 %v497
      %v519 = vpop.f32.mrf.mxu0
      %v520 = vadd.f32 0.0, %v519
      %521 = vdwg.mxu0
      %v522 = vmul.f32 %v335, %v517
      %v523 = vmul.f32 %v345, %v520
      %v524 = vpack.c.bf16 %v523, %v522
      %525 = vmatpush.bf16.msra.mxu0 0
      %526 = vmatpush.bf16.msra.mxu0 0
      %527 = vmatpush.bf16.msra.mxu0 0
      %528 = vmatpush.bf16.msra.mxu0 0
      %529 = vmatpush.bf16.msra.mxu0 0
      %530 = vmatpush.bf16.msra.mxu0 0
      %531 = vmatpush.bf16.msra.mxu0 0
      %532 = vmatpush.bf16.msra.mxu0 %v524
      %533 = vmatmul.bf16.gmra.mxu0 %v426
      %v534 = vpop.f32.mrf.mxu0
      %v535 = vadd.f32 0.0, %v534
      %v536 = vpop.f32.mrf.mxu0
      %v537 = vadd.f32 0.0, %v536
      %538 = vdwg.mxu0
      %v539 = vmul.f32 %v335, %v535
      %v540 = vmul.f32 %v345, %v537
      %v541 = vmul.f32 %v539, 0.2
      %v542 = vmul.f32 %v540, 0.2
      %v543 = vmul.f32 %v483, 0.8
      %v544 = vmul.f32 %v486, 0.8
      %v545 = vadd.f32 %v541, %v543
      %v546 = vadd.f32 %v542, %v544
      %v547 = vadd.f32 %v545, %v450
      %v548 = vadd.f32 %v546, %v451
      %v549 = vmax.f32 %v547, 0.0
      %v550 = vmax.f32 %v548, 0.0
      %s551 = scalar_lea.vmem %s2, 64
      %v552 = vld [vmem:[%s551] sm:$0xff]
      %v553 = vld [vmem:[%s551 + $0x8] sm:$0xff]
      %v554 = vld [vmem:[%s551 + $0x10] sm:$0xff]
      %v555 = vld [vmem:[%s551 + $0x18] sm:$0xff]
      %v557 = vsel %vm354, %v549, 0
      %v560 = vsel %vm354, %v550, 0
      %562 = vmatpush.msra.mxu0 0.0
      %563 = vmatpush.msra.mxu0 0.0
      %564 = vmatpush.msra.mxu0 0.0
      %565 = vmatpush.msra.mxu0 0.0
      %566 = vmatpush.msra.mxu0 0.0
      %567 = vmatpush.msra.mxu0 0.0
      %568 = vmatpush.msra.mxu0 0.0
      %569 = vmatpush.msra.mxu0 0.0
      %570 = vmatpush.msra.mxu0 0.0
      %571 = vmatpush.msra.mxu0 0.0
      %572 = vmatpush.msra.mxu0 0.0
      %573 = vmatpush.msra.mxu0 0.0
      %574 = vmatpush.msra.mxu0 %v555
      %575 = vmatpush.msra.mxu0 %v554
      %576 = vmatpush.msra.mxu0 %v553
      %577 = vmatpush.msra.mxu0 %v552
      %578 = vmatmul.f32.gmra.mxu0 %v557
      %v579 = vpop.f32.mrf.mxu0
      %v580 = vadd.f32 0.0, %v579
      %581 = vmatmul.f32.gmra.mxu0 %v560
      %v582 = vpop.f32.mrf.mxu0
      %v583 = vadd.f32 0.0, %v582
      %584 = vdwg.mxu0
      %s585 = scalar_lea.vmem %s3, 64
      %v586 = vld [vmem:[%s585] sm:$0xff]
      %v587 = vld [vmem:[%s585 + $0x8] sm:$0xff]
      %v588 = vld [vmem:[%s585 + $0x10] sm:$0xff]
      %v589 = vld [vmem:[%s585 + $0x18] sm:$0xff]
      %v591 = vsel %vm354, %v547, 0
      %v594 = vsel %vm354, %v548, 0
      %596 = vmatpush.msra.mxu0 0.0
      %597 = vmatpush.msra.mxu0 0.0
      %598 = vmatpush.msra.mxu0 0.0
      %599 = vmatpush.msra.mxu0 0.0
      %600 = vmatpush.msra.mxu0 0.0
      %601 = vmatpush.msra.mxu0 0.0
      %602 = vmatpush.msra.mxu0 0.0
      %603 = vmatpush.msra.mxu0 0.0
      %604 = vmatpush.msra.mxu0 0.0
      %605 = vmatpush.msra.mxu0 0.0
      %606 = vmatpush.msra.mxu0 0.0
      %607 = vmatpush.msra.mxu0 0.0
      %608 = vmatpush.msra.mxu0 %v589
      %609 = vmatpush.msra.mxu0 %v588
      %610 = vmatpush.msra.mxu0 %v587
      %611 = vmatpush.msra.mxu0 %v586
      %612 = vmatmul.f32.gmra.mxu0 %v591
      %v613 = vpop.f32.mrf.mxu0
      %v614 = vadd.f32 0.0, %v613
      %615 = vmatmul.f32.gmra.mxu0 %v594
      %v616 = vpop.f32.mrf.mxu0
      %v617 = vadd.f32 0.0, %v616
      %618 = vdwg.mxu0
      %v619 = vmul.f32 %v335, %v614
      %v620 = vmul.f32 %v345, %v617
      %v621 = vpack.c.bf16 %v620, %v619
      %622 = vmatpush.bf16.msra.mxu0 0
      %623 = vmatpush.bf16.msra.mxu0 0
      %624 = vmatpush.bf16.msra.mxu0 0
      %625 = vmatpush.bf16.msra.mxu0 0
      %626 = vmatpush.bf16.msra.mxu0 0
      %627 = vmatpush.bf16.msra.mxu0 0
      %628 = vmatpush.bf16.msra.mxu0 0
      %629 = vmatpush.bf16.msra.mxu0 %v621
      %630 = vmatmul.bf16.gmra.mxu0 %v426
      %v631 = vpop.f32.mrf.mxu0
      %v632 = vadd.f32 0.0, %v631
      %v633 = vpop.f32.mrf.mxu0
      %v634 = vadd.f32 0.0, %v633
      %635 = vdwg.mxu0
      %v636 = vmul.f32 %v335, %v632
      %v637 = vmul.f32 %v345, %v634
      %v638 = vmul.f32 %v636, 0.2
      %v639 = vmul.f32 %v637, 0.2
      %v640 = vmul.f32 %v580, 0.8
      %v641 = vmul.f32 %v583, 0.8
      %v642 = vadd.f32 %v638, %v640
      %v643 = vadd.f32 %v639, %v641
      %v644 = vadd.f32 %v642, %v547
      %v645 = vadd.f32 %v643, %v548
      %v646 = vmax.f32 %v644, 0.0
      %v647 = vmax.f32 %v645, 0.0
      %s648 = scalar_lea.vmem %s2, 96
      %v649 = vld [vmem:[%s648] sm:$0xff]
      %v650 = vld [vmem:[%s648 + $0x8] sm:$0xff]
      %v651 = vld [vmem:[%s648 + $0x10] sm:$0xff]
      %v652 = vld [vmem:[%s648 + $0x18] sm:$0xff]
      %v654 = vsel %vm354, %v646, 0
      %v657 = vsel %vm354, %v647, 0
      %659 = vmatpush.msra.mxu0 0.0
      %660 = vmatpush.msra.mxu0 0.0
      %661 = vmatpush.msra.mxu0 0.0
      %662 = vmatpush.msra.mxu0 0.0
      %663 = vmatpush.msra.mxu0 0.0
      %664 = vmatpush.msra.mxu0 0.0
      %665 = vmatpush.msra.mxu0 0.0
      %666 = vmatpush.msra.mxu0 0.0
      %667 = vmatpush.msra.mxu0 0.0
      %668 = vmatpush.msra.mxu0 0.0
      %669 = vmatpush.msra.mxu0 0.0
      %670 = vmatpush.msra.mxu0 0.0
      %671 = vmatpush.msra.mxu0 %v652
      %672 = vmatpush.msra.mxu0 %v651
      %673 = vmatpush.msra.mxu0 %v650
      %674 = vmatpush.msra.mxu0 %v649
      %675 = vmatmul.f32.gmra.mxu0 %v654
      %v676 = vpop.f32.mrf.mxu0
      %v677 = vadd.f32 0.0, %v676
      %678 = vmatmul.f32.gmra.mxu0 %v657
      %v679 = vpop.f32.mrf.mxu0
      %v680 = vadd.f32 0.0, %v679
      %681 = vdwg.mxu0
      %s682 = scalar_lea.vmem %s3, 96
      %v683 = vld [vmem:[%s682] sm:$0xff]
      %v684 = vld [vmem:[%s682 + $0x8] sm:$0xff]
      %v685 = vld [vmem:[%s682 + $0x10] sm:$0xff]
      %v686 = vld [vmem:[%s682 + $0x18] sm:$0xff]
      %v688 = vsel %vm354, %v644, 0
      %v691 = vsel %vm354, %v645, 0
      %693 = vmatpush.msra.mxu0 0.0
      %694 = vmatpush.msra.mxu0 0.0
      %695 = vmatpush.msra.mxu0 0.0
      %696 = vmatpush.msra.mxu0 0.0
      %697 = vmatpush.msra.mxu0 0.0
      %698 = vmatpush.msra.mxu0 0.0
      %699 = vmatpush.msra.mxu0 0.0
      %700 = vmatpush.msra.mxu0 0.0
      %701 = vmatpush.msra.mxu0 0.0
      %702 = vmatpush.msra.mxu0 0.0
      %703 = vmatpush.msra.mxu0 0.0
      %704 = vmatpush.msra.mxu0 0.0
      %705 = vmatpush.msra.mxu0 %v686
      %706 = vmatpush.msra.mxu0 %v685
      %707 = vmatpush.msra.mxu0 %v684
      %708 = vmatpush.msra.mxu0 %v683
      %709 = vmatmul.f32.gmra.mxu0 %v688
      %v710 = vpop.f32.mrf.mxu0
      %v711 = vadd.f32 0.0, %v710
      %712 = vmatmul.f32.gmra.mxu0 %v691
      %v713 = vpop.f32.mrf.mxu0
      %v714 = vadd.f32 0.0, %v713
      %715 = vdwg.mxu0
      %v716 = vmul.f32 %v335, %v711
      %v717 = vmul.f32 %v345, %v714
      %v718 = vpack.c.bf16 %v717, %v716
      %719 = vmatpush.bf16.msra.mxu0 0
      %720 = vmatpush.bf16.msra.mxu0 0
      %721 = vmatpush.bf16.msra.mxu0 0
      %722 = vmatpush.bf16.msra.mxu0 0
      %723 = vmatpush.bf16.msra.mxu0 0
      %724 = vmatpush.bf16.msra.mxu0 0
      %725 = vmatpush.bf16.msra.mxu0 0
      %726 = vmatpush.bf16.msra.mxu0 %v718
      %727 = vmatmul.bf16.gmra.mxu0 %v426
      %v728 = vpop.f32.mrf.mxu0
      %v729 = vadd.f32 0.0, %v728
      %v730 = vpop.f32.mrf.mxu0
      %v731 = vadd.f32 0.0, %v730
      %732 = vdwg.mxu0
      %v733 = vmul.f32 %v335, %v729
      %v734 = vmul.f32 %v345, %v731
      %v735 = vmul.f32 %v733, 0.2
      %v736 = vmul.f32 %v734, 0.2
      %v737 = vmul.f32 %v677, 0.8
      %v738 = vmul.f32 %v680, 0.8
      %v739 = vadd.f32 %v735, %v737
      %v740 = vadd.f32 %v736, %v738
      %v741 = vadd.f32 %v739, %v644
      %v742 = vadd.f32 %v740, %v645
      %743 = vst.msk [vmem:[%s306] sm:$0xff] %vm354, %v741
      %744 = vst.msk [vmem:[%s306 + $0x8] sm:$0xff] %vm354, %v742
      %v745 = vld [vmem:[%s4] sm:$0xff]
      %v746 = vld [vmem:[%s4 + $0x8] sm:$0xff]
      %v747 = vld [vmem:[%s4 + $0x10] sm:$0xff]
      %v748 = vld [vmem:[%s4 + $0x18] sm:$0xff]
      %v750 = vsel %vm354, %v741, 0
      %v753 = vsel %vm354, %v742, 0
      %755 = vmatpush.msra.mxu0 0.0
      %756 = vmatpush.msra.mxu0 0.0
      %757 = vmatpush.msra.mxu0 0.0
      %758 = vmatpush.msra.mxu0 0.0
      %759 = vmatpush.msra.mxu0 0.0
      %760 = vmatpush.msra.mxu0 0.0
      %761 = vmatpush.msra.mxu0 0.0
      %762 = vmatpush.msra.mxu0 0.0
      %763 = vmatpush.msra.mxu0 0.0
      %764 = vmatpush.msra.mxu0 0.0
      %765 = vmatpush.msra.mxu0 0.0
      %766 = vmatpush.msra.mxu0 0.0
      %767 = vmatpush.msra.mxu0 %v748
      %768 = vmatpush.msra.mxu0 %v747
      %769 = vmatpush.msra.mxu0 %v746
      %770 = vmatpush.msra.mxu0 %v745
      %771 = vmatmul.f32.gmra.mxu0 %v750
      %v772 = vpop.f32.mrf.mxu0
      %v773 = vadd.f32 0.0, %v772
      %774 = vmatmul.f32.gmra.mxu0 %v753
      %v775 = vpop.f32.mrf.mxu0
      %v776 = vadd.f32 0.0, %v775
      %777 = vdwg.mxu0
      %v778 = vld [vmem:[%s5] sm:$0xff]
      %v779 = vld [vmem:[%s5 + $0x8] sm:$0xff]
      %v780 = vld [vmem:[%s5 + $0x10] sm:$0xff]
      %v781 = vld [vmem:[%s5 + $0x18] sm:$0xff]
      %782 = vmatpush.msra.mxu0 0.0
      %783 = vmatpush.msra.mxu0 0.0
      %784 = vmatpush.msra.mxu0 0.0
      %785 = vmatpush.msra.mxu0 0.0
      %786 = vmatpush.msra.mxu0 0.0
      %787 = vmatpush.msra.mxu0 0.0
      %788 = vmatpush.msra.mxu0 0.0
      %789 = vmatpush.msra.mxu0 0.0
      %790 = vmatpush.msra.mxu0 0.0
      %791 = vmatpush.msra.mxu0 0.0
      %792 = vmatpush.msra.mxu0 0.0
      %793 = vmatpush.msra.mxu0 0.0
      %794 = vmatpush.msra.mxu0 %v781
      %795 = vmatpush.msra.mxu0 %v780
      %796 = vmatpush.msra.mxu0 %v779
      %797 = vmatpush.msra.mxu0 %v778
      %798 = vmatmul.f32.gmra.mxu0 %v750
      %v799 = vpop.f32.mrf.mxu0
      %v800 = vadd.f32 0.0, %v799
      %801 = vmatmul.f32.gmra.mxu0 %v753
      %v802 = vpop.f32.mrf.mxu0
      %v803 = vadd.f32 0.0, %v802
      %804 = vdwg.mxu0
      %v805 = vmul.f32 %v335, %v800
      %v806 = vmul.f32 %v345, %v803
      %v807 = vpack.c.bf16 %v806, %v805
      %808 = vmatpush.bf16.msra.mxu0 0
      %809 = vmatpush.bf16.msra.mxu0 0
      %810 = vmatpush.bf16.msra.mxu0 0
      %811 = vmatpush.bf16.msra.mxu0 0
      %812 = vmatpush.bf16.msra.mxu0 0
      %813 = vmatpush.bf16.msra.mxu0 0
      %814 = vmatpush.bf16.msra.mxu0 0
      %815 = vmatpush.bf16.msra.mxu0 %v807
      %816 = vmatmul.bf16.gmra.mxu0 %v426
      %v817 = vpop.f32.mrf.mxu0
      %v818 = vadd.f32 0.0, %v817
      %v819 = vpop.f32.mrf.mxu0
      %v820 = vadd.f32 0.0, %v819
      %821 = vdwg.mxu0
      %v822 = vmul.f32 %v335, %v818
      %v823 = vmul.f32 %v345, %v820
      %v824 = vmul.f32 %v773, 0.8
      %v825 = vmul.f32 %v776, 0.8
      %v826 = vmul.f32 %v822, 0.2
      %v827 = vmul.f32 %v823, 0.2
      %v828 = vadd.f32 %v824, %v826
      %v829 = vadd.f32 %v825, %v827
      %vm830 = vcmask 48128
      %831 = vst.msk [vmem:[%s311] sm:$0xff] %vm830, %v828
      %832 = vst.msk [vmem:[%s311 + $0x8] sm:$0xff] %vm830, %v829
      %p833 = scmp.lt.s32.totalorder %s19, 1
      %s834 = scalar_select %p833, %s19, 1
      %s835 = smul.addr %s834, 2
      %s836 = smul.addr %s835, 8
      %s837 = scalar_lea.vmem %s6, %s836
      %p838 = scmp.lt.s32.totalorder %s19, 1
      %s839 = scalar_select %p838, %s19, 1
      %s840 = smul.addr %s839, 2
      %s841 = smul.addr %s840, 8
      %s842 = scalar_lea.vmem %s7, %s841
      // Predicated region
      $region45: #{_lambda_.9} parent=43 // pred_check
        %p843 = pneg %p173
      $region46: #{_lambda_.9} parent=43 // pred_check_branch
        %845 = sbr.rel (%p843) target = $region48
      $region47: #{_lambda_.9} parent=43 // pred_region
        _
      $region48: #{_lambda_.9} parent=43 // pred_fallthru
        _
      // Predicated region
      $region49: #{_lambda_.9} parent=43 // pred_check
        %p846 = pneg %p199
      $region50: #{_lambda_.9} parent=43 // pred_check_branch
        %848 = sbr.rel (%p846) target = $region52
      $region51: #{_lambda_.9} parent=43 // pred_region
        _
      $region52: #{_lambda_.9} parent=43 // pred_fallthru
        _
    $region44: #{_lambda_.9} parent=5 // pred_fallthru
      _
    %p849 = scmp.le.s32.totalorder 2, %s14
    // Predicated region
    $region53: #{_lambda_.9} parent=5 // pred_check
      %p850 = pneg %p849
    $region54: #{_lambda_.9} parent=5 // pred_check_branch
      %852 = sbr.rel (%p850) target = $region56
    $region55: #{_lambda_.9} parent=5 // pred_region
      %s853 = ssub.s32 %s14, 2
      // Predicated region
      $region57: #{_lambda_.9} parent=55 // pred_check
        %p854 = pneg %p179
      $region58: #{_lambda_.9} parent=55 // pred_check_branch
        %856 = sbr.rel (%p854) target = $region60
      $region59: #{_lambda_.9} parent=55 // pred_region
        %p857 = scmp.lt.s32.totalorder %s20, 1
        %s858 = scalar_select %p857, %s20, 1
        %s859 = smul.addr %s858, 2
        %s860 = smul.addr %s859, 8
        %s861 = scalar_lea.vmem %s6, %s860
      $region60: #{_lambda_.9} parent=55 // pred_fallthru
        _
      // Predicated region
      $region61: #{_lambda_.9} parent=55 // pred_check
        %p862 = pneg %p205
      $region62: #{_lambda_.9} parent=55 // pred_check_branch
        %864 = sbr.rel (%p862) target = $region64
      $region63: #{_lambda_.9} parent=55 // pred_region
        %p865 = scmp.lt.s32.totalorder %s20, 1
        %s866 = scalar_select %p865, %s20, 1
        %s867 = smul.addr %s866, 2
        %s868 = smul.addr %s867, 8
        %s869 = scalar_lea.vmem %s7, %s868
      $region64: #{_lambda_.9} parent=55 // pred_fallthru
        _
    $region56: #{_lambda_.9} parent=5 // pred_fallthru
      _
  $region6: #{_lambda_.9} parent=0 // loop_footer
    %s18 = sadd.s32 1, %s14
  $region7: #{_lambda_.9} parent=0 // loop_footer_branch
    %13 = sbr.rel target = $region3
  $region8: #{_lambda_.9} parent=0 // loop_exit
    _

// kernel: _lambda_.10
$region0: #{_lambda_.10}
  #allocation0 [shape = 'u32[]', space=smem, size = 0x4, offset = 0x4, fixed_abs, tag = 'smem constant byte address 0x4 - core index']
  #allocation1 [shape = 'u32[72,128]{1,0:T(1,128)}', space=vmem, size = 0x9000, scoped, tag = 'internal scratch']
  %s0 = inlined_call_operand.vmem [shape: f32[2,32,3], index: 0, kind: input, shape index: {}]
  %s1 = inlined_call_operand.vmem [shape: f32[2,16,3], index: 1, kind: input, shape index: {}]
  %s2 = inlined_call_operand.vmem [shape: f32[2,1,16], index: 2, kind: input, shape index: {}]
  %s3 = inlined_call_operand.vmem [shape: f32[2,32,16], index: 3, kind: output, shape index: {}]
  %s4 = sld [smem:[#allocation0]]
  $region45: #{_lambda_.10} parent=0
    _
  %s6 = ssub.s32 1, %s4
  %s7 = scalar_select 0, %s6, %s4
  loop: start=0, step=1, limit=4
  $region2: #{_lambda_.10} parent=0 // loop_pre_header
    _
  $region3: #{_lambda_.10} parent=0 // loop_header
    %s9 = sphi 0, %s13
    %p10 = scmp.ge.s32.totalorder %s9, 4
    %s19 = sphi 0, %s21
    %s22 = sphi 0, %s19
    %s23 = sphi 0, %s22
    %s39 = sphi 0, %s23
    %s45 = sphi 0, %s47
    %s48 = sphi 0, %s45
    %s49 = sphi 0, %s48
    %s65 = sphi 0, %s49
    %s71 = sphi 0, %s73
    %s74 = sphi 0, %s71
    %s75 = sphi 0, %s74
    %s91 = sphi 0, %s75
    %s97 = sphi 0, %s99
    %s100 = sphi 0, %s97
    %s101 = sphi 0, %s100
    %s117 = sphi 0, %s101
  $region4: #{_lambda_.10} parent=0 // loop_header_branch
    %12 = sbr.rel (%p10) target = $region8
  $region5: #{_lambda_.10} parent=0 // loop_body
    %s14 = ssub.s32 %s9, 1
    %s15 = ssub.s32 %s9, 2
    %s16 = sadd.s32 %s9, 1
    %s17 = ssub.s32 %s9, %s16
    %p18 = scmp.eq.s32.totalorder %s17, 0
    %s20 = sadd.s32 %s19, 1
    %s21 = scalar_select %p18, %s19, %s20
    %p24 = pneg %p18
    %p25 = scmp.eq.s32.totalorder %s9, 1
    %p26 = por %p24, %p25
    %p27 = scmp.ne.s32.totalorder %s19, %s22
    %p28 = scmp.eq.s32.totalorder %s9, 0
    %p29 = por %p27, %p28
    %p30 = scmp.ne.s32.totalorder %s19, %s22
    %p31 = scmp.eq.s32.totalorder %s14, 1
    %p32 = por %p30, %p31
    %p33 = scmp.ne.s32.totalorder %s22, %s23
    %p34 = scmp.eq.s32.totalorder %s14, 0
    %p35 = por %p33, %p34
    %p36 = scmp.ne.s32.totalorder %s22, %s23
    %p37 = scmp.eq.s32.totalorder %s15, 1
    %p38 = por %p36, %p37
    %p40 = scmp.ne.s32.totalorder %s23, %s39
    %p41 = scmp.eq.s32.totalorder %s15, 0
    %p42 = por %p40, %p41
    %s43 = ssub.s32 %s9, %s16
    %p44 = scmp.eq.s32.totalorder %s43, 0
    %s46 = sadd.s32 %s45, 1
    %s47 = scalar_select %p44, %s45, %s46
    %p50 = pneg %p44
    %p51 = scmp.eq.s32.totalorder %s9, 1
    %p52 = por %p50, %p51
    %p53 = scmp.ne.s32.totalorder %s45, %s48
    %p54 = scmp.eq.s32.totalorder %s9, 0
    %p55 = por %p53, %p54
    %p56 = scmp.ne.s32.totalorder %s45, %s48
    %p57 = scmp.eq.s32.totalorder %s14, 1
    %p58 = por %p56, %p57
    %p59 = scmp.ne.s32.totalorder %s48, %s49
    %p60 = scmp.eq.s32.totalorder %s14, 0
    %p61 = por %p59, %p60
    %p62 = scmp.ne.s32.totalorder %s48, %s49
    %p63 = scmp.eq.s32.totalorder %s15, 1
    %p64 = por %p62, %p63
    %p66 = scmp.ne.s32.totalorder %s49, %s65
    %p67 = scmp.eq.s32.totalorder %s15, 0
    %p68 = por %p66, %p67
    %s69 = ssub.s32 %s9, %s16
    %p70 = scmp.eq.s32.totalorder %s69, 0
    %s72 = sadd.s32 %s71, 1
    %s73 = scalar_select %p70, %s71, %s72
    %p76 = pneg %p70
    %p77 = scmp.eq.s32.totalorder %s9, 1
    %p78 = por %p76, %p77
    %p79 = scmp.ne.s32.totalorder %s71, %s74
    %p80 = scmp.eq.s32.totalorder %s9, 0
    %p81 = por %p79, %p80
    %p82 = scmp.ne.s32.totalorder %s71, %s74
    %p83 = scmp.eq.s32.totalorder %s14, 1
    %p84 = por %p82, %p83
    %p85 = scmp.ne.s32.totalorder %s74, %s75
    %p86 = scmp.eq.s32.totalorder %s14, 0
    %p87 = por %p85, %p86
    %p88 = scmp.ne.s32.totalorder %s74, %s75
    %p89 = scmp.eq.s32.totalorder %s15, 1
    %p90 = por %p88, %p89
    %p92 = scmp.ne.s32.totalorder %s75, %s91
    %p93 = scmp.eq.s32.totalorder %s15, 0
    %p94 = por %p92, %p93
    %s95 = ssub.s32 %s9, %s16
    %p96 = scmp.eq.s32.totalorder %s95, 0
    %s98 = sadd.s32 %s97, 1
    %s99 = scalar_select %p96, %s97, %s98
    %p102 = pneg %p96
    %p103 = scmp.eq.s32.totalorder %s9, 1
    %p104 = por %p102, %p103
    %p105 = scmp.ne.s32.totalorder %s97, %s100
    %p106 = scmp.eq.s32.totalorder %s9, 0
    %p107 = por %p105, %p106
    %p108 = scmp.ne.s32.totalorder %s97, %s100
    %p109 = scmp.eq.s32.totalorder %s14, 1
    %p110 = por %p108, %p109
    %p111 = scmp.ne.s32.totalorder %s100, %s101
    %p112 = scmp.eq.s32.totalorder %s14, 0
    %p113 = por %p111, %p112
    %p114 = scmp.ne.s32.totalorder %s100, %s101
    %p115 = scmp.eq.s32.totalorder %s15, 1
    %p116 = por %p114, %p115
    %p118 = scmp.ne.s32.totalorder %s101, %s117
    %p119 = scmp.eq.s32.totalorder %s15, 0
    %p120 = por %p118, %p119
    %p121 = scmp.le.s32.totalorder 1, %s9
    %p122 = scmp.lt.s32.totalorder %s9, 3
    %p123 = pnand %p121, %p122
    %p124 = pneg %p123
    // Predicated region
    $region9: #{_lambda_.10} parent=5 // pred_check
      _
    $region10: #{_lambda_.10} parent=5 // pred_check_branch
      %126 = sbr.rel (%p123) target = $region12
    $region11: #{_lambda_.10} parent=5 // pred_region
      %s127 = ssub.s32 %s9, 1
    $region12: #{_lambda_.10} parent=5 // pred_fallthru
      _
    %p128 = scmp.lt.s32.totalorder %s9, 2
    // Predicated region
    $region13: #{_lambda_.10} parent=5 // pred_check
      %p129 = pneg %p128
    $region14: #{_lambda_.10} parent=5 // pred_check_branch
      %131 = sbr.rel (%p129) target = $region16
    $region15: #{_lambda_.10} parent=5 // pred_region
      // Predicated region
      $region17: #{_lambda_.10} parent=15 // pred_check
        %p132 = pneg %p29
      $region18: #{_lambda_.10} parent=15 // pred_check_branch
        %134 = sbr.rel (%p132) target = $region20
      $region19: #{_lambda_.10} parent=15 // pred_region
        %p135 = scmp.lt.s32.totalorder %s9, 1
        %s136 = scalar_select %p135, %s9, 1
        %s137 = smul.addr %s136, 4
        %s138 = smul.addr %s137, 8
        %s139 = scalar_lea.vmem %s0, %s138
      $region20: #{_lambda_.10} parent=15 // pred_fallthru
        _
      // Predicated region
      $region21: #{_lambda_.10} parent=15 // pred_check
        %p140 = pneg %p55
      $region22: #{_lambda_.10} parent=15 // pred_check_branch
        %142 = sbr.rel (%p140) target = $region24
      $region23: #{_lambda_.10} parent=15 // pred_region
        %p143 = scmp.lt.s32.totalorder %s9, 1
        %s144 = scalar_select %p143, %s9, 1
        %s145 = smul.addr %s144, 2
        %s146 = smul.addr %s145, 8
        %s147 = scalar_lea.vmem %s1, %s146
      $region24: #{_lambda_.10} parent=15 // pred_fallthru
        _
      // Predicated region
      $region25: #{_lambda_.10} parent=15 // pred_check
        %p148 = pneg %p81
      $region26: #{_lambda_.10} parent=15 // pred_check_branch
        %150 = sbr.rel (%p148) target = $region28
      $region27: #{_lambda_.10} parent=15 // pred_region
        %p151 = scmp.lt.s32.totalorder %s9, 1
        %s152 = scalar_select %p151, %s9, 1
        %s153 = scalar_lea.vmem %s2, %s152
      $region28: #{_lambda_.10} parent=15 // pred_fallthru
        _
    $region16: #{_lambda_.10} parent=5 // pred_fallthru
      _
    %p154 = scmp.le.s32.totalorder 1, %s9
    %p155 = scmp.lt.s32.totalorder %s9, 3
    %p156 = pnand %p154, %p155
    %p157 = pneg %p156
    // Predicated region
    $region29: #{_lambda_.10} parent=5 // pred_check
      _
    $region30: #{_lambda_.10} parent=5 // pred_check_branch
      %159 = sbr.rel (%p156) target = $region32
    $region31: #{_lambda_.10} parent=5 // pred_region
      %s160 = ssub.s32 %s9, 1
      %p161 = scmp.lt.s32.totalorder %s14, 1
      %s162 = scalar_select %p161, %s14, 1
      %s163 = smul.addr %s162, 4
      %s164 = smul.addr %s163, 8
      %s165 = scalar_lea.vmem %s0, %s164
      %p166 = pneg %p35
      %p167 = pneg %p32
      %p168 = scmp.lt.s32.totalorder %s14, 1
      %s169 = scalar_select %p168, %s14, 1
      %s170 = smul.addr %s169, 2
      %s171 = smul.addr %s170, 8
      %s172 = scalar_lea.vmem %s1, %s171
      %p173 = pneg %p61
      %p174 = pneg %p58
      %p175 = scmp.lt.s32.totalorder %s14, 1
      %s176 = scalar_select %p175, %s14, 1
      %s177 = scalar_lea.vmem %s2, %s176
      %p178 = pneg %p87
      %p179 = pneg %p84
      %p180 = pneg %p113
      %p181 = pneg %p110
      %p182 = scmp.lt.s32.totalorder %s14, 1
      %s183 = scalar_select %p182, %s14, 1
      %s184 = smul.addr %s183, 4
      %s185 = smul.addr %s184, 8
      %s186 = scalar_lea.vmem %s3, %s185
      %p187 = scmp.lt.s32.totalorder %s14, 1
      %s188 = scalar_select %p187, %s14, 1
      %s189 = smul.addr %s188, 4
      %s190 = smul.addr %s189, 8
      %s191 = scalar_lea.vmem %s0, %s190
      %p192 = scmp.lt.s32.totalorder %s14, 1
      %s193 = scalar_select %p192, %s14, 1
      %s194 = smul.addr %s193, 2
      %s195 = smul.addr %s194, 8
      %s196 = scalar_lea.vmem %s1, %s195
      %p197 = scmp.lt.s32.totalorder %s14, 1
      %s198 = scalar_select %p197, %s14, 1
      %s199 = scalar_lea.vmem %s2, %s198
      %p200 = scmp.lt.s32.totalorder %s14, 1
      %s201 = scalar_select %p200, %s14, 1
      %s202 = smul.addr %s201, 4
      %s203 = smul.addr %s202, 8
      %s204 = scalar_lea.vmem %s3, %s203
      %v205 = vld [vmem:[%s191] sm:$0xff]
      %v206 = vld [vmem:[%s191 + $0x8] sm:$0xff]
      %v207 = vld [vmem:[%s191 + $0x10] sm:$0xff]
      %v208 = vld [vmem:[%s191 + $0x18] sm:$0xff]
      %v209 = vld [vmem:[%s196] sm:$0xff]
      %v210 = vld [vmem:[%s196 + $0x8] sm:$0xff]
      %v211 = vld [vmem:[%s199] sm:$0x1]
      %vm212 = vcmask 23552
      %v214 = vsel %vm212, %v205, 0
      %v217 = vsel %vm212, %v206, 0
      %v220 = vsel %vm212, %v207, 0
      %v223 = vsel %vm212, %v208, 0
      %v226 = vsel %vm212, %v209, 0
      %v229 = vsel %vm212, %v210, 0
      %231 = vmatpush.xpose.msra.mxu0 0.0
      %232 = vmatpush.xpose.msra.mxu0 0.0
      %233 = vmatpush.xpose.msra.mxu0 0.0
      %234 = vmatpush.xpose.msra.mxu0 0.0
      %235 = vmatpush.xpose.msra.mxu0 0.0
      %236 = vmatpush.xpose.msra.mxu0 0.0
      %237 = vmatpush.xpose.msra.mxu0 0.0
      %238 = vmatpush.xpose.msra.mxu0 0.0
      %239 = vmatpush.xpose.msra.mxu0 0.0
      %240 = vmatpush.xpose.msra.mxu0 0.0
      %241 = vmatpush.xpose.msra.mxu0 0.0
      %242 = vmatpush.xpose.msra.mxu0 0.0
      %243 = vmatpush.xpose.msra.mxu0 0.0
      %244 = vmatpush.xpose.msra.mxu0 0.0
      %245 = vmatpush.xpose.msra.mxu0 %v229
      %246 = vmatpush.xpose.msra.mxu0 %v226
      %247 = vmatmul.f32.gmra.mxu0 %v214
      %v248 = vpop.f32.mrf.mxu0
      %v249 = vadd.f32 0.0, %v248
      %250 = vmatmul.f32.gmra.mxu0 %v217
      %v251 = vpop.f32.mrf.mxu0
      %v252 = vadd.f32 0.0, %v251
      %253 = vmatmul.f32.gmra.mxu0 %v220
      %v254 = vpop.f32.mrf.mxu0
      %v255 = vadd.f32 0.0, %v254
      %256 = vmatmul.f32.gmra.mxu0 %v223
      %v257 = vpop.f32.mrf.mxu0
      %v258 = vadd.f32 0.0, %v257
      %259 = vdwg.mxu0
      %v260 = vmul.f32 %v249, 2.0
      %v261 = vmul.f32 %v252, 2.0
      %v262 = vmul.f32 %v255, 2.0
      %v263 = vmul.f32 %v258, 2.0
      %v265 = vperm.slane %v211, 0
      %v267 = vsub.f32 %v260, %v265
      %v268 = vsub.f32 %v261, %v265
      %v269 = vsub.f32 %v262, %v265
      %v270 = vsub.f32 %v263, %v265
      %vm271 = vcmask 130048
      %272 = vst.msk [vmem:[%s204] sm:$0xff] %vm271, %v267
      %273 = vst.msk [vmem:[%s204 + $0x8] sm:$0xff] %vm271, %v268
      %274 = vst.msk [vmem:[%s204 + $0x10] sm:$0xff] %vm271, %v269
      %275 = vst.msk [vmem:[%s204 + $0x18] sm:$0xff] %vm271, %v270
      %p276 = scmp.lt.s32.totalorder %s14, 1
      %s277 = scalar_select %p276, %s14, 1
      %s278 = smul.addr %s277, 4
      %s279 = smul.addr %s278, 8
      %s280 = scalar_lea.vmem %s3, %s279
      // Predicated region
      $region33: #{_lambda_.10} parent=31 // pred_check
        %p281 = pneg %p110
      $region34: #{_lambda_.10} parent=31 // pred_check_branch
        %283 = sbr.rel (%p281) target = $region36
      $region35: #{_lambda_.10} parent=31 // pred_region
        _
      $region36: #{_lambda_.10} parent=31 // pred_fallthru
        _
    $region32: #{_lambda_.10} parent=5 // pred_fallthru
      _
    %p284 = scmp.le.s32.totalorder 2, %s9
    // Predicated region
    $region37: #{_lambda_.10} parent=5 // pred_check
      %p285 = pneg %p284
    $region38: #{_lambda_.10} parent=5 // pred_check_branch
      %287 = sbr.rel (%p285) target = $region40
    $region39: #{_lambda_.10} parent=5 // pred_region
      %s288 = ssub.s32 %s9, 2
      // Predicated region
      $region41: #{_lambda_.10} parent=39 // pred_check
        %p289 = pneg %p116
      $region42: #{_lambda_.10} parent=39 // pred_check_branch
        %291 = sbr.rel (%p289) target = $region44
      $region43: #{_lambda_.10} parent=39 // pred_region
        %p292 = scmp.lt.s32.totalorder %s15, 1
        %s293 = scalar_select %p292, %s15, 1
        %s294 = smul.addr %s293, 4
        %s295 = smul.addr %s294, 8
        %s296 = scalar_lea.vmem %s3, %s295
      $region44: #{_lambda_.10} parent=39 // pred_fallthru
        _
    $region40: #{_lambda_.10} parent=5 // pred_fallthru
      _
  $region6: #{_lambda_.10} parent=0 // loop_footer
    %s13 = sadd.s32 1, %s9
  $region7: #{_lambda_.10} parent=0 // loop_footer_branch
    %8 = sbr.rel target = $region3
  $region8: #{_lambda_.10} parent=0 // loop_exit
    _

// kernel: _lambda_.11
$region0: #{_lambda_.11}
  #allocation0 [shape = 'u32[]', space=smem, size = 0x4, offset = 0x4, fixed_abs, tag = 'smem constant byte address 0x4 - core index']
  #allocation1 [shape = 'u32[72,128]{1,0:T(1,128)}', space=vmem, size = 0x9000, scoped, tag = 'internal scratch']
  %s0 = inlined_call_operand.vmem [shape: f32[2,32,3], index: 0, kind: input, shape index: {}, may-alias: {0,1}]
  %s1 = inlined_call_operand.vmem [shape: f32[2,32,3], index: 1, kind: input, shape index: {}, may-alias: {0,1}]
  %s2 = inlined_call_operand.vmem [shape: f32[2,1,32], index: 2, kind: input, shape index: {}]
  %s3 = inlined_call_operand.vmem [shape: f32[2,32,32], index: 3, kind: output, shape index: {}]
  %s4 = sld [smem:[#allocation0]]
  $region45: #{_lambda_.11} parent=0
    _
  %s6 = ssub.s32 1, %s4
  %s7 = scalar_select 0, %s6, %s4
  loop: start=0, step=1, limit=4
  $region2: #{_lambda_.11} parent=0 // loop_pre_header
    _
  $region3: #{_lambda_.11} parent=0 // loop_header
    %s9 = sphi 0, %s13
    %p10 = scmp.ge.s32.totalorder %s9, 4
    %s19 = sphi 0, %s21
    %s22 = sphi 0, %s19
    %s23 = sphi 0, %s22
    %s39 = sphi 0, %s23
    %s45 = sphi 0, %s47
    %s48 = sphi 0, %s45
    %s49 = sphi 0, %s48
    %s65 = sphi 0, %s49
    %s71 = sphi 0, %s73
    %s74 = sphi 0, %s71
    %s75 = sphi 0, %s74
    %s91 = sphi 0, %s75
    %s97 = sphi 0, %s99
    %s100 = sphi 0, %s97
    %s101 = sphi 0, %s100
    %s117 = sphi 0, %s101
  $region4: #{_lambda_.11} parent=0 // loop_header_branch
    %12 = sbr.rel (%p10) target = $region8
  $region5: #{_lambda_.11} parent=0 // loop_body
    %s14 = ssub.s32 %s9, 1
    %s15 = ssub.s32 %s9, 2
    %s16 = sadd.s32 %s9, 1
    %s17 = ssub.s32 %s9, %s16
    %p18 = scmp.eq.s32.totalorder %s17, 0
    %s20 = sadd.s32 %s19, 1
    %s21 = scalar_select %p18, %s19, %s20
    %p24 = pneg %p18
    %p25 = scmp.eq.s32.totalorder %s9, 1
    %p26 = por %p24, %p25
    %p27 = scmp.ne.s32.totalorder %s19, %s22
    %p28 = scmp.eq.s32.totalorder %s9, 0
    %p29 = por %p27, %p28
    %p30 = scmp.ne.s32.totalorder %s19, %s22
    %p31 = scmp.eq.s32.totalorder %s14, 1
    %p32 = por %p30, %p31
    %p33 = scmp.ne.s32.totalorder %s22, %s23
    %p34 = scmp.eq.s32.totalorder %s14, 0
    %p35 = por %p33, %p34
    %p36 = scmp.ne.s32.totalorder %s22, %s23
    %p37 = scmp.eq.s32.totalorder %s15, 1
    %p38 = por %p36, %p37
    %p40 = scmp.ne.s32.totalorder %s23, %s39
    %p41 = scmp.eq.s32.totalorder %s15, 0
    %p42 = por %p40, %p41
    %s43 = ssub.s32 %s9, %s16
    %p44 = scmp.eq.s32.totalorder %s43, 0
    %s46 = sadd.s32 %s45, 1
    %s47 = scalar_select %p44, %s45, %s46
    %p50 = pneg %p44
    %p51 = scmp.eq.s32.totalorder %s9, 1
    %p52 = por %p50, %p51
    %p53 = scmp.ne.s32.totalorder %s45, %s48
    %p54 = scmp.eq.s32.totalorder %s9, 0
    %p55 = por %p53, %p54
    %p56 = scmp.ne.s32.totalorder %s45, %s48
    %p57 = scmp.eq.s32.totalorder %s14, 1
    %p58 = por %p56, %p57
    %p59 = scmp.ne.s32.totalorder %s48, %s49
    %p60 = scmp.eq.s32.totalorder %s14, 0
    %p61 = por %p59, %p60
    %p62 = scmp.ne.s32.totalorder %s48, %s49
    %p63 = scmp.eq.s32.totalorder %s15, 1
    %p64 = por %p62, %p63
    %p66 = scmp.ne.s32.totalorder %s49, %s65
    %p67 = scmp.eq.s32.totalorder %s15, 0
    %p68 = por %p66, %p67
    %s69 = ssub.s32 %s9, %s16
    %p70 = scmp.eq.s32.totalorder %s69, 0
    %s72 = sadd.s32 %s71, 1
    %s73 = scalar_select %p70, %s71, %s72
    %p76 = pneg %p70
    %p77 = scmp.eq.s32.totalorder %s9, 1
    %p78 = por %p76, %p77
    %p79 = scmp.ne.s32.totalorder %s71, %s74
    %p80 = scmp.eq.s32.totalorder %s9, 0
    %p81 = por %p79, %p80
    %p82 = scmp.ne.s32.totalorder %s71, %s74
    %p83 = scmp.eq.s32.totalorder %s14, 1
    %p84 = por %p82, %p83
    %p85 = scmp.ne.s32.totalorder %s74, %s75
    %p86 = scmp.eq.s32.totalorder %s14, 0
    %p87 = por %p85, %p86
    %p88 = scmp.ne.s32.totalorder %s74, %s75
    %p89 = scmp.eq.s32.totalorder %s15, 1
    %p90 = por %p88, %p89
    %p92 = scmp.ne.s32.totalorder %s75, %s91
    %p93 = scmp.eq.s32.totalorder %s15, 0
    %p94 = por %p92, %p93
    %s95 = ssub.s32 %s9, %s16
    %p96 = scmp.eq.s32.totalorder %s95, 0
    %s98 = sadd.s32 %s97, 1
    %s99 = scalar_select %p96, %s97, %s98
    %p102 = pneg %p96
    %p103 = scmp.eq.s32.totalorder %s9, 1
    %p104 = por %p102, %p103
    %p105 = scmp.ne.s32.totalorder %s97, %s100
    %p106 = scmp.eq.s32.totalorder %s9, 0
    %p107 = por %p105, %p106
    %p108 = scmp.ne.s32.totalorder %s97, %s100
    %p109 = scmp.eq.s32.totalorder %s14, 1
    %p110 = por %p108, %p109
    %p111 = scmp.ne.s32.totalorder %s100, %s101
    %p112 = scmp.eq.s32.totalorder %s14, 0
    %p113 = por %p111, %p112
    %p114 = scmp.ne.s32.totalorder %s100, %s101
    %p115 = scmp.eq.s32.totalorder %s15, 1
    %p116 = por %p114, %p115
    %p118 = scmp.ne.s32.totalorder %s101, %s117
    %p119 = scmp.eq.s32.totalorder %s15, 0
    %p120 = por %p118, %p119
    %p121 = scmp.le.s32.totalorder 1, %s9
    %p122 = scmp.lt.s32.totalorder %s9, 3
    %p123 = pnand %p121, %p122
    %p124 = pneg %p123
    // Predicated region
    $region9: #{_lambda_.11} parent=5 // pred_check
      _
    $region10: #{_lambda_.11} parent=5 // pred_check_branch
      %126 = sbr.rel (%p123) target = $region12
    $region11: #{_lambda_.11} parent=5 // pred_region
      %s127 = ssub.s32 %s9, 1
    $region12: #{_lambda_.11} parent=5 // pred_fallthru
      _
    %p128 = scmp.lt.s32.totalorder %s9, 2
    // Predicated region
    $region13: #{_lambda_.11} parent=5 // pred_check
      %p129 = pneg %p128
    $region14: #{_lambda_.11} parent=5 // pred_check_branch
      %131 = sbr.rel (%p129) target = $region16
    $region15: #{_lambda_.11} parent=5 // pred_region
      // Predicated region
      $region17: #{_lambda_.11} parent=15 // pred_check
        %p132 = pneg %p29
      $region18: #{_lambda_.11} parent=15 // pred_check_branch
        %134 = sbr.rel (%p132) target = $region20
      $region19: #{_lambda_.11} parent=15 // pred_region
        %p135 = scmp.lt.s32.totalorder %s9, 1
        %s136 = scalar_select %p135, %s9, 1
        %s137 = smul.addr %s136, 4
        %s138 = smul.addr %s137, 8
        %s139 = scalar_lea.vmem %s0, %s138
      $region20: #{_lambda_.11} parent=15 // pred_fallthru
        _
      // Predicated region
      $region21: #{_lambda_.11} parent=15 // pred_check
        %p140 = pneg %p55
      $region22: #{_lambda_.11} parent=15 // pred_check_branch
        %142 = sbr.rel (%p140) target = $region24
      $region23: #{_lambda_.11} parent=15 // pred_region
        %p143 = scmp.lt.s32.totalorder %s9, 1
        %s144 = scalar_select %p143, %s9, 1
        %s145 = smul.addr %s144, 4
        %s146 = smul.addr %s145, 8
        %s147 = scalar_lea.vmem %s1, %s146
      $region24: #{_lambda_.11} parent=15 // pred_fallthru
        _
      // Predicated region
      $region25: #{_lambda_.11} parent=15 // pred_check
        %p148 = pneg %p81
      $region26: #{_lambda_.11} parent=15 // pred_check_branch
        %150 = sbr.rel (%p148) target = $region28
      $region27: #{_lambda_.11} parent=15 // pred_region
        %p151 = scmp.lt.s32.totalorder %s9, 1
        %s152 = scalar_select %p151, %s9, 1
        %s153 = scalar_lea.vmem %s2, %s152
      $region28: #{_lambda_.11} parent=15 // pred_fallthru
        _
    $region16: #{_lambda_.11} parent=5 // pred_fallthru
      _
    %p154 = scmp.le.s32.totalorder 1, %s9
    %p155 = scmp.lt.s32.totalorder %s9, 3
    %p156 = pnand %p154, %p155
    %p157 = pneg %p156
    // Predicated region
    $region29: #{_lambda_.11} parent=5 // pred_check
      _
    $region30: #{_lambda_.11} parent=5 // pred_check_branch
      %159 = sbr.rel (%p156) target = $region32
    $region31: #{_lambda_.11} parent=5 // pred_region
      %s160 = ssub.s32 %s9, 1
      %p161 = scmp.lt.s32.totalorder %s14, 1
      %s162 = scalar_select %p161, %s14, 1
      %s163 = smul.addr %s162, 4
      %s164 = smul.addr %s163, 8
      %s165 = scalar_lea.vmem %s0, %s164
      %p166 = pneg %p35
      %p167 = pneg %p32
      %p168 = scmp.lt.s32.totalorder %s14, 1
      %s169 = scalar_select %p168, %s14, 1
      %s170 = smul.addr %s169, 4
      %s171 = smul.addr %s170, 8
      %s172 = scalar_lea.vmem %s1, %s171
      %p173 = pneg %p61
      %p174 = pneg %p58
      %p175 = scmp.lt.s32.totalorder %s14, 1
      %s176 = scalar_select %p175, %s14, 1
      %s177 = scalar_lea.vmem %s2, %s176
      %p178 = pneg %p87
      %p179 = pneg %p84
      %p180 = pneg %p113
      %p181 = pneg %p110
      %p182 = scmp.lt.s32.totalorder %s14, 1
      %s183 = scalar_select %p182, %s14, 1
      %s184 = smul.addr %s183, 4
      %s185 = smul.addr %s184, 8
      %s186 = scalar_lea.vmem %s3, %s185
      %p187 = scmp.lt.s32.totalorder %s14, 1
      %s188 = scalar_select %p187, %s14, 1
      %s189 = smul.addr %s188, 4
      %s190 = smul.addr %s189, 8
      %s191 = scalar_lea.vmem %s0, %s190
      %p192 = scmp.lt.s32.totalorder %s14, 1
      %s193 = scalar_select %p192, %s14, 1
      %s194 = smul.addr %s193, 4
      %s195 = smul.addr %s194, 8
      %s196 = scalar_lea.vmem %s1, %s195
      %p197 = scmp.lt.s32.totalorder %s14, 1
      %s198 = scalar_select %p197, %s14, 1
      %s199 = scalar_lea.vmem %s2, %s198
      %p200 = scmp.lt.s32.totalorder %s14, 1
      %s201 = scalar_select %p200, %s14, 1
      %s202 = smul.addr %s201, 4
      %s203 = smul.addr %s202, 8
      %s204 = scalar_lea.vmem %s3, %s203
      %v205 = vld [vmem:[%s191] sm:$0xff]
      %v206 = vld [vmem:[%s191 + $0x8] sm:$0xff]
      %v207 = vld [vmem:[%s191 + $0x10] sm:$0xff]
      %v208 = vld [vmem:[%s191 + $0x18] sm:$0xff]
      %v209 = vld [vmem:[%s196] sm:$0xff]
      %v210 = vld [vmem:[%s196 + $0x8] sm:$0xff]
      %v211 = vld [vmem:[%s196 + $0x10] sm:$0xff]
      %v212 = vld [vmem:[%s196 + $0x18] sm:$0xff]
      %v213 = vld [vmem:[%s199] sm:$0x1]
      %vm214 = vcmask 23552
      %v216 = vsel %vm214, %v205, 0
      %v219 = vsel %vm214, %v206, 0
      %v222 = vsel %vm214, %v207, 0
      %v225 = vsel %vm214, %v208, 0
      %v228 = vsel %vm214, %v209, 0
      %v231 = vsel %vm214, %v210, 0
      %v234 = vsel %vm214, %v211, 0
      %v237 = vsel %vm214, %v212, 0
      %239 = vmatpush.xpose.msra.mxu0 0.0
      %240 = vmatpush.xpose.msra.mxu0 0.0
      %241 = vmatpush.xpose.msra.mxu0 0.0
      %242 = vmatpush.xpose.msra.mxu0 0.0
      %243 = vmatpush.xpose.msra.mxu0 0.0
      %244 = vmatpush.xpose.msra.mxu0 0.0
      %245 = vmatpush.xpose.msra.mxu0 0.0
      %246 = vmatpush.xpose.msra.mxu0 0.0
      %247 = vmatpush.xpose.msra.mxu0 0.0
      %248 = vmatpush.xpose.msra.mxu0 0.0
      %249 = vmatpush.xpose.msra.mxu0 0.0
      %250 = vmatpush.xpose.msra.mxu0 0.0
      %251 = vmatpush.xpose.msra.mxu0 %v237
      %252 = vmatpush.xpose.msra.mxu0 %v234
      %253 = vmatpush.xpose.msra.mxu0 %v231
      %254 = vmatpush.xpose.msra.mxu0 %v228
      %255 = vmatmul.f32.gmra.mxu0 %v216
      %v256 = vpop.f32.mrf.mxu0
      %v257 = vadd.f32 0.0, %v256
      %258 = vmatmul.f32.gmra.mxu0 %v219
      %v259 = vpop.f32.mrf.mxu0
      %v260 = vadd.f32 0.0, %v259
      %261 = vmatmul.f32.gmra.mxu0 %v222
      %v262 = vpop.f32.mrf.mxu0
      %v263 = vadd.f32 0.0, %v262
      %264 = vmatmul.f32.gmra.mxu0 %v225
      %v265 = vpop.f32.mrf.mxu0
      %v266 = vadd.f32 0.0, %v265
      %267 = vdwg.mxu0
      %v268 = vmul.f32 %v257, 2.0
      %v269 = vmul.f32 %v260, 2.0
      %v270 = vmul.f32 %v263, 2.0
      %v271 = vmul.f32 %v266, 2.0
      %v273 = vperm.slane %v213, 0
      %v275 = vsub.f32 %v268, %v273
      %v276 = vsub.f32 %v269, %v273
      %v277 = vsub.f32 %v270, %v273
      %v278 = vsub.f32 %v271, %v273
      %vm279 = vcmask 261120
      %280 = vst.msk [vmem:[%s204] sm:$0xff] %vm279, %v275
      %281 = vst.msk [vmem:[%s204 + $0x8] sm:$0xff] %vm279, %v276
      %282 = vst.msk [vmem:[%s204 + $0x10] sm:$0xff] %vm279, %v277
      %283 = vst.msk [vmem:[%s204 + $0x18] sm:$0xff] %vm279, %v278
      %p284 = scmp.lt.s32.totalorder %s14, 1
      %s285 = scalar_select %p284, %s14, 1
      %s286 = smul.addr %s285, 4
      %s287 = smul.addr %s286, 8
      %s288 = scalar_lea.vmem %s3, %s287
      // Predicated region
      $region33: #{_lambda_.11} parent=31 // pred_check
        %p289 = pneg %p110
      $region34: #{_lambda_.11} parent=31 // pred_check_branch
        %291 = sbr.rel (%p289) target = $region36
      $region35: #{_lambda_.11} parent=31 // pred_region
        _
      $region36: #{_lambda_.11} parent=31 // pred_fallthru
        _
    $region32: #{_lambda_.11} parent=5 // pred_fallthru
      _
    %p292 = scmp.le.s32.totalorder 2, %s9
    // Predicated region
    $region37: #{_lambda_.11} parent=5 // pred_check
      %p293 = pneg %p292
    $region38: #{_lambda_.11} parent=5 // pred_check_branch
      %295 = sbr.rel (%p293) target = $region40
    $region39: #{_lambda_.11} parent=5 // pred_region
      %s296 = ssub.s32 %s9, 2
      // Predicated region
      $region41: #{_lambda_.11} parent=39 // pred_check
        %p297 = pneg %p116
      $region42: #{_lambda_.11} parent=39 // pred_check_branch
        %299 = sbr.rel (%p297) target = $region44
      $region43: #{_lambda_.11} parent=39 // pred_region
        %p300 = scmp.lt.s32.totalorder %s15, 1
        %s301 = scalar_select %p300, %s15, 1
        %s302 = smul.addr %s301, 4
        %s303 = smul.addr %s302, 8
        %s304 = scalar_lea.vmem %s3, %s303
      $region44: #{_lambda_.11} parent=39 // pred_fallthru
        _
    $region40: #{_lambda_.11} parent=5 // pred_fallthru
      _
  $region6: #{_lambda_.11} parent=0 // loop_footer
    %s13 = sadd.s32 1, %s9
  $region7: #{_lambda_.11} parent=0 // loop_footer_branch
    %8 = sbr.rel target = $region3
  $region8: #{_lambda_.11} parent=0 // loop_exit
    _

// kernel: _lambda_.12
$region0: #{_lambda_.12}
  #allocation0 [shape = 'u32[]', space=smem, size = 0x4, offset = 0x4, fixed_abs, tag = 'smem constant byte address 0x4 - core index']
  #allocation1 [shape = 'u32[72,128]{1,0:T(1,128)}', space=vmem, size = 0x9000, scoped, tag = 'internal scratch']
  %s0 = inlined_call_operand.vmem [shape: f32[2,32,32], index: 0, kind: input, shape index: {}]
  %s1 = inlined_call_operand.vmem [shape: bf16[2,32,32], index: 1, kind: input, shape index: {}]
  %s2 = inlined_call_operand.vmem [shape: f32[4,32,32], index: 2, kind: input, shape index: {}]
  %s3 = inlined_call_operand.vmem [shape: f32[4,32,32], index: 3, kind: input, shape index: {}]
  %s4 = inlined_call_operand.vmem [shape: f32[32,6], index: 4, kind: input, shape index: {}]
  %s5 = inlined_call_operand.vmem [shape: f32[32,6], index: 5, kind: input, shape index: {}]
  %s6 = inlined_call_operand.hbm [shape: f32[2,32,32], index: 6, kind: output, shape index: {0}]
  %s7 = inlined_call_operand.vmem [shape: f32[2,32,6], index: 7, kind: output, shape index: {1}]
  %8 = xla_tuple %s6, %s7
  %s9 = sld [smem:[#allocation0]]
  $region65: #{_lambda_.12} parent=0
    _
  %s11 = ssub.s32 1, %s9
  %s12 = scalar_select 0, %s11, %s9
  $region1: #{_lambda_.12} parent=0
    #allocation2 [shape = 'u8[32768]{0}', space=vmem, size = 0x8000, scoped, tag = 'output window, operand 0']
    #allocation3 [shape = 's32[2]{0}', space=sflag, size = 0x8, scoped, tag = 'scoped memory for _lambda_.12']
    %13 = vsyncpa [#allocation3], 0
    %s14 = scalar_lea.sflag [#allocation3], 1
    %15 = vsyncpa %s14, 0
    loop: start=0, step=1, limit=4
    $region2: #{_lambda_.12} parent=1 // loop_pre_header
      _
    $region3: #{_lambda_.12} parent=1 // loop_header
      %s17 = sphi 0, %s21
      %p18 = scmp.ge.s32.totalorder %s17, 4
      %s27 = sphi 0, %s29
      %s30 = sphi 0, %s27
      %s31 = sphi 0, %s30
      %s47 = sphi 0, %s31
      %s53 = sphi 0, %s55
      %s56 = sphi 0, %s53
      %s57 = sphi 0, %s56
      %s73 = sphi 0, %s57
      %s77 = sphi 0, %s77
      %s79 = sphi 0, %s77
      %s80 = sphi 0, %s79
      %s94 = sphi 0, %s80
      %s98 = sphi 0, %s98
      %s100 = sphi 0, %s98
      %s101 = sphi 0, %s100
      %s115 = sphi 0, %s101
      %s119 = sphi 0, %s119
      %s121 = sphi 0, %s119
      %s122 = sphi 0, %s121
      %s136 = sphi 0, %s122
      %s140 = sphi 0, %s140
      %s142 = sphi 0, %s140
      %s143 = sphi 0, %s142
      %s157 = sphi 0, %s143
      %s163 = sphi 0, %s165
      %s166 = sphi 0, %s163
      %s167 = sphi 0, %s166
      %s183 = sphi 0, %s167
      %s189 = sphi 0, %s191
      %s192 = sphi 0, %s189
      %s193 = sphi 0, %s192
      %s209 = sphi 0, %s193
    $region4: #{_lambda_.12} parent=1 // loop_header_branch
      %20 = sbr.rel (%p18) target = $region8
    $region5: #{_lambda_.12} parent=1 // loop_body
      %s22 = ssub.s32 %s17, 1
      %s23 = ssub.s32 %s17, 2
      %s24 = sadd.s32 %s17, 1
      %s25 = ssub.s32 %s17, %s24
      %p26 = scmp.eq.s32.totalorder %s25, 0
      %s28 = sadd.s32 %s27, 1
      %s29 = scalar_select %p26, %s27, %s28
      %p32 = pneg %p26
      %p33 = scmp.eq.s32.totalorder %s17, 1
      %p34 = por %p32, %p33
      %p35 = scmp.ne.s32.totalorder %s27, %s30
      %p36 = scmp.eq.s32.totalorder %s17, 0
      %p37 = por %p35, %p36
      %p38 = scmp.ne.s32.totalorder %s27, %s30
      %p39 = scmp.eq.s32.totalorder %s22, 1
      %p40 = por %p38, %p39
      %p41 = scmp.ne.s32.totalorder %s30, %s31
      %p42 = scmp.eq.s32.totalorder %s22, 0
      %p43 = por %p41, %p42
      %p44 = scmp.ne.s32.totalorder %s30, %s31
      %p45 = scmp.eq.s32.totalorder %s23, 1
      %p46 = por %p44, %p45
      %p48 = scmp.ne.s32.totalorder %s31, %s47
      %p49 = scmp.eq.s32.totalorder %s23, 0
      %p50 = por %p48, %p49
      %s51 = ssub.s32 %s17, %s24
      %p52 = scmp.eq.s32.totalorder %s51, 0
      %s54 = sadd.s32 %s53, 1
      %s55 = scalar_select %p52, %s53, %s54
      %p58 = pneg %p52
      %p59 = scmp.eq.s32.totalorder %s17, 1
      %p60 = por %p58, %p59
      %p61 = scmp.ne.s32.totalorder %s53, %s56
      %p62 = scmp.eq.s32.totalorder %s17, 0
      %p63 = por %p61, %p62
      %p64 = scmp.ne.s32.totalorder %s53, %s56
      %p65 = scmp.eq.s32.totalorder %s22, 1
      %p66 = por %p64, %p65
      %p67 = scmp.ne.s32.totalorder %s56, %s57
      %p68 = scmp.eq.s32.totalorder %s22, 0
      %p69 = por %p67, %p68
      %p70 = scmp.ne.s32.totalorder %s56, %s57
      %p71 = scmp.eq.s32.totalorder %s23, 1
      %p72 = por %p70, %p71
      %p74 = scmp.ne.s32.totalorder %s57, %s73
      %p75 = scmp.eq.s32.totalorder %s23, 0
      %p76 = por %p74, %p75
      %s78 = sadd.s32 %s77, 1
      %p81 = scmp.eq.s32.totalorder %s17, 1
      %p82 = scmp.ne.s32.totalorder %s77, %s79
      %p83 = scmp.eq.s32.totalorder %s17, 0
      %p84 = por %p82, %p83
      %p85 = scmp.ne.s32.totalorder %s77, %s79
      %p86 = scmp.eq.s32.totalorder %s22, 1
      %p87 = por %p85, %p86
      %p88 = scmp.ne.s32.totalorder %s79, %s80
      %p89 = scmp.eq.s32.totalorder %s22, 0
      %p90 = por %p88, %p89
      %p91 = scmp.ne.s32.totalorder %s79, %s80
      %p92 = scmp.eq.s32.totalorder %s23, 1
      %p93 = por %p91, %p92
      %p95 = scmp.ne.s32.totalorder %s80, %s94
      %p96 = scmp.eq.s32.totalorder %s23, 0
      %p97 = por %p95, %p96
      %s99 = sadd.s32 %s98, 1
      %p102 = scmp.eq.s32.totalorder %s17, 1
      %p103 = scmp.ne.s32.totalorder %s98, %s100
      %p104 = scmp.eq.s32.totalorder %s17, 0
      %p105 = por %p103, %p104
      %p106 = scmp.ne.s32.totalorder %s98, %s100
      %p107 = scmp.eq.s32.totalorder %s22, 1
      %p108 = por %p106, %p107
      %p109 = scmp.ne.s32.totalorder %s100, %s101
      %p110 = scmp.eq.s32.totalorder %s22, 0
      %p111 = por %p109, %p110
      %p112 = scmp.ne.s32.totalorder %s100, %s101
      %p113 = scmp.eq.s32.totalorder %s23, 1
      %p114 = por %p112, %p113
      %p116 = scmp.ne.s32.totalorder %s101, %s115
      %p117 = scmp.eq.s32.totalorder %s23, 0
      %p118 = por %p116, %p117
      %s120 = sadd.s32 %s119, 1
      %p123 = scmp.eq.s32.totalorder %s17, 1
      %p124 = scmp.ne.s32.totalorder %s119, %s121
      %p125 = scmp.eq.s32.totalorder %s17, 0
      %p126 = por %p124, %p125
      %p127 = scmp.ne.s32.totalorder %s119, %s121
      %p128 = scmp.eq.s32.totalorder %s22, 1
      %p129 = por %p127, %p128
      %p130 = scmp.ne.s32.totalorder %s121, %s122
      %p131 = scmp.eq.s32.totalorder %s22, 0
      %p132 = por %p130, %p131
      %p133 = scmp.ne.s32.totalorder %s121, %s122
      %p134 = scmp.eq.s32.totalorder %s23, 1
      %p135 = por %p133, %p134
      %p137 = scmp.ne.s32.totalorder %s122, %s136
      %p138 = scmp.eq.s32.totalorder %s23, 0
      %p139 = por %p137, %p138
      %s141 = sadd.s32 %s140, 1
      %p144 = scmp.eq.s32.totalorder %s17, 1
      %p145 = scmp.ne.s32.totalorder %s140, %s142
      %p146 = scmp.eq.s32.totalorder %s17, 0
      %p147 = por %p145, %p146
      %p148 = scmp.ne.s32.totalorder %s140, %s142
      %p149 = scmp.eq.s32.totalorder %s22, 1
      %p150 = por %p148, %p149
      %p151 = scmp.ne.s32.totalorder %s142, %s143
      %p152 = scmp.eq.s32.totalorder %s22, 0
      %p153 = por %p151, %p152
      %p154 = scmp.ne.s32.totalorder %s142, %s143
      %p155 = scmp.eq.s32.totalorder %s23, 1
      %p156 = por %p154, %p155
      %p158 = scmp.ne.s32.totalorder %s143, %s157
      %p159 = scmp.eq.s32.totalorder %s23, 0
      %p160 = por %p158, %p159
      %s161 = ssub.s32 %s17, %s24
      %p162 = scmp.eq.s32.totalorder %s161, 0
      %s164 = sadd.s32 %s163, 1
      %s165 = scalar_select %p162, %s163, %s164
      %p168 = pneg %p162
      %p169 = scmp.eq.s32.totalorder %s17, 1
      %p170 = por %p168, %p169
      %p171 = scmp.ne.s32.totalorder %s163, %s166
      %p172 = scmp.eq.s32.totalorder %s17, 0
      %p173 = por %p171, %p172
      %p174 = scmp.ne.s32.totalorder %s163, %s166
      %p175 = scmp.eq.s32.totalorder %s22, 1
      %p176 = por %p174, %p175
      %p177 = scmp.ne.s32.totalorder %s166, %s167
      %p178 = scmp.eq.s32.totalorder %s22, 0
      %p179 = por %p177, %p178
      %p180 = scmp.ne.s32.totalorder %s166, %s167
      %p181 = scmp.eq.s32.totalorder %s23, 1
      %p182 = por %p180, %p181
      %p184 = scmp.ne.s32.totalorder %s167, %s183
      %p185 = scmp.eq.s32.totalorder %s23, 0
      %p186 = por %p184, %p185
      %s187 = ssub.s32 %s17, %s24
      %p188 = scmp.eq.s32.totalorder %s187, 0
      %s190 = sadd.s32 %s189, 1
      %s191 = scalar_select %p188, %s189, %s190
      %p194 = pneg %p188
      %p195 = scmp.eq.s32.totalorder %s17, 1
      %p196 = por %p194, %p195
      %p197 = scmp.ne.s32.totalorder %s189, %s192
      %p198 = scmp.eq.s32.totalorder %s17, 0
      %p199 = por %p197, %p198
      %p200 = scmp.ne.s32.totalorder %s189, %s192
      %p201 = scmp.eq.s32.totalorder %s22, 1
      %p202 = por %p200, %p201
      %p203 = scmp.ne.s32.totalorder %s192, %s193
      %p204 = scmp.eq.s32.totalorder %s22, 0
      %p205 = por %p203, %p204
      %p206 = scmp.ne.s32.totalorder %s192, %s193
      %p207 = scmp.eq.s32.totalorder %s23, 1
      %p208 = por %p206, %p207
      %p210 = scmp.ne.s32.totalorder %s193, %s209
      %p211 = scmp.eq.s32.totalorder %s23, 0
      %p212 = por %p210, %p211
      %p213 = scmp.le.s32.totalorder 1, %s17
      %p214 = scmp.lt.s32.totalorder %s17, 3
      %p215 = pnand %p213, %p214
      %p216 = pneg %p215
      // Predicated region
      $region9: #{_lambda_.12} parent=5 // pred_check
        _
      $region10: #{_lambda_.12} parent=5 // pred_check_branch
        %218 = sbr.rel (%p215) target = $region12
      $region11: #{_lambda_.12} parent=5 // pred_region
        %s219 = ssub.s32 %s17, 1
        // Predicated region
        $region13: #{_lambda_.12} parent=11 // pred_check
          %p220 = pneg %p90
        $region14: #{_lambda_.12} parent=11 // pred_check_branch
          %222 = sbr.rel (%p220) target = $region16
        $region15: #{_lambda_.12} parent=11 // pred_region
          _
        $region16: #{_lambda_.12} parent=11 // pred_fallthru
          _
        // Predicated region
        $region17: #{_lambda_.12} parent=11 // pred_check
          %p223 = pneg %p111
        $region18: #{_lambda_.12} parent=11 // pred_check_branch
          %225 = sbr.rel (%p223) target = $region20
        $region19: #{_lambda_.12} parent=11 // pred_region
          _
        $region20: #{_lambda_.12} parent=11 // pred_fallthru
          _
        // Predicated region
        $region21: #{_lambda_.12} parent=11 // pred_check
          %p226 = pneg %p132
        $region22: #{_lambda_.12} parent=11 // pred_check_branch
          %228 = sbr.rel (%p226) target = $region24
        $region23: #{_lambda_.12} parent=11 // pred_region
          _
        $region24: #{_lambda_.12} parent=11 // pred_fallthru
          _
        // Predicated region
        $region25: #{_lambda_.12} parent=11 // pred_check
          %p229 = pneg %p153
        $region26: #{_lambda_.12} parent=11 // pred_check_branch
          %231 = sbr.rel (%p229) target = $region28
        $region27: #{_lambda_.12} parent=11 // pred_region
          _
        $region28: #{_lambda_.12} parent=11 // pred_fallthru
          _
      $region12: #{_lambda_.12} parent=5 // pred_fallthru
        _
      %p232 = scmp.lt.s32.totalorder %s17, 2
      // Predicated region
      $region29: #{_lambda_.12} parent=5 // pred_check
        %p233 = pneg %p232
      $region30: #{_lambda_.12} parent=5 // pred_check_branch
        %235 = sbr.rel (%p233) target = $region32
      $region31: #{_lambda_.12} parent=5 // pred_region
        // Predicated region
        $region33: #{_lambda_.12} parent=31 // pred_check
          %p236 = pneg %p37
        $region34: #{_lambda_.12} parent=31 // pred_check_branch
          %238 = sbr.rel (%p236) target = $region36
        $region35: #{_lambda_.12} parent=31 // pred_region
          %p239 = scmp.lt.s32.totalorder %s17, 1
          %s240 = scalar_select %p239, %s17, 1
          %s241 = smul.addr %s240, 4
          %s242 = smul.addr %s241, 8
          %s243 = scalar_lea.vmem %s0, %s242
        $region36: #{_lambda_.12} parent=31 // pred_fallthru
          _
        // Predicated region
        $region37: #{_lambda_.12} parent=31 // pred_check
          %p244 = pneg %p63
        $region38: #{_lambda_.12} parent=31 // pred_check_branch
          %246 = sbr.rel (%p244) target = $region40
        $region39: #{_lambda_.12} parent=31 // pred_region
          %p247 = scmp.lt.s32.totalorder %s17, 1
          %s248 = scalar_select %p247, %s17, 1
          %s249 = smul.addr %s248, 4
          %s250 = smul.addr %s249, 4
          %s251 = scalar_lea.vmem %s1, %s250
        $region40: #{_lambda_.12} parent=31 // pred_fallthru
          _
      $region32: #{_lambda_.12} parent=5 // pred_fallthru
        _
      %p252 = scmp.le.s32.totalorder 1, %s17
      %p253 = scmp.lt.s32.totalorder %s17, 3
      %p254 = pnand %p252, %p253
      %p255 = pneg %p254
      // Predicated region
      $region41: #{_lambda_.12} parent=5 // pred_check
        _
      $region42: #{_lambda_.12} parent=5 // pred_check_branch
        %257 = sbr.rel (%p254) target = $region44
      $region43: #{_lambda_.12} parent=5 // pred_region
        %s258 = ssub.s32 %s17, 1
        %p259 = scmp.lt.s32.totalorder %s22, 1
        %s260 = scalar_select %p259, %s22, 1
        %s261 = smul.addr %s260, 4
        %s262 = smul.addr %s261, 8
        %s263 = scalar_lea.vmem %s0, %s262
        %p264 = pneg %p43
        %p265 = pneg %p40
        %p266 = scmp.lt.s32.totalorder %s22, 1
        %s267 = scalar_select %p266, %s22, 1
        %s268 = smul.addr %s267, 4
        %s269 = smul.addr %s268, 4
        %s270 = scalar_lea.vmem %s1, %s269
        %p271 = pneg %p69
        %p272 = pneg %p66
        %p273 = pneg %p90
        %p274 = pneg %p87
        %p275 = pneg %p111
        %p276 = pneg %p108
        %p277 = pneg %p132
        %p278 = pneg %p129
        %p279 = pneg %p153
        %p280 = pneg %p150
        %p281 = pneg %p179
        %p282 = pneg %p176
        %s283 = sand.u32 %s166, 1
        %s284 = scalar_lea.sflag [#allocation3], %s283
        %s285 = sand.u32 %s166, 1
        %s286 = smul.addr %s285, 32
        %s287 = scalar_lea.vmem [#allocation2], %s286
        %p288 = pneg %p205
        %p289 = pneg %p202
        %p290 = scmp.lt.s32.totalorder %s22, 1
        %s291 = scalar_select %p290, %s22, 1
        %s292 = smul.addr %s291, 4
        %s293 = smul.addr %s292, 8
        %s294 = scalar_lea.vmem %s7, %s293
        %p295 = scmp.lt.s32.totalorder %s22, 1
        %s296 = scalar_select %p295, %s22, 1
        %s297 = smul.addr %s296, 4
        %s298 = smul.addr %s297, 8
        %s299 = scalar_lea.vmem %s0, %s298
        %p300 = scmp.lt.s32.totalorder %s22, 1
        %s301 = scalar_select %p300, %s22, 1
        %s302 = smul.addr %s301, 4
        %s303 = smul.addr %s302, 4
        %s304 = scalar_lea.vmem %s1, %s303
        %p305 = scmp.lt.s32.totalorder %s22, 1
        %s306 = scalar_select %p305, %s22, 1
        %s307 = smul.addr %s306, 4
        %s308 = smul.addr %s307, 8
        %s309 = scalar_lea.vmem %s7, %s308
        %v311 = vld [vmem:[%s304] sm:$0xf]
        %v312 = vld [vmem:[%s304 + $0x4] sm:$0xf]
        %v313 = vld [vmem:[%s304 + $0x8] sm:$0xf]
        %v314 = vld [vmem:[%s304 + $0xc] sm:$0xf]
        %v315 = vunpack.c.l.bf16 %v311
        %v316 = vunpack.c.l.bf16 %v312
        %v317 = vunpack.c.l.bf16 %v313
        %v318 = vunpack.c.l.bf16 %v314
        %vm319 = vcmask 261120
        %v320 = vsel %vm319, %v315, 0.0
        %321 = vadd.xlane.f32.xlu0 %v320
        %v322 = vpop.xlane.xlu0 %321
        %v323 = vsel %vm319, %v316, 0.0
        %324 = vadd.xlane.f32.xlu0 %v323
        %v325 = vpop.xlane.xlu0 %324
        %v326 = vsel %vm319, %v317, 0.0
        %327 = vadd.xlane.f32.xlu0 %v326
        %v328 = vpop.xlane.xlu0 %327
        %v329 = vsel %vm319, %v318, 0.0
        %330 = vadd.xlane.f32.xlu0 %v329
        %v331 = vpop.xlane.xlu0 %330
        %v332 = vmax.f32 %v322, 1.0
        %v333 = vmax.f32 %v325, 1.0
        %v334 = vmax.f32 %v328, 1.0
        %v335 = vmax.f32 %v331, 1.0
        %v336 = vrsqrt.pop %v332
        %v337 = vmul.f32 %v336, %v332
        %v338 = vmul.f32 %v337, %v336
        %v339 = vmul.f32 0.5, %v338
        %v340 = vsub.f32 1.5, %v339
        %v341 = vmul.f32 %v336, %v340
        %vm342 = vweird.f32 %v332
        %vm343 = vweird.f32 %v336
        %vm344 = vmor %vm342, %vm343
        %v345 = vsel %vm344, %v336, %v341
        %v346 = vrsqrt.pop %v333
        %v347 = vmul.f32 %v346, %v333
        %v348 = vmul.f32 %v347, %v346
        %v349 = vmul.f32 0.5, %v348
        %v350 = vsub.f32 1.5, %v349
        %v351 = vmul.f32 %v346, %v350
        %vm352 = vweird.f32 %v333
        %vm353 = vweird.f32 %v346
        %vm354 = vmor %vm352, %vm353
        %v355 = vsel %vm354, %v346, %v351
        %v356 = vrsqrt.pop %v334
        %v357 = vmul.f32 %v356, %v334
        %v358 = vmul.f32 %v357, %v356
        %v359 = vmul.f32 0.5, %v358
        %v360 = vsub.f32 1.5, %v359
        %v361 = vmul.f32 %v356, %v360
        %vm362 = vweird.f32 %v334
        %vm363 = vweird.f32 %v356
        %vm364 = vmor %vm362, %vm363
        %v365 = vsel %vm364, %v356, %v361
        %v366 = vrsqrt.pop %v335
        %v367 = vmul.f32 %v366, %v335
        %v368 = vmul.f32 %v367, %v366
        %v369 = vmul.f32 0.5, %v368
        %v370 = vsub.f32 1.5, %v369
        %v371 = vmul.f32 %v366, %v370
        %vm372 = vweird.f32 %v335
        %vm373 = vweird.f32 %v366
        %vm374 = vmor %vm372, %vm373
        %v375 = vsel %vm374, %v366, %v371
        %v376 = vld [vmem:[%s299] sm:$0xff]
        %v377 = vld [vmem:[%s299 + $0x8] sm:$0xff]
        %v378 = vld [vmem:[%s299 + $0x10] sm:$0xff]
        %v379 = vld [vmem:[%s299 + $0x18] sm:$0xff]
        %v380 = vmax.f32 %v376, 0.0
        %v381 = vmax.f32 %v377, 0.0
        %v382 = vmax.f32 %v378, 0.0
        %v383 = vmax.f32 %v379, 0.0
        %v384 = vld [vmem:[%s2] sm:$0xff]
        %v385 = vld [vmem:[%s2 + $0x8] sm:$0xff]
        %v386 = vld [vmem:[%s2 + $0x10] sm:$0xff]
        %v387 = vld [vmem:[%s2 + $0x18] sm:$0xff]
        %v389 = vsel %vm319, %v380, 0
        %v392 = vsel %vm319, %v381, 0
        %v395 = vsel %vm319, %v382, 0
        %v398 = vsel %vm319, %v383, 0
        %400 = vmatpush.msra.mxu0 0.0
        %401 = vmatpush.msra.mxu0 0.0
        %402 = vmatpush.msra.mxu0 0.0
        %403 = vmatpush.msra.mxu0 0.0
        %404 = vmatpush.msra.mxu0 0.0
        %405 = vmatpush.msra.mxu0 0.0
        %406 = vmatpush.msra.mxu0 0.0
        %407 = vmatpush.msra.mxu0 0.0
        %408 = vmatpush.msra.mxu0 0.0
        %409 = vmatpush.msra.mxu0 0.0
        %410 = vmatpush.msra.mxu0 0.0
        %411 = vmatpush.msra.mxu0 0.0
        %412 = vmatpush.msra.mxu0 %v387
        %413 = vmatpush.msra.mxu0 %v386
        %414 = vmatpush.msra.mxu0 %v385
        %415 = vmatpush.msra.mxu0 %v384
        %416 = vmatmul.f32.gmra.mxu0 %v389
        %v417 = vpop.f32.mrf.mxu0
        %v418 = vadd.f32 0.0, %v417
        %419 = vmatmul.f32.gmra.mxu0 %v392
        %v420 = vpop.f32.mrf.mxu0
        %v421 = vadd.f32 0.0, %v420
        %422 = vmatmul.f32.gmra.mxu0 %v395
        %v423 = vpop.f32.mrf.mxu0
        %v424 = vadd.f32 0.0, %v423
        %425 = vmatmul.f32.gmra.mxu0 %v398
        %v426 = vpop.f32.mrf.mxu0
        %v427 = vadd.f32 0.0, %v426
        %428 = vdwg.mxu0
        %v429 = vld [vmem:[%s3] sm:$0xff]
        %v430 = vld [vmem:[%s3 + $0x8] sm:$0xff]
        %v431 = vld [vmem:[%s3 + $0x10] sm:$0xff]
        %v432 = vld [vmem:[%s3 + $0x18] sm:$0xff]
        %v434 = vsel %vm319, %v376, 0
        %v437 = vsel %vm319, %v377, 0
        %v440 = vsel %vm319, %v378, 0
        %v443 = vsel %vm319, %v379, 0
        %445 = vmatpush.msra.mxu0 0.0
        %446 = vmatpush.msra.mxu0 0.0
        %447 = vmatpush.msra.mxu0 0.0
        %448 = vmatpush.msra.mxu0 0.0
        %449 = vmatpush.msra.mxu0 0.0
        %450 = vmatpush.msra.mxu0 0.0
        %451 = vmatpush.msra.mxu0 0.0
        %452 = vmatpush.msra.mxu0 0.0
        %453 = vmatpush.msra.mxu0 0.0
        %454 = vmatpush.msra.mxu0 0.0
        %455 = vmatpush.msra.mxu0 0.0
        %456 = vmatpush.msra.mxu0 0.0
        %457 = vmatpush.msra.mxu0 %v432
        %458 = vmatpush.msra.mxu0 %v431
        %459 = vmatpush.msra.mxu0 %v430
        %460 = vmatpush.msra.mxu0 %v429
        %461 = vmatmul.f32.gmra.mxu0 %v434
        %v462 = vpop.f32.mrf.mxu0
        %v463 = vadd.f32 0.0, %v462
        %464 = vmatmul.f32.gmra.mxu0 %v437
        %v465 = vpop.f32.mrf.mxu0
        %v466 = vadd.f32 0.0, %v465
        %467 = vmatmul.f32.gmra.mxu0 %v440
        %v468 = vpop.f32.mrf.mxu0
        %v469 = vadd.f32 0.0, %v468
        %470 = vmatmul.f32.gmra.mxu0 %v443
        %v471 = vpop.f32.mrf.mxu0
        %v472 = vadd.f32 0.0, %v471
        %473 = vdwg.mxu0
        %v474 = vmul.f32 %v345, %v463
        %v475 = vmul.f32 %v355, %v466
        %v476 = vmul.f32 %v365, %v469
        %v477 = vmul.f32 %v375, %v472
        %v478 = vpack.c.bf16 %v475, %v474
        %v479 = vpack.c.bf16 %v477, %v476
        %v484 = vunpack.c.l.b16 %v311
        %v485 = vunpack.c.l.b16 %v312
        %v486 = vunpack.c.l.b16 %v313
        %v487 = vunpack.c.l.b16 %v314
        %v488 = vpack.c.b16 %v485, %v484
        %v489 = vpack.c.b16 %v487, %v486
        %v491 = vsel %vm319, %v488, 0
        %v494 = vsel %vm319, %v489, 0
        %496 = vmatpush.bf16.msra.mxu0 0
        %497 = vmatpush.bf16.msra.mxu0 0
        %498 = vmatpush.bf16.msra.mxu0 0
        %499 = vmatpush.bf16.msra.mxu0 0
        %500 = vmatpush.bf16.msra.mxu0 0
        %501 = vmatpush.bf16.msra.mxu0 0
        %502 = vmatpush.bf16.msra.mxu0 %v479
        %503 = vmatpush.bf16.msra.mxu0 %v478
        %504 = vmatmul.bf16.gmra.mxu0 %v491
        %v505 = vpop.f32.mrf.mxu0
        %v506 = vadd.f32 0.0, %v505
        %v507 = vpop.f32.mrf.mxu0
        %v508 = vadd.f32 0.0, %v507
        %509 = vmatmul.bf16.gmra.mxu0 %v494
        %v510 = vpop.f32.mrf.mxu0
        %v511 = vadd.f32 0.0, %v510
        %v512 = vpop.f32.mrf.mxu0
        %v513 = vadd.f32 0.0, %v512
        %514 = vdwg.mxu0
        %v515 = vmul.f32 %v345, %v506
        %v516 = vmul.f32 %v355, %v508
        %v517 = vmul.f32 %v365, %v511
        %v518 = vmul.f32 %v375, %v513
        %v519 = vmul.f32 %v515, 0.2
        %v520 = vmul.f32 %v516, 0.2
        %v521 = vmul.f32 %v517, 0.2
        %v522 = vmul.f32 %v518, 0.2
        %v523 = vmul.f32 %v418, 0.8
        %v524 = vmul.f32 %v421, 0.8
        %v525 = vmul.f32 %v424, 0.8
        %v526 = vmul.f32 %v427, 0.8
        %v527 = vadd.f32 %v519, %v523
        %v528 = vadd.f32 %v520, %v524
        %v529 = vadd.f32 %v521, %v525
        %v530 = vadd.f32 %v522, %v526
        %v531 = vadd.f32 %v527, %v376
        %v532 = vadd.f32 %v528, %v377
        %v533 = vadd.f32 %v529, %v378
        %v534 = vadd.f32 %v530, %v379
        %v535 = vmax.f32 %v531, 0.0
        %v536 = vmax.f32 %v532, 0.0
        %v537 = vmax.f32 %v533, 0.0
        %v538 = vmax.f32 %v534, 0.0
        %s539 = scalar_lea.vmem %s2, 32
        %v540 = vld [vmem:[%s539] sm:$0xff]
        %v541 = vld [vmem:[%s539 + $0x8] sm:$0xff]
        %v542 = vld [vmem:[%s539 + $0x10] sm:$0xff]
        %v543 = vld [vmem:[%s539 + $0x18] sm:$0xff]
        %v545 = vsel %vm319, %v535, 0
        %v548 = vsel %vm319, %v536, 0
        %v551 = vsel %vm319, %v537, 0
        %v554 = vsel %vm319, %v538, 0
        %556 = vmatpush.msra.mxu0 0.0
        %557 = vmatpush.msra.mxu0 0.0
        %558 = vmatpush.msra.mxu0 0.0
        %559 = vmatpush.msra.mxu0 0.0
        %560 = vmatpush.msra.mxu0 0.0
        %561 = vmatpush.msra.mxu0 0.0
        %562 = vmatpush.msra.mxu0 0.0
        %563 = vmatpush.msra.mxu0 0.0
        %564 = vmatpush.msra.mxu0 0.0
        %565 = vmatpush.msra.mxu0 0.0
        %566 = vmatpush.msra.mxu0 0.0
        %567 = vmatpush.msra.mxu0 0.0
        %568 = vmatpush.msra.mxu0 %v543
        %569 = vmatpush.msra.mxu0 %v542
        %570 = vmatpush.msra.mxu0 %v541
        %571 = vmatpush.msra.mxu0 %v540
        %572 = vmatmul.f32.gmra.mxu0 %v545
        %v573 = vpop.f32.mrf.mxu0
        %v574 = vadd.f32 0.0, %v573
        %575 = vmatmul.f32.gmra.mxu0 %v548
        %v576 = vpop.f32.mrf.mxu0
        %v577 = vadd.f32 0.0, %v576
        %578 = vmatmul.f32.gmra.mxu0 %v551
        %v579 = vpop.f32.mrf.mxu0
        %v580 = vadd.f32 0.0, %v579
        %581 = vmatmul.f32.gmra.mxu0 %v554
        %v582 = vpop.f32.mrf.mxu0
        %v583 = vadd.f32 0.0, %v582
        %584 = vdwg.mxu0
        %s585 = scalar_lea.vmem %s3, 32
        %v586 = vld [vmem:[%s585] sm:$0xff]
        %v587 = vld [vmem:[%s585 + $0x8] sm:$0xff]
        %v588 = vld [vmem:[%s585 + $0x10] sm:$0xff]
        %v589 = vld [vmem:[%s585 + $0x18] sm:$0xff]
        %v591 = vsel %vm319, %v531, 0
        %v594 = vsel %vm319, %v532, 0
        %v597 = vsel %vm319, %v533, 0
        %v600 = vsel %vm319, %v534, 0
        %602 = vmatpush.msra.mxu0 0.0
        %603 = vmatpush.msra.mxu0 0.0
        %604 = vmatpush.msra.mxu0 0.0
        %605 = vmatpush.msra.mxu0 0.0
        %606 = vmatpush.msra.mxu0 0.0
        %607 = vmatpush.msra.mxu0 0.0
        %608 = vmatpush.msra.mxu0 0.0
        %609 = vmatpush.msra.mxu0 0.0
        %610 = vmatpush.msra.mxu0 0.0
        %611 = vmatpush.msra.mxu0 0.0
        %612 = vmatpush.msra.mxu0 0.0
        %613 = vmatpush.msra.mxu0 0.0
        %614 = vmatpush.msra.mxu0 %v589
        %615 = vmatpush.msra.mxu0 %v588
        %616 = vmatpush.msra.mxu0 %v587
        %617 = vmatpush.msra.mxu0 %v586
        %618 = vmatmul.f32.gmra.mxu0 %v591
        %v619 = vpop.f32.mrf.mxu0
        %v620 = vadd.f32 0.0, %v619
        %621 = vmatmul.f32.gmra.mxu0 %v594
        %v622 = vpop.f32.mrf.mxu0
        %v623 = vadd.f32 0.0, %v622
        %624 = vmatmul.f32.gmra.mxu0 %v597
        %v625 = vpop.f32.mrf.mxu0
        %v626 = vadd.f32 0.0, %v625
        %627 = vmatmul.f32.gmra.mxu0 %v600
        %v628 = vpop.f32.mrf.mxu0
        %v629 = vadd.f32 0.0, %v628
        %630 = vdwg.mxu0
        %v631 = vmul.f32 %v345, %v620
        %v632 = vmul.f32 %v355, %v623
        %v633 = vmul.f32 %v365, %v626
        %v634 = vmul.f32 %v375, %v629
        %v635 = vpack.c.bf16 %v632, %v631
        %v636 = vpack.c.bf16 %v634, %v633
        %637 = vmatpush.bf16.msra.mxu0 0
        %638 = vmatpush.bf16.msra.mxu0 0
        %639 = vmatpush.bf16.msra.mxu0 0
        %640 = vmatpush.bf16.msra.mxu0 0
        %641 = vmatpush.bf16.msra.mxu0 0
        %642 = vmatpush.bf16.msra.mxu0 0
        %643 = vmatpush.bf16.msra.mxu0 %v636
        %644 = vmatpush.bf16.msra.mxu0 %v635
        %645 = vmatmul.bf16.gmra.mxu0 %v491
        %v646 = vpop.f32.mrf.mxu0
        %v647 = vadd.f32 0.0, %v646
        %v648 = vpop.f32.mrf.mxu0
        %v649 = vadd.f32 0.0, %v648
        %650 = vmatmul.bf16.gmra.mxu0 %v494
        %v651 = vpop.f32.mrf.mxu0
        %v652 = vadd.f32 0.0, %v651
        %v653 = vpop.f32.mrf.mxu0
        %v654 = vadd.f32 0.0, %v653
        %655 = vdwg.mxu0
        %v656 = vmul.f32 %v345, %v647
        %v657 = vmul.f32 %v355, %v649
        %v658 = vmul.f32 %v365, %v652
        %v659 = vmul.f32 %v375, %v654
        %v660 = vmul.f32 %v656, 0.2
        %v661 = vmul.f32 %v657, 0.2
        %v662 = vmul.f32 %v658, 0.2
        %v663 = vmul.f32 %v659, 0.2
        %v664 = vmul.f32 %v574, 0.8
        %v665 = vmul.f32 %v577, 0.8
        %v666 = vmul.f32 %v580, 0.8
        %v667 = vmul.f32 %v583, 0.8
        %v668 = vadd.f32 %v660, %v664
        %v669 = vadd.f32 %v661, %v665
        %v670 = vadd.f32 %v662, %v666
        %v671 = vadd.f32 %v663, %v667
        %v672 = vadd.f32 %v668, %v531
        %v673 = vadd.f32 %v669, %v532
        %v674 = vadd.f32 %v670, %v533
        %v675 = vadd.f32 %v671, %v534
        %v676 = vmax.f32 %v672, 0.0
        %v677 = vmax.f32 %v673, 0.0
        %v678 = vmax.f32 %v674, 0.0
        %v679 = vmax.f32 %v675, 0.0
        %s680 = scalar_lea.vmem %s2, 64
        %v681 = vld [vmem:[%s680] sm:$0xff]
        %v682 = vld [vmem:[%s680 + $0x8] sm:$0xff]
        %v683 = vld [vmem:[%s680 + $0x10] sm:$0xff]
        %v684 = vld [vmem:[%s680 + $0x18] sm:$0xff]
        %v686 = vsel %vm319, %v676, 0
        %v689 = vsel %vm319, %v677, 0
        %v692 = vsel %vm319, %v678, 0
        %v695 = vsel %vm319, %v679, 0
        %697 = vmatpush.msra.mxu0 0.0
        %698 = vmatpush.msra.mxu0 0.0
        %699 = vmatpush.msra.mxu0 0.0
        %700 = vmatpush.msra.mxu0 0.0
        %701 = vmatpush.msra.mxu0 0.0
        %702 = vmatpush.msra.mxu0 0.0
        %703 = vmatpush.msra.mxu0 0.0
        %704 = vmatpush.msra.mxu0 0.0
        %705 = vmatpush.msra.mxu0 0.0
        %706 = vmatpush.msra.mxu0 0.0
        %707 = vmatpush.msra.mxu0 0.0
        %708 = vmatpush.msra.mxu0 0.0
        %709 = vmatpush.msra.mxu0 %v684
        %710 = vmatpush.msra.mxu0 %v683
        %711 = vmatpush.msra.mxu0 %v682
        %712 = vmatpush.msra.mxu0 %v681
        %713 = vmatmul.f32.gmra.mxu0 %v686
        %v714 = vpop.f32.mrf.mxu0
        %v715 = vadd.f32 0.0, %v714
        %716 = vmatmul.f32.gmra.mxu0 %v689
        %v717 = vpop.f32.mrf.mxu0
        %v718 = vadd.f32 0.0, %v717
        %719 = vmatmul.f32.gmra.mxu0 %v692
        %v720 = vpop.f32.mrf.mxu0
        %v721 = vadd.f32 0.0, %v720
        %722 = vmatmul.f32.gmra.mxu0 %v695
        %v723 = vpop.f32.mrf.mxu0
        %v724 = vadd.f32 0.0, %v723
        %725 = vdwg.mxu0
        %s726 = scalar_lea.vmem %s3, 64
        %v727 = vld [vmem:[%s726] sm:$0xff]
        %v728 = vld [vmem:[%s726 + $0x8] sm:$0xff]
        %v729 = vld [vmem:[%s726 + $0x10] sm:$0xff]
        %v730 = vld [vmem:[%s726 + $0x18] sm:$0xff]
        %v732 = vsel %vm319, %v672, 0
        %v735 = vsel %vm319, %v673, 0
        %v738 = vsel %vm319, %v674, 0
        %v741 = vsel %vm319, %v675, 0
        %743 = vmatpush.msra.mxu0 0.0
        %744 = vmatpush.msra.mxu0 0.0
        %745 = vmatpush.msra.mxu0 0.0
        %746 = vmatpush.msra.mxu0 0.0
        %747 = vmatpush.msra.mxu0 0.0
        %748 = vmatpush.msra.mxu0 0.0
        %749 = vmatpush.msra.mxu0 0.0
        %750 = vmatpush.msra.mxu0 0.0
        %751 = vmatpush.msra.mxu0 0.0
        %752 = vmatpush.msra.mxu0 0.0
        %753 = vmatpush.msra.mxu0 0.0
        %754 = vmatpush.msra.mxu0 0.0
        %755 = vmatpush.msra.mxu0 %v730
        %756 = vmatpush.msra.mxu0 %v729
        %757 = vmatpush.msra.mxu0 %v728
        %758 = vmatpush.msra.mxu0 %v727
        %759 = vmatmul.f32.gmra.mxu0 %v732
        %v760 = vpop.f32.mrf.mxu0
        %v761 = vadd.f32 0.0, %v760
        %762 = vmatmul.f32.gmra.mxu0 %v735
        %v763 = vpop.f32.mrf.mxu0
        %v764 = vadd.f32 0.0, %v763
        %765 = vmatmul.f32.gmra.mxu0 %v738
        %v766 = vpop.f32.mrf.mxu0
        %v767 = vadd.f32 0.0, %v766
        %768 = vmatmul.f32.gmra.mxu0 %v741
        %v769 = vpop.f32.mrf.mxu0
        %v770 = vadd.f32 0.0, %v769
        %771 = vdwg.mxu0
        %v772 = vmul.f32 %v345, %v761
        %v773 = vmul.f32 %v355, %v764
        %v774 = vmul.f32 %v365, %v767
        %v775 = vmul.f32 %v375, %v770
        %v776 = vpack.c.bf16 %v773, %v772
        %v777 = vpack.c.bf16 %v775, %v774
        %778 = vmatpush.bf16.msra.mxu0 0
        %779 = vmatpush.bf16.msra.mxu0 0
        %780 = vmatpush.bf16.msra.mxu0 0
        %781 = vmatpush.bf16.msra.mxu0 0
        %782 = vmatpush.bf16.msra.mxu0 0
        %783 = vmatpush.bf16.msra.mxu0 0
        %784 = vmatpush.bf16.msra.mxu0 %v777
        %785 = vmatpush.bf16.msra.mxu0 %v776
        %786 = vmatmul.bf16.gmra.mxu0 %v491
        %v787 = vpop.f32.mrf.mxu0
        %v788 = vadd.f32 0.0, %v787
        %v789 = vpop.f32.mrf.mxu0
        %v790 = vadd.f32 0.0, %v789
        %791 = vmatmul.bf16.gmra.mxu0 %v494
        %v792 = vpop.f32.mrf.mxu0
        %v793 = vadd.f32 0.0, %v792
        %v794 = vpop.f32.mrf.mxu0
        %v795 = vadd.f32 0.0, %v794
        %796 = vdwg.mxu0
        %v797 = vmul.f32 %v345, %v788
        %v798 = vmul.f32 %v355, %v790
        %v799 = vmul.f32 %v365, %v793
        %v800 = vmul.f32 %v375, %v795
        %v801 = vmul.f32 %v797, 0.2
        %v802 = vmul.f32 %v798, 0.2
        %v803 = vmul.f32 %v799, 0.2
        %v804 = vmul.f32 %v800, 0.2
        %v805 = vmul.f32 %v715, 0.8
        %v806 = vmul.f32 %v718, 0.8
        %v807 = vmul.f32 %v721, 0.8
        %v808 = vmul.f32 %v724, 0.8
        %v809 = vadd.f32 %v801, %v805
        %v810 = vadd.f32 %v802, %v806
        %v811 = vadd.f32 %v803, %v807
        %v812 = vadd.f32 %v804, %v808
        %v813 = vadd.f32 %v809, %v672
        %v814 = vadd.f32 %v810, %v673
        %v815 = vadd.f32 %v811, %v674
        %v816 = vadd.f32 %v812, %v675
        %v817 = vmax.f32 %v813, 0.0
        %v818 = vmax.f32 %v814, 0.0
        %v819 = vmax.f32 %v815, 0.0
        %v820 = vmax.f32 %v816, 0.0
        %s821 = scalar_lea.vmem %s2, 96
        %v822 = vld [vmem:[%s821] sm:$0xff]
        %v823 = vld [vmem:[%s821 + $0x8] sm:$0xff]
        %v824 = vld [vmem:[%s821 + $0x10] sm:$0xff]
        %v825 = vld [vmem:[%s821 + $0x18] sm:$0xff]
        %v827 = vsel %vm319, %v817, 0
        %v830 = vsel %vm319, %v818, 0
        %v833 = vsel %vm319, %v819, 0
        %v836 = vsel %vm319, %v820, 0
        %838 = vmatpush.msra.mxu0 0.0
        %839 = vmatpush.msra.mxu0 0.0
        %840 = vmatpush.msra.mxu0 0.0
        %841 = vmatpush.msra.mxu0 0.0
        %842 = vmatpush.msra.mxu0 0.0
        %843 = vmatpush.msra.mxu0 0.0
        %844 = vmatpush.msra.mxu0 0.0
        %845 = vmatpush.msra.mxu0 0.0
        %846 = vmatpush.msra.mxu0 0.0
        %847 = vmatpush.msra.mxu0 0.0
        %848 = vmatpush.msra.mxu0 0.0
        %849 = vmatpush.msra.mxu0 0.0
        %850 = vmatpush.msra.mxu0 %v825
        %851 = vmatpush.msra.mxu0 %v824
        %852 = vmatpush.msra.mxu0 %v823
        %853 = vmatpush.msra.mxu0 %v822
        %854 = vmatmul.f32.gmra.mxu0 %v827
        %v855 = vpop.f32.mrf.mxu0
        %v856 = vadd.f32 0.0, %v855
        %857 = vmatmul.f32.gmra.mxu0 %v830
        %v858 = vpop.f32.mrf.mxu0
        %v859 = vadd.f32 0.0, %v858
        %860 = vmatmul.f32.gmra.mxu0 %v833
        %v861 = vpop.f32.mrf.mxu0
        %v862 = vadd.f32 0.0, %v861
        %863 = vmatmul.f32.gmra.mxu0 %v836
        %v864 = vpop.f32.mrf.mxu0
        %v865 = vadd.f32 0.0, %v864
        %866 = vdwg.mxu0
        %s867 = scalar_lea.vmem %s3, 96
        %v868 = vld [vmem:[%s867] sm:$0xff]
        %v869 = vld [vmem:[%s867 + $0x8] sm:$0xff]
        %v870 = vld [vmem:[%s867 + $0x10] sm:$0xff]
        %v871 = vld [vmem:[%s867 + $0x18] sm:$0xff]
        %v873 = vsel %vm319, %v813, 0
        %v876 = vsel %vm319, %v814, 0
        %v879 = vsel %vm319, %v815, 0
        %v882 = vsel %vm319, %v816, 0
        %884 = vmatpush.msra.mxu0 0.0
        %885 = vmatpush.msra.mxu0 0.0
        %886 = vmatpush.msra.mxu0 0.0
        %887 = vmatpush.msra.mxu0 0.0
        %888 = vmatpush.msra.mxu0 0.0
        %889 = vmatpush.msra.mxu0 0.0
        %890 = vmatpush.msra.mxu0 0.0
        %891 = vmatpush.msra.mxu0 0.0
        %892 = vmatpush.msra.mxu0 0.0
        %893 = vmatpush.msra.mxu0 0.0
        %894 = vmatpush.msra.mxu0 0.0
        %895 = vmatpush.msra.mxu0 0.0
        %896 = vmatpush.msra.mxu0 %v871
        %897 = vmatpush.msra.mxu0 %v870
        %898 = vmatpush.msra.mxu0 %v869
        %899 = vmatpush.msra.mxu0 %v868
        %900 = vmatmul.f32.gmra.mxu0 %v873
        %v901 = vpop.f32.mrf.mxu0
        %v902 = vadd.f32 0.0, %v901
        %903 = vmatmul.f32.gmra.mxu0 %v876
        %v904 = vpop.f32.mrf.mxu0
        %v905 = vadd.f32 0.0, %v904
        %906 = vmatmul.f32.gmra.mxu0 %v879
        %v907 = vpop.f32.mrf.mxu0
        %v908 = vadd.f32 0.0, %v907
        %909 = vmatmul.f32.gmra.mxu0 %v882
        %v910 = vpop.f32.mrf.mxu0
        %v911 = vadd.f32 0.0, %v910
        %912 = vdwg.mxu0
        %v913 = vmul.f32 %v345, %v902
        %v914 = vmul.f32 %v355, %v905
        %v915 = vmul.f32 %v365, %v908
        %v916 = vmul.f32 %v375, %v911
        %v917 = vpack.c.bf16 %v914, %v913
        %v918 = vpack.c.bf16 %v916, %v915
        %919 = vmatpush.bf16.msra.mxu0 0
        %920 = vmatpush.bf16.msra.mxu0 0
        %921 = vmatpush.bf16.msra.mxu0 0
        %922 = vmatpush.bf16.msra.mxu0 0
        %923 = vmatpush.bf16.msra.mxu0 0
        %924 = vmatpush.bf16.msra.mxu0 0
        %925 = vmatpush.bf16.msra.mxu0 %v918
        %926 = vmatpush.bf16.msra.mxu0 %v917
        %927 = vmatmul.bf16.gmra.mxu0 %v491
        %v928 = vpop.f32.mrf.mxu0
        %v929 = vadd.f32 0.0, %v928
        %v930 = vpop.f32.mrf.mxu0
        %v931 = vadd.f32 0.0, %v930
        %932 = vmatmul.bf16.gmra.mxu0 %v494
        %v933 = vpop.f32.mrf.mxu0
        %v934 = vadd.f32 0.0, %v933
        %v935 = vpop.f32.mrf.mxu0
        %v936 = vadd.f32 0.0, %v935
        %937 = vdwg.mxu0
        %v938 = vmul.f32 %v345, %v929
        %v939 = vmul.f32 %v355, %v931
        %v940 = vmul.f32 %v365, %v934
        %v941 = vmul.f32 %v375, %v936
        %v942 = vmul.f32 %v938, 0.2
        %v943 = vmul.f32 %v939, 0.2
        %v944 = vmul.f32 %v940, 0.2
        %v945 = vmul.f32 %v941, 0.2
        %v946 = vmul.f32 %v856, 0.8
        %v947 = vmul.f32 %v859, 0.8
        %v948 = vmul.f32 %v862, 0.8
        %v949 = vmul.f32 %v865, 0.8
        %v950 = vadd.f32 %v942, %v946
        %v951 = vadd.f32 %v943, %v947
        %v952 = vadd.f32 %v944, %v948
        %v953 = vadd.f32 %v945, %v949
        %v954 = vadd.f32 %v950, %v813
        %v955 = vadd.f32 %v951, %v814
        %v956 = vadd.f32 %v952, %v815
        %v957 = vadd.f32 %v953, %v816
        %958 = vst.msk [vmem:[%s287] sm:$0xff] %vm319, %v954
        %959 = vst.msk [vmem:[%s287 + $0x8] sm:$0xff] %vm319, %v955
        %960 = vst.msk [vmem:[%s287 + $0x10] sm:$0xff] %vm319, %v956
        %961 = vst.msk [vmem:[%s287 + $0x18] sm:$0xff] %vm319, %v957
        %v962 = vld [vmem:[%s4] sm:$0xff]
        %v963 = vld [vmem:[%s4 + $0x8] sm:$0xff]
        %v964 = vld [vmem:[%s4 + $0x10] sm:$0xff]
        %v965 = vld [vmem:[%s4 + $0x18] sm:$0xff]
        %v967 = vsel %vm319, %v954, 0
        %v970 = vsel %vm319, %v955, 0
        %v973 = vsel %vm319, %v956, 0
        %v976 = vsel %vm319, %v957, 0
        %978 = vmatpush.msra.mxu0 0.0
        %979 = vmatpush.msra.mxu0 0.0
        %980 = vmatpush.msra.mxu0 0.0
        %981 = vmatpush.msra.mxu0 0.0
        %982 = vmatpush.msra.mxu0 0.0
        %983 = vmatpush.msra.mxu0 0.0
        %984 = vmatpush.msra.mxu0 0.0
        %985 = vmatpush.msra.mxu0 0.0
        %986 = vmatpush.msra.mxu0 0.0
        %987 = vmatpush.msra.mxu0 0.0
        %988 = vmatpush.msra.mxu0 0.0
        %989 = vmatpush.msra.mxu0 0.0
        %990 = vmatpush.msra.mxu0 %v965
        %991 = vmatpush.msra.mxu0 %v964
        %992 = vmatpush.msra.mxu0 %v963
        %993 = vmatpush.msra.mxu0 %v962
        %994 = vmatmul.f32.gmra.mxu0 %v967
        %v995 = vpop.f32.mrf.mxu0
        %v996 = vadd.f32 0.0, %v995
        %997 = vmatmul.f32.gmra.mxu0 %v970
        %v998 = vpop.f32.mrf.mxu0
        %v999 = vadd.f32 0.0, %v998
        %1000 = vmatmul.f32.gmra.mxu0 %v973
        %v1001 = vpop.f32.mrf.mxu0
        %v1002 = vadd.f32 0.0, %v1001
        %1003 = vmatmul.f32.gmra.mxu0 %v976
        %v1004 = vpop.f32.mrf.mxu0
        %v1005 = vadd.f32 0.0, %v1004
        %1006 = vdwg.mxu0
        %v1007 = vld [vmem:[%s5] sm:$0xff]
        %v1008 = vld [vmem:[%s5 + $0x8] sm:$0xff]
        %v1009 = vld [vmem:[%s5 + $0x10] sm:$0xff]
        %v1010 = vld [vmem:[%s5 + $0x18] sm:$0xff]
        %1011 = vmatpush.msra.mxu0 0.0
        %1012 = vmatpush.msra.mxu0 0.0
        %1013 = vmatpush.msra.mxu0 0.0
        %1014 = vmatpush.msra.mxu0 0.0
        %1015 = vmatpush.msra.mxu0 0.0
        %1016 = vmatpush.msra.mxu0 0.0
        %1017 = vmatpush.msra.mxu0 0.0
        %1018 = vmatpush.msra.mxu0 0.0
        %1019 = vmatpush.msra.mxu0 0.0
        %1020 = vmatpush.msra.mxu0 0.0
        %1021 = vmatpush.msra.mxu0 0.0
        %1022 = vmatpush.msra.mxu0 0.0
        %1023 = vmatpush.msra.mxu0 %v1010
        %1024 = vmatpush.msra.mxu0 %v1009
        %1025 = vmatpush.msra.mxu0 %v1008
        %1026 = vmatpush.msra.mxu0 %v1007
        %1027 = vmatmul.f32.gmra.mxu0 %v967
        %v1028 = vpop.f32.mrf.mxu0
        %v1029 = vadd.f32 0.0, %v1028
        %1030 = vmatmul.f32.gmra.mxu0 %v970
        %v1031 = vpop.f32.mrf.mxu0
        %v1032 = vadd.f32 0.0, %v1031
        %1033 = vmatmul.f32.gmra.mxu0 %v973
        %v1034 = vpop.f32.mrf.mxu0
        %v1035 = vadd.f32 0.0, %v1034
        %1036 = vmatmul.f32.gmra.mxu0 %v976
        %v1037 = vpop.f32.mrf.mxu0
        %v1038 = vadd.f32 0.0, %v1037
        %1039 = vdwg.mxu0
        %v1040 = vmul.f32 %v345, %v1029
        %v1041 = vmul.f32 %v355, %v1032
        %v1042 = vmul.f32 %v365, %v1035
        %v1043 = vmul.f32 %v375, %v1038
        %v1044 = vpack.c.bf16 %v1041, %v1040
        %v1045 = vpack.c.bf16 %v1043, %v1042
        %1046 = vmatpush.bf16.msra.mxu0 0
        %1047 = vmatpush.bf16.msra.mxu0 0
        %1048 = vmatpush.bf16.msra.mxu0 0
        %1049 = vmatpush.bf16.msra.mxu0 0
        %1050 = vmatpush.bf16.msra.mxu0 0
        %1051 = vmatpush.bf16.msra.mxu0 0
        %1052 = vmatpush.bf16.msra.mxu0 %v1045
        %1053 = vmatpush.bf16.msra.mxu0 %v1044
        %1054 = vmatmul.bf16.gmra.mxu0 %v491
        %v1055 = vpop.f32.mrf.mxu0
        %v1056 = vadd.f32 0.0, %v1055
        %v1057 = vpop.f32.mrf.mxu0
        %v1058 = vadd.f32 0.0, %v1057
        %1059 = vmatmul.bf16.gmra.mxu0 %v494
        %v1060 = vpop.f32.mrf.mxu0
        %v1061 = vadd.f32 0.0, %v1060
        %v1062 = vpop.f32.mrf.mxu0
        %v1063 = vadd.f32 0.0, %v1062
        %1064 = vdwg.mxu0
        %v1065 = vmul.f32 %v345, %v1056
        %v1066 = vmul.f32 %v355, %v1058
        %v1067 = vmul.f32 %v365, %v1061
        %v1068 = vmul.f32 %v375, %v1063
        %v1069 = vmul.f32 %v996, 0.8
        %v1070 = vmul.f32 %v999, 0.8
        %v1071 = vmul.f32 %v1002, 0.8
        %v1072 = vmul.f32 %v1005, 0.8
        %v1073 = vmul.f32 %v1065, 0.2
        %v1074 = vmul.f32 %v1066, 0.2
        %v1075 = vmul.f32 %v1067, 0.2
        %v1076 = vmul.f32 %v1068, 0.2
        %v1077 = vadd.f32 %v1069, %v1073
        %v1078 = vadd.f32 %v1070, %v1074
        %v1079 = vadd.f32 %v1071, %v1075
        %v1080 = vadd.f32 %v1072, %v1076
        %vm1081 = vcmask 48128
        %1082 = vst.msk [vmem:[%s309] sm:$0xff] %vm1081, %v1077
        %1083 = vst.msk [vmem:[%s309 + $0x8] sm:$0xff] %vm1081, %v1078
        %1084 = vst.msk [vmem:[%s309 + $0x10] sm:$0xff] %vm1081, %v1079
        %1085 = vst.msk [vmem:[%s309 + $0x18] sm:$0xff] %vm1081, %v1080
        %s1086 = sand.u32 %s166, 1
        %s1087 = scalar_lea.sflag [#allocation3], %s1086
        %s1088 = sand.u32 %s166, 1
        %s1089 = smul.addr %s1088, 32
        %s1090 = scalar_lea.vmem [#allocation2], %s1089
        %p1091 = scmp.lt.s32.totalorder %s22, 1
        %s1092 = scalar_select %p1091, %s22, 1
        %s1093 = smul.addr %s1092, 4
        %s1094 = smul.addr %s1093, 8
        %s1095 = scalar_lea.vmem %s7, %s1094
        // Predicated region
        $region45: #{_lambda_.12} parent=43 // pred_check
          %p1096 = pneg %p176
        $region46: #{_lambda_.12} parent=43 // pred_check_branch
          %1098 = sbr.rel (%p1096) target = $region48
        $region47: #{_lambda_.12} parent=43 // pred_region
          %1100 = vsyncadd %s1087, 0
          %s1101 = smul.addr %s22, 4
          %s1102 = smul.addr %s1101, 8
          %s1103 = scalar_lea.hbm %s6, %s1102
          %s1104 = sshll.u32 %s1090, 4
          %s1105 = int_to_ptr.vmem [resolvable:$true] %s1104
          %s1106 = sshll.u32 %s1103, 4
          %s1107 = int_to_ptr.hbm [resolvable:$true] %s1106
          %1112 = dma.vmem_to_hbm [thread:$0]  %s1105, 512, %s1107, %s1087, 128, 128, 8
        $region48: #{_lambda_.12} parent=43 // pred_fallthru
          _
        // Predicated region
        $region49: #{_lambda_.12} parent=43 // pred_check
          %p1113 = pneg %p202
        $region50: #{_lambda_.12} parent=43 // pred_check_branch
          %1115 = sbr.rel (%p1113) target = $region52
        $region51: #{_lambda_.12} parent=43 // pred_region
          _
        $region52: #{_lambda_.12} parent=43 // pred_fallthru
          _
      $region44: #{_lambda_.12} parent=5 // pred_fallthru
        _
      %p1116 = scmp.le.s32.totalorder 2, %s17
      // Predicated region
      $region53: #{_lambda_.12} parent=5 // pred_check
        %p1117 = pneg %p1116
      $region54: #{_lambda_.12} parent=5 // pred_check_branch
        %1119 = sbr.rel (%p1117) target = $region56
      $region55: #{_lambda_.12} parent=5 // pred_region
        %s1120 = ssub.s32 %s17, 2
        // Predicated region
        $region57: #{_lambda_.12} parent=55 // pred_check
          %p1121 = pneg %p182
        $region58: #{_lambda_.12} parent=55 // pred_check_branch
          %1123 = sbr.rel (%p1121) target = $region60
        $region59: #{_lambda_.12} parent=55 // pred_region
          %s1124 = sand.u32 %s167, 1
          %s1125 = scalar_lea.sflag [#allocation3], %s1124
          %s1126 = sand.u32 %s167, 1
          %s1127 = smul.addr %s1126, 32
          %s1128 = scalar_lea.vmem [#allocation2], %s1127
          %1130 = dma.done %s1125, 512
        $region60: #{_lambda_.12} parent=55 // pred_fallthru
          _
        // Predicated region
        $region61: #{_lambda_.12} parent=55 // pred_check
          %p1131 = pneg %p208
        $region62: #{_lambda_.12} parent=55 // pred_check_branch
          %1133 = sbr.rel (%p1131) target = $region64
        $region63: #{_lambda_.12} parent=55 // pred_region
          %p1134 = scmp.lt.s32.totalorder %s23, 1
          %s1135 = scalar_select %p1134, %s23, 1
          %s1136 = smul.addr %s1135, 4
          %s1137 = smul.addr %s1136, 8
          %s1138 = scalar_lea.vmem %s7, %s1137
        $region64: #{_lambda_.12} parent=55 // pred_fallthru
          _
      $region56: #{_lambda_.12} parent=5 // pred_fallthru
        _
    $region6: #{_lambda_.12} parent=1 // loop_footer
      %s21 = sadd.s32 1, %s17
    $region7: #{_lambda_.12} parent=1 // loop_footer_branch
      %16 = sbr.rel target = $region3
    $region8: #{_lambda_.12} parent=1 // loop_exit
      _
    %1139 = vsyncpa [#allocation3], 1
    %s1140 = scalar_lea.sflag [#allocation3], 1
    %1141 = vsyncpa %s1140, 1

</llo_original>
